<compile_context>
chip_gen: v5e
topology: v5e:2x2
jax: 0.10.0
libtpu: 0.0.40
codegen_flags: <defaults>
</compile_context>

<pallas_src>
import functools

import jax
import jax.numpy as jnp
from jax.experimental import pallas as pl
from jax.experimental.pallas import tpu as pltpu


# ---------------------------------------------------------------------------
# Fused kernel: one batch element per grid step.
# ---------------------------------------------------------------------------
def _attention_kernel(x_ref, w1_ref, b1_ref, w2_ref, b2_ref, w3_ref, b3_ref,
                      o_ref, xpad_ref, hpad_ref, *, H, W, Cin, Cmid):
    HW = H * W

    def im2col(src_ref, C):
        # (H+2, W+2, C) zero-padded buffer -> (H*W, 9*C) patch matrix.
        cols = []
        for di in range(3):            # static, unrolled
            for dj in range(3):
                cols.append(src_ref[di:di + H, dj:dj + W, :].reshape(HW, C))
        return jnp.concatenate(cols, axis=-1)

    # ---- conv1: 3x3, pad=1 (padding built in VMEM scratch) -------------------
    xpad_ref[...] = jnp.zeros_like(xpad_ref)
    xpad_ref[1:H + 1, 1:W + 1, :] = x_ref[0]
    col1 = im2col(xpad_ref, Cin).astype(jnp.bfloat16)            # (HW, 9*Cin)
    h1 = jnp.dot(col1, w1_ref[...], preferred_element_type=jnp.float32)
    h1 = jnp.maximum(h1 + b1_ref[...], 0.0)                      # (HW, Cmid) f32

    # ---- conv2: 3x3, pad=1 ----------------------------------------------------
    hpad_ref[...] = jnp.zeros_like(hpad_ref)
    hpad_ref[1:H + 1, 1:W + 1, :] = h1.reshape(H, W, Cmid)
    col2 = im2col(hpad_ref, Cmid).astype(jnp.bfloat16)           # (HW, 9*Cmid)
    h2 = jnp.dot(col2, w2_ref[...], preferred_element_type=jnp.float32)
    h2 = jnp.maximum(h2 + b2_ref[...], 0.0)                      # (HW, Cmid) f32

    # ---- conv3: 1x1 + sigmoid, produced transposed (Cout, HW) = lane-dense ----
    # w3_ref is (Cout, Cmid); contract both operands on Cmid (trans_b matmul):
    #   (Cout, Cmid) x (HW, Cmid)^T  ->  (Cout, HW)  ==  (h2 @ w3.T).T
    z = jax.lax.dot_general(
        w3_ref[...], h2.astype(jnp.bfloat16),
        dimension_numbers=(((1,), (1,)), ((), ())),
        preferred_element_type=jnp.float32)                      # (Cout, HW)
    z = z + b3_ref[...]                                          # bias (Cout, 1)
    o_ref[0] = pl.reciprocal(1.0 + jnp.exp(-z), approx=True)     # sigmoid (EUP)


# ---------------------------------------------------------------------------
# Wrapper
# ---------------------------------------------------------------------------
def _im2col_weight(w_oihw):
    # PyTorch (Cout, Cin, kH, kW) -> (kH*kW*Cin, Cout), tap-major / Cin-minor,
    # matching the in-kernel im2col column ordering.
    Cout, Cin, kH, kW = w_oihw.shape
    return jnp.transpose(w_oihw, (2, 3, 1, 0)).reshape(kH * kW * Cin, Cout)


def attention_forward(params, x_nchw):
    N, Cin, H, W = x_nchw.shape
    Cmid = params["w1"].shape[0]
    Cout = params["w3"].shape[0]

    # Weight / bias plumbing (bf16 weights halve DMA bytes; biases stay f32).
    w1 = _im2col_weight(params["w1"]).astype(jnp.bfloat16)       # (9*Cin, Cmid)
    w2 = _im2col_weight(params["w2"]).astype(jnp.bfloat16)       # (9*Cmid, Cmid)
    w3 = params["w3"][:, :, 0, 0].astype(jnp.bfloat16)           # (Cout, Cmid)
    b1 = params["b1"].reshape(1, Cmid).astype(jnp.float32)
    b2 = params["b2"].reshape(1, Cmid).astype(jnp.float32)
    b3 = params["b3"].reshape(Cout, 1).astype(jnp.float32)

    x = jnp.transpose(x_nchw, (0, 2, 3, 1)).astype(jnp.float32)  # NHWC (C on lanes)

    kernel = functools.partial(_attention_kernel, H=H, W=W, Cin=Cin, Cmid=Cmid)
    out = pl.pallas_call(
        kernel,
        out_shape=jax.ShapeDtypeStruct((N, Cout, H * W), jnp.float32),
        grid=(N,),
        in_specs=[
            pl.BlockSpec((1, H, W, Cin), lambda n: (n, 0, 0, 0)),
            pl.BlockSpec(w1.shape, lambda n: (0, 0)),
            pl.BlockSpec(b1.shape, lambda n: (0, 0)),
            pl.BlockSpec(w2.shape, lambda n: (0, 0)),
            pl.BlockSpec(b2.shape, lambda n: (0, 0)),
            pl.BlockSpec(w3.shape, lambda n: (0, 0)),
            pl.BlockSpec(b3.shape, lambda n: (0, 0)),
        ],
        out_specs=pl.BlockSpec((1, Cout, H * W), lambda n: (n, 0, 0)),
        scratch_shapes=[
            pltpu.VMEM((H + 2, W + 2, Cin), jnp.float32),   # padded input
            pltpu.VMEM((H + 2, W + 2, Cmid), jnp.float32),  # padded hidden
        ],
        compiler_params=pltpu.CompilerParams(dimension_semantics=("parallel",)),
    )(x, w1, b1, w2, b2, w3, b3)

    # (N, Cout, H*W) is already channel-major: just reshape to NCHW.
    return out.reshape(N, Cout, H, W)


# ---------------------------------------------------------------------------
# Pure-JAX reference (PyTorch semantics) for a correctness spot-check.
# ---------------------------------------------------------------------------
def _attention_ref(params, x):
    dn = ("NCHW", "OIHW", "NCHW")

    def conv(h, w, b, pad):
        y = jax.lax.conv_general_dilated(
            h, w, (1, 1), ((pad, pad), (pad, pad)), dimension_numbers=dn)
        return y + b.reshape(1, -1, 1, 1)

    h = jax.nn.relu(conv(x, params["w1"], params["b1"], 1))
    h = jax.nn.relu(conv(h, params["w2"], params["b2"], 1))
    return jax.nn.sigmoid(conv(h, params["w3"], params["b3"], 0))


if __name__ == "__main__":
    key = jax.random.PRNGKey(0)
    kx, k1, k2, k3, kb1, kb2, kb3 = jax.random.split(key, 7)

    # Small shapes implied by the module: batch=2, in_channels=8, 16x16 spatial.
    N, Cin, H, W = 2, 8, 16, 16
    Cmid, Cout = Cin // 2, 4

    params = {
        "w1": 0.1 * jax.random.normal(k1, (Cmid, Cin, 3, 3), jnp.float32),
        "b1": 0.1 * jax.random.normal(kb1, (Cmid,), jnp.float32),
        "w2": 0.1 * jax.random.normal(k2, (Cmid, Cmid, 3, 3), jnp.float32),
        "b2": 0.1 * jax.random.normal(kb2, (Cmid,), jnp.float32),
        "w3": 0.1 * jax.random.normal(k3, (Cout, Cmid, 1, 1), jnp.float32),
        "b3": 0.1 * jax.random.normal(kb3, (Cout,), jnp.float32),
    }
    x = jax.random.normal(kx, (N, Cin, H, W), jnp.float32)

    out = jax.jit(attention_forward)(params, x)
    jax.block_until_ready(out)
    assert out.shape == (N, Cout, H, W), out.shape

    ref = _attention_ref(params, x)
    err = float(jnp.max(jnp.abs(out - ref)))
    assert err < 5e-2, f"mismatch vs reference: max abs err = {err}"

    print("KERNEL_OK")
</pallas_src>

<mosaic_0001>
module attributes {stable_mosaic.version = 11 : i64} {
  func.func @_attention_kernel(%arg0: i32, %arg1: memref<1x16x16x8xf32, #tpu.memory_space<vmem>>, %arg2: memref<72x4xbf16, #tpu.memory_space<vmem>>, %arg3: memref<1x4xf32, #tpu.memory_space<vmem>>, %arg4: memref<36x4xbf16, #tpu.memory_space<vmem>>, %arg5: memref<1x4xf32, #tpu.memory_space<vmem>>, %arg6: memref<4x4xbf16, #tpu.memory_space<vmem>>, %arg7: memref<4x1xf32, #tpu.memory_space<vmem>>, %arg8: memref<1x4x256xf32, #tpu.memory_space<vmem>>, %arg9: memref<18x18x8xf32, #tpu.memory_space<vmem>>, %arg10: memref<18x18x4xf32, #tpu.memory_space<vmem>>) attributes {dimension_semantics = [#tpu.dimension_semantics<parallel>], iteration_bounds = array<i64: 2>, scalar_prefetch = 0 : i64, scratch_operands = 2 : i64, tpu.core_type = #tpu.core_type<tc>, window_params = [{transform_indices = @transform_0, window_bounds = array<i64: 1, 16, 16, 8>}, {pipeline_mode = #tpu.pipeline_mode<synchronous>, transform_indices = @transform_1, window_bounds = array<i64: 72, 4>}, {pipeline_mode = #tpu.pipeline_mode<synchronous>, transform_indices = @transform_2, window_bounds = array<i64: 1, 4>}, {pipeline_mode = #tpu.pipeline_mode<synchronous>, transform_indices = @transform_3, window_bounds = array<i64: 36, 4>}, {pipeline_mode = #tpu.pipeline_mode<synchronous>, transform_indices = @transform_4, window_bounds = array<i64: 1, 4>}, {pipeline_mode = #tpu.pipeline_mode<synchronous>, transform_indices = @transform_5, window_bounds = array<i64: 4, 4>}, {pipeline_mode = #tpu.pipeline_mode<synchronous>, transform_indices = @transform_6, window_bounds = array<i64: 4, 1>}, {transform_indices = @transform_7, window_bounds = array<i64: 1, 4, 256>}]} {
    %cst = arith.constant 0.000000e+00 : f32
    %0 = vector.broadcast %cst : f32 to vector<18x18x8xf32>
    %c0 = arith.constant 0 : index
    %c0_0 = arith.constant 0 : index
    %c0_1 = arith.constant 0 : index
    %1 = vector.load %arg9[%c0, %c0_0, %c0_1] : memref<18x18x8xf32, #tpu.memory_space<vmem>>, vector<18x18x8xf32>
    tpu.vector_store %arg9[%c0, %c0_0, %c0_1], %0 {strides = array<i32>} : memref<18x18x8xf32, #tpu.memory_space<vmem>>, vector<18x18x8xf32>,
    %c0_2 = arith.constant 0 : index
    %c0_3 = arith.constant 0 : index
    %c0_4 = arith.constant 0 : index
    %c0_5 = arith.constant 0 : index
    %2 = vector.load %arg1[%c0_2, %c0_3, %c0_4, %c0_5] : memref<1x16x16x8xf32, #tpu.memory_space<vmem>>, vector<1x16x16x8xf32>
    %3 = vector.shape_cast %2 : vector<1x16x16x8xf32> to vector<16x16x8xf32>
    %c1 = arith.constant 1 : index
    %c1_6 = arith.constant 1 : index
    %c0_7 = arith.constant 0 : index
    %4 = vector.load %arg9[%c1, %c1_6, %c0_7] : memref<18x18x8xf32, #tpu.memory_space<vmem>>, vector<16x16x8xf32>
    tpu.vector_store %arg9[%c1, %c1_6, %c0_7], %3 {strides = array<i32>} : memref<18x18x8xf32, #tpu.memory_space<vmem>>, vector<16x16x8xf32>,
    %c0_8 = arith.constant 0 : index
    %c0_9 = arith.constant 0 : index
    %c0_10 = arith.constant 0 : index
    %5 = vector.load %arg9[%c0_8, %c0_9, %c0_10] : memref<18x18x8xf32, #tpu.memory_space<vmem>>, vector<16x16x8xf32>
    %6 = vector.shape_cast %5 : vector<16x16x8xf32> to vector<256x8xf32>
    %c0_11 = arith.constant 0 : index
    %c1_12 = arith.constant 1 : index
    %c0_13 = arith.constant 0 : index
    %7 = vector.load %arg9[%c0_11, %c1_12, %c0_13] : memref<18x18x8xf32, #tpu.memory_space<vmem>>, vector<16x16x8xf32>
    %8 = vector.shape_cast %7 : vector<16x16x8xf32> to vector<256x8xf32>
    %c0_14 = arith.constant 0 : index
    %c2 = arith.constant 2 : index
    %c0_15 = arith.constant 0 : index
    %9 = vector.load %arg9[%c0_14, %c2, %c0_15] : memref<18x18x8xf32, #tpu.memory_space<vmem>>, vector<16x16x8xf32>
    %10 = vector.shape_cast %9 : vector<16x16x8xf32> to vector<256x8xf32>
    %c1_16 = arith.constant 1 : index
    %c0_17 = arith.constant 0 : index
    %c0_18 = arith.constant 0 : index
    %11 = vector.load %arg9[%c1_16, %c0_17, %c0_18] : memref<18x18x8xf32, #tpu.memory_space<vmem>>, vector<16x16x8xf32>
    %12 = vector.shape_cast %11 : vector<16x16x8xf32> to vector<256x8xf32>
    %c1_19 = arith.constant 1 : index
    %c1_20 = arith.constant 1 : index
    %c0_21 = arith.constant 0 : index
    %13 = vector.load %arg9[%c1_19, %c1_20, %c0_21] : memref<18x18x8xf32, #tpu.memory_space<vmem>>, vector<16x16x8xf32>
    %14 = vector.shape_cast %13 : vector<16x16x8xf32> to vector<256x8xf32>
    %c1_22 = arith.constant 1 : index
    %c2_23 = arith.constant 2 : index
    %c0_24 = arith.constant 0 : index
    %15 = vector.load %arg9[%c1_22, %c2_23, %c0_24] : memref<18x18x8xf32, #tpu.memory_space<vmem>>, vector<16x16x8xf32>
    %16 = vector.shape_cast %15 : vector<16x16x8xf32> to vector<256x8xf32>
    %c2_25 = arith.constant 2 : index
    %c0_26 = arith.constant 0 : index
    %c0_27 = arith.constant 0 : index
    %17 = vector.load %arg9[%c2_25, %c0_26, %c0_27] : memref<18x18x8xf32, #tpu.memory_space<vmem>>, vector<16x16x8xf32>
    %18 = vector.shape_cast %17 : vector<16x16x8xf32> to vector<256x8xf32>
    %c2_28 = arith.constant 2 : index
    %c1_29 = arith.constant 1 : index
    %c0_30 = arith.constant 0 : index
    %19 = vector.load %arg9[%c2_28, %c1_29, %c0_30] : memref<18x18x8xf32, #tpu.memory_space<vmem>>, vector<16x16x8xf32>
    %20 = vector.shape_cast %19 : vector<16x16x8xf32> to vector<256x8xf32>
    %c2_31 = arith.constant 2 : index
    %c2_32 = arith.constant 2 : index
    %c0_33 = arith.constant 0 : index
    %21 = vector.load %arg9[%c2_31, %c2_32, %c0_33] : memref<18x18x8xf32, #tpu.memory_space<vmem>>, vector<16x16x8xf32>
    %22 = vector.shape_cast %21 : vector<16x16x8xf32> to vector<256x8xf32>
    %23 = tpu.concatenate %6, %8, %10, %12, %14, %16, %18, %20, %22 in 1 : vector<256x8xf32>, vector<256x8xf32>, vector<256x8xf32>, vector<256x8xf32>, vector<256x8xf32>, vector<256x8xf32>, vector<256x8xf32>, vector<256x8xf32>, vector<256x8xf32> -> vector<256x72xf32>
    %24 = arith.truncf %23 : vector<256x72xf32> to vector<256x72xbf16>
    %c0_34 = arith.constant 0 : index
    %c0_35 = arith.constant 0 : index
    %25 = vector.load %arg2[%c0_34, %c0_35] : memref<72x4xbf16, #tpu.memory_space<vmem>>, vector<72x4xbf16>
    %cst_36 = arith.constant dense<0.000000e+00> : vector<256x4xf32>
    %26 = tpu.matmul %24, %25, %cst_36 {dimension_numbers = #tpu.dot_dimension_numbers<[1], [0], [0], [1], [0, 0, 1, 1], [], []>} : vector<256x72xbf16>, vector<72x4xbf16>, vector<256x4xf32> -> vector<256x4xf32>
    %c0_37 = arith.constant 0 : index
    %c0_38 = arith.constant 0 : index
    %27 = vector.load %arg3[%c0_37, %c0_38] : memref<1x4xf32, #tpu.memory_space<vmem>>, vector<1x4xf32>
    %28 = vector.broadcast %27 : vector<1x4xf32> to vector<256x4xf32>
    %29 = arith.addf %26, %28 : vector<256x4xf32>
    %cst_39 = arith.constant 0.000000e+00 : f32
    %30 = vector.broadcast %cst_39 : f32 to vector<256x4xf32>
    %31 = arith.maximumf %29, %30 : vector<256x4xf32>
    %cst_40 = arith.constant 0.000000e+00 : f32
    %32 = vector.broadcast %cst_40 : f32 to vector<18x18x4xf32>
    %c0_41 = arith.constant 0 : index
    %c0_42 = arith.constant 0 : index
    %c0_43 = arith.constant 0 : index
    %33 = vector.load %arg10[%c0_41, %c0_42, %c0_43] : memref<18x18x4xf32, #tpu.memory_space<vmem>>, vector<18x18x4xf32>
    tpu.vector_store %arg10[%c0_41, %c0_42, %c0_43], %32 {strides = array<i32>} : memref<18x18x4xf32, #tpu.memory_space<vmem>>, vector<18x18x4xf32>,
    %34 = vector.shape_cast %31 : vector<256x4xf32> to vector<16x16x4xf32>
    %c1_44 = arith.constant 1 : index
    %c1_45 = arith.constant 1 : index
    %c0_46 = arith.constant 0 : index
    %35 = vector.load %arg10[%c1_44, %c1_45, %c0_46] : memref<18x18x4xf32, #tpu.memory_space<vmem>>, vector<16x16x4xf32>
    tpu.vector_store %arg10[%c1_44, %c1_45, %c0_46], %34 {strides = array<i32>} : memref<18x18x4xf32, #tpu.memory_space<vmem>>, vector<16x16x4xf32>,
    %c0_47 = arith.constant 0 : index
    %c0_48 = arith.constant 0 : index
    %c0_49 = arith.constant 0 : index
    %36 = vector.load %arg10[%c0_47, %c0_48, %c0_49] : memref<18x18x4xf32, #tpu.memory_space<vmem>>, vector<16x16x4xf32>
    %37 = vector.shape_cast %36 : vector<16x16x4xf32> to vector<256x4xf32>
    %c0_50 = arith.constant 0 : index
    %c1_51 = arith.constant 1 : index
    %c0_52 = arith.constant 0 : index
    %38 = vector.load %arg10[%c0_50, %c1_51, %c0_52] : memref<18x18x4xf32, #tpu.memory_space<vmem>>, vector<16x16x4xf32>
    %39 = vector.shape_cast %38 : vector<16x16x4xf32> to vector<256x4xf32>
    %c0_53 = arith.constant 0 : index
    %c2_54 = arith.constant 2 : index
    %c0_55 = arith.constant 0 : index
    %40 = vector.load %arg10[%c0_53, %c2_54, %c0_55] : memref<18x18x4xf32, #tpu.memory_space<vmem>>, vector<16x16x4xf32>
    %41 = vector.shape_cast %40 : vector<16x16x4xf32> to vector<256x4xf32>
    %c1_56 = arith.constant 1 : index
    %c0_57 = arith.constant 0 : index
    %c0_58 = arith.constant 0 : index
    %42 = vector.load %arg10[%c1_56, %c0_57, %c0_58] : memref<18x18x4xf32, #tpu.memory_space<vmem>>, vector<16x16x4xf32>
    %43 = vector.shape_cast %42 : vector<16x16x4xf32> to vector<256x4xf32>
    %c1_59 = arith.constant 1 : index
    %c1_60 = arith.constant 1 : index
    %c0_61 = arith.constant 0 : index
    %44 = vector.load %arg10[%c1_59, %c1_60, %c0_61] : memref<18x18x4xf32, #tpu.memory_space<vmem>>, vector<16x16x4xf32>
    %45 = vector.shape_cast %44 : vector<16x16x4xf32> to vector<256x4xf32>
    %c1_62 = arith.constant 1 : index
    %c2_63 = arith.constant 2 : index
    %c0_64 = arith.constant 0 : index
    %46 = vector.load %arg10[%c1_62, %c2_63, %c0_64] : memref<18x18x4xf32, #tpu.memory_space<vmem>>, vector<16x16x4xf32>
    %47 = vector.shape_cast %46 : vector<16x16x4xf32> to vector<256x4xf32>
    %c2_65 = arith.constant 2 : index
    %c0_66 = arith.constant 0 : index
    %c0_67 = arith.constant 0 : index
    %48 = vector.load %arg10[%c2_65, %c0_66, %c0_67] : memref<18x18x4xf32, #tpu.memory_space<vmem>>, vector<16x16x4xf32>
    %49 = vector.shape_cast %48 : vector<16x16x4xf32> to vector<256x4xf32>
    %c2_68 = arith.constant 2 : index
    %c1_69 = arith.constant 1 : index
    %c0_70 = arith.constant 0 : index
    %50 = vector.load %arg10[%c2_68, %c1_69, %c0_70] : memref<18x18x4xf32, #tpu.memory_space<vmem>>, vector<16x16x4xf32>
    %51 = vector.shape_cast %50 : vector<16x16x4xf32> to vector<256x4xf32>
    %c2_71 = arith.constant 2 : index
    %c2_72 = arith.constant 2 : index
    %c0_73 = arith.constant 0 : index
    %52 = vector.load %arg10[%c2_71, %c2_72, %c0_73] : memref<18x18x4xf32, #tpu.memory_space<vmem>>, vector<16x16x4xf32>
    %53 = vector.shape_cast %52 : vector<16x16x4xf32> to vector<256x4xf32>
    %54 = tpu.concatenate %37, %39, %41, %43, %45, %47, %49, %51, %53 in 1 : vector<256x4xf32>, vector<256x4xf32>, vector<256x4xf32>, vector<256x4xf32>, vector<256x4xf32>, vector<256x4xf32>, vector<256x4xf32>, vector<256x4xf32>, vector<256x4xf32> -> vector<256x36xf32>
    %55 = arith.truncf %54 : vector<256x36xf32> to vector<256x36xbf16>
    %c0_74 = arith.constant 0 : index
    %c0_75 = arith.constant 0 : index
    %56 = vector.load %arg4[%c0_74, %c0_75] : memref<36x4xbf16, #tpu.memory_space<vmem>>, vector<36x4xbf16>
    %cst_76 = arith.constant dense<0.000000e+00> : vector<256x4xf32>
    %57 = tpu.matmul %55, %56, %cst_76 {dimension_numbers = #tpu.dot_dimension_numbers<[1], [0], [0], [1], [0, 0, 1, 1], [], []>} : vector<256x36xbf16>, vector<36x4xbf16>, vector<256x4xf32> -> vector<256x4xf32>
    %c0_77 = arith.constant 0 : index
    %c0_78 = arith.constant 0 : index
    %58 = vector.load %arg5[%c0_77, %c0_78] : memref<1x4xf32, #tpu.memory_space<vmem>>, vector<1x4xf32>
    %59 = vector.broadcast %58 : vector<1x4xf32> to vector<256x4xf32>
    %60 = arith.addf %57, %59 : vector<256x4xf32>
    %cst_79 = arith.constant 0.000000e+00 : f32
    %61 = vector.broadcast %cst_79 : f32 to vector<256x4xf32>
    %62 = arith.maximumf %60, %61 : vector<256x4xf32>
    %c0_80 = arith.constant 0 : index
    %c0_81 = arith.constant 0 : index
    %63 = vector.load %arg6[%c0_80, %c0_81] : memref<4x4xbf16, #tpu.memory_space<vmem>>, vector<4x4xbf16>
    %64 = arith.truncf %62 : vector<256x4xf32> to vector<256x4xbf16>
    %cst_82 = arith.constant dense<0.000000e+00> : vector<4x256xf32>
    %65 = tpu.matmul %63, %64, %cst_82 {dimension_numbers = #tpu.dot_dimension_numbers<[1], [1], [0], [0], [0, 0, 1, 0], [], []>} : vector<4x4xbf16>, vector<256x4xbf16>, vector<4x256xf32> -> vector<4x256xf32>
    %c0_83 = arith.constant 0 : index
    %c0_84 = arith.constant 0 : index
    %66 = vector.load %arg7[%c0_83, %c0_84] : memref<4x1xf32, #tpu.memory_space<vmem>>, vector<4x1xf32>
    %67 = vector.broadcast %66 : vector<4x1xf32> to vector<4x256xf32>
    %68 = arith.addf %65, %67 : vector<4x256xf32>
    %cst_85 = arith.constant 0.000000e+00 : f32
    %69 = vector.broadcast %cst_85 : f32 to vector<4x256xf32>
    %70 = arith.subf %69, %68 : vector<4x256xf32>
    %71 = math.exp %70 : vector<4x256xf32>
    %cst_86 = arith.constant 1.000000e+00 : f32
    %72 = vector.broadcast %cst_86 : f32 to vector<4x256xf32>
    %73 = arith.addf %72, %71 : vector<4x256xf32>
    %74 = tpu.reciprocal %73 {approx = true} : vector<4x256xf32> -> vector<4x256xf32>
    %c0_87 = arith.constant 0 : index
    %c0_88 = arith.constant 0 : index
    %c0_89 = arith.constant 0 : index
    %75 = vector.load %arg8[%c0_87, %c0_88, %c0_89] : memref<1x4x256xf32, #tpu.memory_space<vmem>>, vector<1x4x256xf32>
    %76 = vector.shape_cast %75 : vector<1x4x256xf32> to vector<4x256xf32>
    %77 = vector.shape_cast %74 : vector<4x256xf32> to vector<1x4x256xf32>
    tpu.vector_store %arg8[%c0_87, %c0_88, %c0_89], %77 {strides = array<i32>} : memref<1x4x256xf32, #tpu.memory_space<vmem>>, vector<1x4x256xf32>,
    return
  }
  func.func @transform_0(%arg0: i32) -> (i32, i32, i32, i32) {
    %c0_i32 = arith.constant 0 : i32
    %c0_i32_0 = arith.constant 0 : i32
    %c0_i32_1 = arith.constant 0 : i32
    %c0_i32_2 = arith.constant 0 : i32
    return %arg0, %c0_i32, %c0_i32_0, %c0_i32_1 : i32, i32, i32, i32
  }
  func.func @transform_1(%arg0: i32) -> (i32, i32) {
    %c0_i32 = arith.constant 0 : i32
    %c0_i32_0 = arith.constant 0 : i32
    %c0_i32_1 = arith.constant 0 : i32
    return %c0_i32, %c0_i32_0 : i32, i32
  }
  func.func @transform_2(%arg0: i32) -> (i32, i32) {
    %c0_i32 = arith.constant 0 : i32
    %c0_i32_0 = arith.constant 0 : i32
    %c0_i32_1 = arith.constant 0 : i32
    return %c0_i32, %c0_i32_0 : i32, i32
  }
  func.func @transform_3(%arg0: i32) -> (i32, i32) {
    %c0_i32 = arith.constant 0 : i32
    %c0_i32_0 = arith.constant 0 : i32
    %c0_i32_1 = arith.constant 0 : i32
    return %c0_i32, %c0_i32_0 : i32, i32
  }
  func.func @transform_4(%arg0: i32) -> (i32, i32) {
    %c0_i32 = arith.constant 0 : i32
    %c0_i32_0 = arith.constant 0 : i32
    %c0_i32_1 = arith.constant 0 : i32
    return %c0_i32, %c0_i32_0 : i32, i32
  }
  func.func @transform_5(%arg0: i32) -> (i32, i32) {
    %c0_i32 = arith.constant 0 : i32
    %c0_i32_0 = arith.constant 0 : i32
    %c0_i32_1 = arith.constant 0 : i32
    return %c0_i32, %c0_i32_0 : i32, i32
  }
  func.func @transform_6(%arg0: i32) -> (i32, i32) {
    %c0_i32 = arith.constant 0 : i32
    %c0_i32_0 = arith.constant 0 : i32
    %c0_i32_1 = arith.constant 0 : i32
    return %c0_i32, %c0_i32_0 : i32, i32
  }
  func.func @transform_7(%arg0: i32) -> (i32, i32, i32) {
    %c0_i32 = arith.constant 0 : i32
    %c0_i32_0 = arith.constant 0 : i32
    %c0_i32_1 = arith.constant 0 : i32
    return %arg0, %c0_i32, %c0_i32_0 : i32, i32, i32
  }
}

</mosaic_0001>

<llo_original>
// kernel: attention_forward.1
$region0: #{attention_forward.1}
  #allocation0 [shape = 'u32[]', space=smem, size = 0x4, offset = 0x4, fixed_abs, tag = 'smem constant byte address 0x4 - core index']
  #allocation1 [shape = 'u32[72,128]{1,0:T(1,128)}', space=vmem, size = 0x9000, scoped, tag = 'internal scratch']
  #allocation2 [shape = 'f32[18,18,8]{2,1,0:T(8,128)}', space=vmem, size = 0x36000, scoped, tag = 'scratch operand']
  #allocation3 [shape = 'f32[18,18,4]{2,1,0:T(8,128)}', space=vmem, size = 0x36000, scoped, tag = 'scratch operand']
  %s0 = inlined_call_operand.vmem [shape: f32[2,16,16,8], index: 0, kind: input, shape index: {}]
  %s1 = inlined_call_operand.vmem [shape: bf16[72,4], index: 1, kind: input, shape index: {}]
  %s2 = inlined_call_operand.vmem [shape: f32[1,4], index: 2, kind: input, shape index: {}]
  %s3 = inlined_call_operand.vmem [shape: bf16[36,4], index: 3, kind: input, shape index: {}]
  %s4 = inlined_call_operand.vmem [shape: f32[1,4], index: 4, kind: input, shape index: {}]
  %s5 = inlined_call_operand.vmem [shape: bf16[4,4], index: 5, kind: input, shape index: {}]
  %s6 = inlined_call_operand.vmem [shape: f32[4,1], index: 6, kind: input, shape index: {}]
  %s7 = inlined_call_operand.vmem [shape: f32[2,4,256], index: 7, kind: output, shape index: {}]
  %s8 = sld [smem:[#allocation0]]
  $region61: #{attention_forward.1} parent=0
    _
  %s10 = ssub.s32 1, %s8
  %s11 = scalar_select 0, %s10, %s8
  loop: start=0, step=1, limit=4
  $region2: #{attention_forward.1} parent=0 // loop_pre_header
    _
  $region3: #{attention_forward.1} parent=0 // loop_header
    %s13 = sphi 0, %s17
    %p14 = scmp.ge.s32.totalorder %s13, 4
    %s23 = sphi 0, %s25
    %s26 = sphi 0, %s23
    %s27 = sphi 0, %s26
    %s43 = sphi 0, %s27
    %s47 = sphi 0, %s47
    %s49 = sphi 0, %s47
    %s50 = sphi 0, %s49
    %s64 = sphi 0, %s50
    %s68 = sphi 0, %s68
    %s70 = sphi 0, %s68
    %s71 = sphi 0, %s70
    %s85 = sphi 0, %s71
    %s89 = sphi 0, %s89
    %s91 = sphi 0, %s89
    %s92 = sphi 0, %s91
    %s106 = sphi 0, %s92
    %s110 = sphi 0, %s110
    %s112 = sphi 0, %s110
    %s113 = sphi 0, %s112
    %s127 = sphi 0, %s113
    %s131 = sphi 0, %s131
    %s133 = sphi 0, %s131
    %s134 = sphi 0, %s133
    %s148 = sphi 0, %s134
    %s152 = sphi 0, %s152
    %s154 = sphi 0, %s152
    %s155 = sphi 0, %s154
    %s169 = sphi 0, %s155
    %s175 = sphi 0, %s177
    %s178 = sphi 0, %s175
    %s179 = sphi 0, %s178
    %s195 = sphi 0, %s179
  $region4: #{attention_forward.1} parent=0 // loop_header_branch
    %16 = sbr.rel (%p14) target = $region8
  $region5: #{attention_forward.1} parent=0 // loop_body
    %s18 = ssub.s32 %s13, 1
    %s19 = ssub.s32 %s13, 2
    %s20 = sadd.s32 %s13, 1
    %s21 = ssub.s32 %s13, %s20
    %p22 = scmp.eq.s32.totalorder %s21, 0
    %s24 = sadd.s32 %s23, 1
    %s25 = scalar_select %p22, %s23, %s24
    %p28 = pneg %p22
    %p29 = scmp.eq.s32.totalorder %s13, 1
    %p30 = por %p28, %p29
    %p31 = scmp.ne.s32.totalorder %s23, %s26
    %p32 = scmp.eq.s32.totalorder %s13, 0
    %p33 = por %p31, %p32
    %p34 = scmp.ne.s32.totalorder %s23, %s26
    %p35 = scmp.eq.s32.totalorder %s18, 1
    %p36 = por %p34, %p35
    %p37 = scmp.ne.s32.totalorder %s26, %s27
    %p38 = scmp.eq.s32.totalorder %s18, 0
    %p39 = por %p37, %p38
    %p40 = scmp.ne.s32.totalorder %s26, %s27
    %p41 = scmp.eq.s32.totalorder %s19, 1
    %p42 = por %p40, %p41
    %p44 = scmp.ne.s32.totalorder %s27, %s43
    %p45 = scmp.eq.s32.totalorder %s19, 0
    %p46 = por %p44, %p45
    %s48 = sadd.s32 %s47, 1
    %p51 = scmp.eq.s32.totalorder %s13, 1
    %p52 = scmp.ne.s32.totalorder %s47, %s49
    %p53 = scmp.eq.s32.totalorder %s13, 0
    %p54 = por %p52, %p53
    %p55 = scmp.ne.s32.totalorder %s47, %s49
    %p56 = scmp.eq.s32.totalorder %s18, 1
    %p57 = por %p55, %p56
    %p58 = scmp.ne.s32.totalorder %s49, %s50
    %p59 = scmp.eq.s32.totalorder %s18, 0
    %p60 = por %p58, %p59
    %p61 = scmp.ne.s32.totalorder %s49, %s50
    %p62 = scmp.eq.s32.totalorder %s19, 1
    %p63 = por %p61, %p62
    %p65 = scmp.ne.s32.totalorder %s50, %s64
    %p66 = scmp.eq.s32.totalorder %s19, 0
    %p67 = por %p65, %p66
    %s69 = sadd.s32 %s68, 1
    %p72 = scmp.eq.s32.totalorder %s13, 1
    %p73 = scmp.ne.s32.totalorder %s68, %s70
    %p74 = scmp.eq.s32.totalorder %s13, 0
    %p75 = por %p73, %p74
    %p76 = scmp.ne.s32.totalorder %s68, %s70
    %p77 = scmp.eq.s32.totalorder %s18, 1
    %p78 = por %p76, %p77
    %p79 = scmp.ne.s32.totalorder %s70, %s71
    %p80 = scmp.eq.s32.totalorder %s18, 0
    %p81 = por %p79, %p80
    %p82 = scmp.ne.s32.totalorder %s70, %s71
    %p83 = scmp.eq.s32.totalorder %s19, 1
    %p84 = por %p82, %p83
    %p86 = scmp.ne.s32.totalorder %s71, %s85
    %p87 = scmp.eq.s32.totalorder %s19, 0
    %p88 = por %p86, %p87
    %s90 = sadd.s32 %s89, 1
    %p93 = scmp.eq.s32.totalorder %s13, 1
    %p94 = scmp.ne.s32.totalorder %s89, %s91
    %p95 = scmp.eq.s32.totalorder %s13, 0
    %p96 = por %p94, %p95
    %p97 = scmp.ne.s32.totalorder %s89, %s91
    %p98 = scmp.eq.s32.totalorder %s18, 1
    %p99 = por %p97, %p98
    %p100 = scmp.ne.s32.totalorder %s91, %s92
    %p101 = scmp.eq.s32.totalorder %s18, 0
    %p102 = por %p100, %p101
    %p103 = scmp.ne.s32.totalorder %s91, %s92
    %p104 = scmp.eq.s32.totalorder %s19, 1
    %p105 = por %p103, %p104
    %p107 = scmp.ne.s32.totalorder %s92, %s106
    %p108 = scmp.eq.s32.totalorder %s19, 0
    %p109 = por %p107, %p108
    %s111 = sadd.s32 %s110, 1
    %p114 = scmp.eq.s32.totalorder %s13, 1
    %p115 = scmp.ne.s32.totalorder %s110, %s112
    %p116 = scmp.eq.s32.totalorder %s13, 0
    %p117 = por %p115, %p116
    %p118 = scmp.ne.s32.totalorder %s110, %s112
    %p119 = scmp.eq.s32.totalorder %s18, 1
    %p120 = por %p118, %p119
    %p121 = scmp.ne.s32.totalorder %s112, %s113
    %p122 = scmp.eq.s32.totalorder %s18, 0
    %p123 = por %p121, %p122
    %p124 = scmp.ne.s32.totalorder %s112, %s113
    %p125 = scmp.eq.s32.totalorder %s19, 1
    %p126 = por %p124, %p125
    %p128 = scmp.ne.s32.totalorder %s113, %s127
    %p129 = scmp.eq.s32.totalorder %s19, 0
    %p130 = por %p128, %p129
    %s132 = sadd.s32 %s131, 1
    %p135 = scmp.eq.s32.totalorder %s13, 1
    %p136 = scmp.ne.s32.totalorder %s131, %s133
    %p137 = scmp.eq.s32.totalorder %s13, 0
    %p138 = por %p136, %p137
    %p139 = scmp.ne.s32.totalorder %s131, %s133
    %p140 = scmp.eq.s32.totalorder %s18, 1
    %p141 = por %p139, %p140
    %p142 = scmp.ne.s32.totalorder %s133, %s134
    %p143 = scmp.eq.s32.totalorder %s18, 0
    %p144 = por %p142, %p143
    %p145 = scmp.ne.s32.totalorder %s133, %s134
    %p146 = scmp.eq.s32.totalorder %s19, 1
    %p147 = por %p145, %p146
    %p149 = scmp.ne.s32.totalorder %s134, %s148
    %p150 = scmp.eq.s32.totalorder %s19, 0
    %p151 = por %p149, %p150
    %s153 = sadd.s32 %s152, 1
    %p156 = scmp.eq.s32.totalorder %s13, 1
    %p157 = scmp.ne.s32.totalorder %s152, %s154
    %p158 = scmp.eq.s32.totalorder %s13, 0
    %p159 = por %p157, %p158
    %p160 = scmp.ne.s32.totalorder %s152, %s154
    %p161 = scmp.eq.s32.totalorder %s18, 1
    %p162 = por %p160, %p161
    %p163 = scmp.ne.s32.totalorder %s154, %s155
    %p164 = scmp.eq.s32.totalorder %s18, 0
    %p165 = por %p163, %p164
    %p166 = scmp.ne.s32.totalorder %s154, %s155
    %p167 = scmp.eq.s32.totalorder %s19, 1
    %p168 = por %p166, %p167
    %p170 = scmp.ne.s32.totalorder %s155, %s169
    %p171 = scmp.eq.s32.totalorder %s19, 0
    %p172 = por %p170, %p171
    %s173 = ssub.s32 %s13, %s20
    %p174 = scmp.eq.s32.totalorder %s173, 0
    %s176 = sadd.s32 %s175, 1
    %s177 = scalar_select %p174, %s175, %s176
    %p180 = pneg %p174
    %p181 = scmp.eq.s32.totalorder %s13, 1
    %p182 = por %p180, %p181
    %p183 = scmp.ne.s32.totalorder %s175, %s178
    %p184 = scmp.eq.s32.totalorder %s13, 0
    %p185 = por %p183, %p184
    %p186 = scmp.ne.s32.totalorder %s175, %s178
    %p187 = scmp.eq.s32.totalorder %s18, 1
    %p188 = por %p186, %p187
    %p189 = scmp.ne.s32.totalorder %s178, %s179
    %p190 = scmp.eq.s32.totalorder %s18, 0
    %p191 = por %p189, %p190
    %p192 = scmp.ne.s32.totalorder %s178, %s179
    %p193 = scmp.eq.s32.totalorder %s19, 1
    %p194 = por %p192, %p193
    %p196 = scmp.ne.s32.totalorder %s179, %s195
    %p197 = scmp.eq.s32.totalorder %s19, 0
    %p198 = por %p196, %p197
    %p199 = scmp.le.s32.totalorder 1, %s13
    %p200 = scmp.lt.s32.totalorder %s13, 3
    %p201 = pnand %p199, %p200
    %p202 = pneg %p201
    // Predicated region
    $region9: #{attention_forward.1} parent=5 // pred_check
      _
    $region10: #{attention_forward.1} parent=5 // pred_check_branch
      %204 = sbr.rel (%p201) target = $region12
    $region11: #{attention_forward.1} parent=5 // pred_region
      %s205 = ssub.s32 %s13, 1
      // Predicated region
      $region13: #{attention_forward.1} parent=11 // pred_check
        %p206 = pneg %p60
      $region14: #{attention_forward.1} parent=11 // pred_check_branch
        %208 = sbr.rel (%p206) target = $region16
      $region15: #{attention_forward.1} parent=11 // pred_region
        _
      $region16: #{attention_forward.1} parent=11 // pred_fallthru
        _
      // Predicated region
      $region17: #{attention_forward.1} parent=11 // pred_check
        %p209 = pneg %p81
      $region18: #{attention_forward.1} parent=11 // pred_check_branch
        %211 = sbr.rel (%p209) target = $region20
      $region19: #{attention_forward.1} parent=11 // pred_region
        _
      $region20: #{attention_forward.1} parent=11 // pred_fallthru
        _
      // Predicated region
      $region21: #{attention_forward.1} parent=11 // pred_check
        %p212 = pneg %p102
      $region22: #{attention_forward.1} parent=11 // pred_check_branch
        %214 = sbr.rel (%p212) target = $region24
      $region23: #{attention_forward.1} parent=11 // pred_region
        _
      $region24: #{attention_forward.1} parent=11 // pred_fallthru
        _
      // Predicated region
      $region25: #{attention_forward.1} parent=11 // pred_check
        %p215 = pneg %p123
      $region26: #{attention_forward.1} parent=11 // pred_check_branch
        %217 = sbr.rel (%p215) target = $region28
      $region27: #{attention_forward.1} parent=11 // pred_region
        _
      $region28: #{attention_forward.1} parent=11 // pred_fallthru
        _
      // Predicated region
      $region29: #{attention_forward.1} parent=11 // pred_check
        %p218 = pneg %p144
      $region30: #{attention_forward.1} parent=11 // pred_check_branch
        %220 = sbr.rel (%p218) target = $region32
      $region31: #{attention_forward.1} parent=11 // pred_region
        _
      $region32: #{attention_forward.1} parent=11 // pred_fallthru
        _
      // Predicated region
      $region33: #{attention_forward.1} parent=11 // pred_check
        %p221 = pneg %p165
      $region34: #{attention_forward.1} parent=11 // pred_check_branch
        %223 = sbr.rel (%p221) target = $region36
      $region35: #{attention_forward.1} parent=11 // pred_region
        _
      $region36: #{attention_forward.1} parent=11 // pred_fallthru
        _
    $region12: #{attention_forward.1} parent=5 // pred_fallthru
      _
    %p224 = scmp.lt.s32.totalorder %s13, 2
    // Predicated region
    $region37: #{attention_forward.1} parent=5 // pred_check
      %p225 = pneg %p224
    $region38: #{attention_forward.1} parent=5 // pred_check_branch
      %227 = sbr.rel (%p225) target = $region40
    $region39: #{attention_forward.1} parent=5 // pred_region
      // Predicated region
      $region41: #{attention_forward.1} parent=39 // pred_check
        %p228 = pneg %p33
      $region42: #{attention_forward.1} parent=39 // pred_check_branch
        %230 = sbr.rel (%p228) target = $region44
      $region43: #{attention_forward.1} parent=39 // pred_region
        %p231 = scmp.lt.s32.totalorder %s13, 1
        %s232 = scalar_select %p231, %s13, 1
        %s233 = smul.addr %s232, 32
        %s234 = smul.addr %s233, 8
        %s235 = scalar_lea.vmem %s0, %s234
      $region44: #{attention_forward.1} parent=39 // pred_fallthru
        _
    $region40: #{attention_forward.1} parent=5 // pred_fallthru
      _
    %p236 = scmp.le.s32.totalorder 1, %s13
    %p237 = scmp.lt.s32.totalorder %s13, 3
    %p238 = pnand %p236, %p237
    %p239 = pneg %p238
    // Predicated region
    $region45: #{attention_forward.1} parent=5 // pred_check
      _
    $region46: #{attention_forward.1} parent=5 // pred_check_branch
      %241 = sbr.rel (%p238) target = $region48
    $region47: #{attention_forward.1} parent=5 // pred_region
      %s242 = ssub.s32 %s13, 1
      %p243 = scmp.lt.s32.totalorder %s18, 1
      %s244 = scalar_select %p243, %s18, 1
      %s245 = smul.addr %s244, 32
      %s246 = smul.addr %s245, 8
      %s247 = scalar_lea.vmem %s0, %s246
      %p248 = pneg %p39
      %p249 = pneg %p36
      %p250 = pneg %p60
      %p251 = pneg %p57
      %p252 = pneg %p81
      %p253 = pneg %p78
      %p254 = pneg %p102
      %p255 = pneg %p99
      %p256 = pneg %p123
      %p257 = pneg %p120
      %p258 = pneg %p144
      %p259 = pneg %p141
      %p260 = pneg %p165
      %p261 = pneg %p162
      %p262 = pneg %p191
      %p263 = pneg %p188
      %p264 = scmp.lt.s32.totalorder %s18, 1
      %s265 = scalar_select %p264, %s18, 1
      %s266 = smul.addr %s265, 2
      %s267 = smul.addr %s266, 4
      %s268 = scalar_lea.vmem %s7, %s267
      %p269 = scmp.lt.s32.totalorder %s18, 1
      %s270 = scalar_select %p269, %s18, 1
      %s271 = smul.addr %s270, 32
      %s272 = smul.addr %s271, 8
      %s273 = scalar_lea.vmem %s0, %s272
      %p274 = scmp.lt.s32.totalorder %s18, 1
      %s275 = scalar_select %p274, %s18, 1
      %s276 = smul.addr %s275, 2
      %s277 = smul.addr %s276, 4
      %s278 = scalar_lea.vmem %s7, %s277
      %vm280 = vcmask 64512
      %281 = vst.msk [vmem:[#allocation2] sm:$0xff] %vm280, 0.0
      %282 = vst.msk [vmem:[#allocation2 + $0x8] sm:$0xff] %vm280, 0.0
      %vm283 = vcmask 58368
      %284 = vst.msk [vmem:[#allocation2 + $0x10] sm:$0x3] %vm283, 0.0
      %285 = vst.msk [vmem:[#allocation2 + $0x18] sm:$0xff] %vm280, 0.0
      %286 = vst.msk [vmem:[#allocation2 + $0x20] sm:$0xff] %vm280, 0.0
      %287 = vst.msk [vmem:[#allocation2 + $0x28] sm:$0x3] %vm283, 0.0
      %288 = vst.msk [vmem:[#allocation2 + $0x30] sm:$0xff] %vm280, 0.0
      %289 = vst.msk [vmem:[#allocation2 + $0x38] sm:$0xff] %vm280, 0.0
      %290 = vst.msk [vmem:[#allocation2 + $0x40] sm:$0x3] %vm283, 0.0
      %291 = vst.msk [vmem:[#allocation2 + $0x48] sm:$0xff] %vm280, 0.0
      %292 = vst.msk [vmem:[#allocation2 + $0x50] sm:$0xff] %vm280, 0.0
      %293 = vst.msk [vmem:[#allocation2 + $0x58] sm:$0x3] %vm283, 0.0
      %294 = vst.msk [vmem:[#allocation2 + $0x60] sm:$0xff] %vm280, 0.0
      %295 = vst.msk [vmem:[#allocation2 + $0x68] sm:$0xff] %vm280, 0.0
      %296 = vst.msk [vmem:[#allocation2 + $0x70] sm:$0x3] %vm283, 0.0
      %297 = vst.msk [vmem:[#allocation2 + $0x78] sm:$0xff] %vm280, 0.0
      %298 = vst.msk [vmem:[#allocation2 + $0x80] sm:$0xff] %vm280, 0.0
      %299 = vst.msk [vmem:[#allocation2 + $0x88] sm:$0x3] %vm283, 0.0
      %300 = vst.msk [vmem:[#allocation2 + $0x90] sm:$0xff] %vm280, 0.0
      %301 = vst.msk [vmem:[#allocation2 + $0x98] sm:$0xff] %vm280, 0.0
      %302 = vst.msk [vmem:[#allocation2 + $0xa0] sm:$0x3] %vm283, 0.0
      %303 = vst.msk [vmem:[#allocation2 + $0xa8] sm:$0xff] %vm280, 0.0
      %304 = vst.msk [vmem:[#allocation2 + $0xb0] sm:$0xff] %vm280, 0.0
      %305 = vst.msk [vmem:[#allocation2 + $0xb8] sm:$0x3] %vm283, 0.0
      %306 = vst.msk [vmem:[#allocation2 + $0xc0] sm:$0xff] %vm280, 0.0
      %307 = vst.msk [vmem:[#allocation2 + $0xc8] sm:$0xff] %vm280, 0.0
      %308 = vst.msk [vmem:[#allocation2 + $0xd0] sm:$0x3] %vm283, 0.0
      %309 = vst.msk [vmem:[#allocation2 + $0xd8] sm:$0xff] %vm280, 0.0
      %310 = vst.msk [vmem:[#allocation2 + $0xe0] sm:$0xff] %vm280, 0.0
      %311 = vst.msk [vmem:[#allocation2 + $0xe8] sm:$0x3] %vm283, 0.0
      %312 = vst.msk [vmem:[#allocation2 + $0xf0] sm:$0xff] %vm280, 0.0
      %313 = vst.msk [vmem:[#allocation2 + $0xf8] sm:$0xff] %vm280, 0.0
      %314 = vst.msk [vmem:[#allocation2 + $0x100] sm:$0x3] %vm283, 0.0
      %315 = vst.msk [vmem:[#allocation2 + $0x108] sm:$0xff] %vm280, 0.0
      %316 = vst.msk [vmem:[#allocation2 + $0x110] sm:$0xff] %vm280, 0.0
      %317 = vst.msk [vmem:[#allocation2 + $0x118] sm:$0x3] %vm283, 0.0
      %318 = vst.msk [vmem:[#allocation2 + $0x120] sm:$0xff] %vm280, 0.0
      %319 = vst.msk [vmem:[#allocation2 + $0x128] sm:$0xff] %vm280, 0.0
      %320 = vst.msk [vmem:[#allocation2 + $0x130] sm:$0x3] %vm283, 0.0
      %321 = vst.msk [vmem:[#allocation2 + $0x138] sm:$0xff] %vm280, 0.0
      %322 = vst.msk [vmem:[#allocation2 + $0x140] sm:$0xff] %vm280, 0.0
      %323 = vst.msk [vmem:[#allocation2 + $0x148] sm:$0x3] %vm283, 0.0
      %324 = vst.msk [vmem:[#allocation2 + $0x150] sm:$0xff] %vm280, 0.0
      %325 = vst.msk [vmem:[#allocation2 + $0x158] sm:$0xff] %vm280, 0.0
      %326 = vst.msk [vmem:[#allocation2 + $0x160] sm:$0x3] %vm283, 0.0
      %327 = vst.msk [vmem:[#allocation2 + $0x168] sm:$0xff] %vm280, 0.0
      %328 = vst.msk [vmem:[#allocation2 + $0x170] sm:$0xff] %vm280, 0.0
      %329 = vst.msk [vmem:[#allocation2 + $0x178] sm:$0x3] %vm283, 0.0
      %330 = vst.msk [vmem:[#allocation2 + $0x180] sm:$0xff] %vm280, 0.0
      %331 = vst.msk [vmem:[#allocation2 + $0x188] sm:$0xff] %vm280, 0.0
      %332 = vst.msk [vmem:[#allocation2 + $0x190] sm:$0x3] %vm283, 0.0
      %333 = vst.msk [vmem:[#allocation2 + $0x198] sm:$0xff] %vm280, 0.0
      %334 = vst.msk [vmem:[#allocation2 + $0x1a0] sm:$0xff] %vm280, 0.0
      %335 = vst.msk [vmem:[#allocation2 + $0x1a8] sm:$0x3] %vm283, 0.0
      %v336 = vld [vmem:[%s273] sm:$0xff]
      %v337 = vld [vmem:[%s273 + $0x8] sm:$0xff]
      %v338 = vld [vmem:[%s273 + $0x10] sm:$0xff]
      %v339 = vld [vmem:[%s273 + $0x18] sm:$0xff]
      %v340 = vld [vmem:[%s273 + $0x20] sm:$0xff]
      %v341 = vld [vmem:[%s273 + $0x28] sm:$0xff]
      %v342 = vld [vmem:[%s273 + $0x30] sm:$0xff]
      %v343 = vld [vmem:[%s273 + $0x38] sm:$0xff]
      %v344 = vld [vmem:[%s273 + $0x40] sm:$0xff]
      %v345 = vld [vmem:[%s273 + $0x48] sm:$0xff]
      %v346 = vld [vmem:[%s273 + $0x50] sm:$0xff]
      %v347 = vld [vmem:[%s273 + $0x58] sm:$0xff]
      %v348 = vld [vmem:[%s273 + $0x60] sm:$0xff]
      %v349 = vld [vmem:[%s273 + $0x68] sm:$0xff]
      %v350 = vld [vmem:[%s273 + $0x70] sm:$0xff]
      %v351 = vld [vmem:[%s273 + $0x78] sm:$0xff]
      %v352 = vld [vmem:[%s273 + $0x80] sm:$0xff]
      %v353 = vld [vmem:[%s273 + $0x88] sm:$0xff]
      %v354 = vld [vmem:[%s273 + $0x90] sm:$0xff]
      %v355 = vld [vmem:[%s273 + $0x98] sm:$0xff]
      %v356 = vld [vmem:[%s273 + $0xa0] sm:$0xff]
      %v357 = vld [vmem:[%s273 + $0xa8] sm:$0xff]
      %v358 = vld [vmem:[%s273 + $0xb0] sm:$0xff]
      %v359 = vld [vmem:[%s273 + $0xb8] sm:$0xff]
      %v360 = vld [vmem:[%s273 + $0xc0] sm:$0xff]
      %v361 = vld [vmem:[%s273 + $0xc8] sm:$0xff]
      %v362 = vld [vmem:[%s273 + $0xd0] sm:$0xff]
      %v363 = vld [vmem:[%s273 + $0xd8] sm:$0xff]
      %v364 = vld [vmem:[%s273 + $0xe0] sm:$0xff]
      %v365 = vld [vmem:[%s273 + $0xe8] sm:$0xff]
      %v366 = vld [vmem:[%s273 + $0xf0] sm:$0xff]
      %v367 = vld [vmem:[%s273 + $0xf8] sm:$0xff]
      %s368 = scalar_lea.vmem [#allocation2], 24
      %369 = vst.msk [vmem:[%s368 + $0x1] sm:$0xff] %vm280, %v336
      %370 = vst.msk [vmem:[%s368 + $0x9] sm:$0xff] %vm280, %v337
      %371 = vst.msk [vmem:[%s368 + $0x19] sm:$0xff] %vm280, %v338
      %372 = vst.msk [vmem:[%s368 + $0x21] sm:$0xff] %vm280, %v339
      %373 = vst.msk [vmem:[%s368 + $0x31] sm:$0xff] %vm280, %v340
      %374 = vst.msk [vmem:[%s368 + $0x39] sm:$0xff] %vm280, %v341
      %375 = vst.msk [vmem:[%s368 + $0x49] sm:$0xff] %vm280, %v342
      %376 = vst.msk [vmem:[%s368 + $0x51] sm:$0xff] %vm280, %v343
      %377 = vst.msk [vmem:[%s368 + $0x61] sm:$0xff] %vm280, %v344
      %378 = vst.msk [vmem:[%s368 + $0x69] sm:$0xff] %vm280, %v345
      %379 = vst.msk [vmem:[%s368 + $0x79] sm:$0xff] %vm280, %v346
      %380 = vst.msk [vmem:[%s368 + $0x81] sm:$0xff] %vm280, %v347
      %381 = vst.msk [vmem:[%s368 + $0x91] sm:$0xff] %vm280, %v348
      %382 = vst.msk [vmem:[%s368 + $0x99] sm:$0xff] %vm280, %v349
      %383 = vst.msk [vmem:[%s368 + $0xa9] sm:$0xff] %vm280, %v350
      %384 = vst.msk [vmem:[%s368 + $0xb1] sm:$0xff] %vm280, %v351
      %385 = vst.msk [vmem:[%s368 + $0xc1] sm:$0xff] %vm280, %v352
      %386 = vst.msk [vmem:[%s368 + $0xc9] sm:$0xff] %vm280, %v353
      %387 = vst.msk [vmem:[%s368 + $0xd9] sm:$0xff] %vm280, %v354
      %388 = vst.msk [vmem:[%s368 + $0xe1] sm:$0xff] %vm280, %v355
      %389 = vst.msk [vmem:[%s368 + $0xf1] sm:$0xff] %vm280, %v356
      %390 = vst.msk [vmem:[%s368 + $0xf9] sm:$0xff] %vm280, %v357
      %391 = vst.msk [vmem:[%s368 + $0x109] sm:$0xff] %vm280, %v358
      %392 = vst.msk [vmem:[%s368 + $0x111] sm:$0xff] %vm280, %v359
      %393 = vst.msk [vmem:[%s368 + $0x121] sm:$0xff] %vm280, %v360
      %394 = vst.msk [vmem:[%s368 + $0x129] sm:$0xff] %vm280, %v361
      %395 = vst.msk [vmem:[%s368 + $0x139] sm:$0xff] %vm280, %v362
      %396 = vst.msk [vmem:[%s368 + $0x141] sm:$0xff] %vm280, %v363
      %397 = vst.msk [vmem:[%s368 + $0x151] sm:$0xff] %vm280, %v364
      %398 = vst.msk [vmem:[%s368 + $0x159] sm:$0xff] %vm280, %v365
      %399 = vst.msk [vmem:[%s368 + $0x169] sm:$0xff] %vm280, %v366
      %400 = vst.msk [vmem:[%s368 + $0x171] sm:$0xff] %vm280, %v367
      %v401 = vld [vmem:[#allocation2] sm:$0xff]
      %v402 = vld [vmem:[#allocation2 + $0x8] sm:$0xff]
      %v403 = vld [vmem:[#allocation2 + $0x18] sm:$0xff]
      %v404 = vld [vmem:[#allocation2 + $0x20] sm:$0xff]
      %v405 = vld [vmem:[#allocation2 + $0x30] sm:$0xff]
      %v406 = vld [vmem:[#allocation2 + $0x38] sm:$0xff]
      %v407 = vld [vmem:[#allocation2 + $0x48] sm:$0xff]
      %v408 = vld [vmem:[#allocation2 + $0x50] sm:$0xff]
      %v409 = vld [vmem:[#allocation2 + $0x60] sm:$0xff]
      %v410 = vld [vmem:[#allocation2 + $0x68] sm:$0xff]
      %v411 = vld [vmem:[#allocation2 + $0x78] sm:$0xff]
      %v412 = vld [vmem:[#allocation2 + $0x80] sm:$0xff]
      %v413 = vld [vmem:[#allocation2 + $0x90] sm:$0xff]
      %v414 = vld [vmem:[#allocation2 + $0x98] sm:$0xff]
      %v415 = vld [vmem:[#allocation2 + $0xa8] sm:$0xff]
      %v416 = vld [vmem:[#allocation2 + $0xb0] sm:$0xff]
      %v417 = vld [vmem:[#allocation2 + $0xc0] sm:$0xff]
      %v418 = vld [vmem:[#allocation2 + $0xc8] sm:$0xff]
      %v419 = vld [vmem:[#allocation2 + $0xd8] sm:$0xff]
      %v420 = vld [vmem:[#allocation2 + $0xe0] sm:$0xff]
      %v421 = vld [vmem:[#allocation2 + $0xf0] sm:$0xff]
      %v422 = vld [vmem:[#allocation2 + $0xf8] sm:$0xff]
      %v423 = vld [vmem:[#allocation2 + $0x108] sm:$0xff]
      %v424 = vld [vmem:[#allocation2 + $0x110] sm:$0xff]
      %v425 = vld [vmem:[#allocation2 + $0x120] sm:$0xff]
      %v426 = vld [vmem:[#allocation2 + $0x128] sm:$0xff]
      %v427 = vld [vmem:[#allocation2 + $0x138] sm:$0xff]
      %v428 = vld [vmem:[#allocation2 + $0x140] sm:$0xff]
      %v429 = vld [vmem:[#allocation2 + $0x150] sm:$0xff]
      %v430 = vld [vmem:[#allocation2 + $0x158] sm:$0xff]
      %v431 = vld [vmem:[#allocation2 + $0x168] sm:$0xff]
      %v432 = vld [vmem:[#allocation2 + $0x170] sm:$0xff]
      %v433 = vld [vmem:[#allocation2 + $0x1] sm:$0xff]
      %v434 = vld [vmem:[#allocation2 + $0x9] sm:$0xff]
      %v435 = vld [vmem:[#allocation2 + $0x19] sm:$0xff]
      %v436 = vld [vmem:[#allocation2 + $0x21] sm:$0xff]
      %v437 = vld [vmem:[#allocation2 + $0x31] sm:$0xff]
      %v438 = vld [vmem:[#allocation2 + $0x39] sm:$0xff]
      %v439 = vld [vmem:[#allocation2 + $0x49] sm:$0xff]
      %v440 = vld [vmem:[#allocation2 + $0x51] sm:$0xff]
      %v441 = vld [vmem:[#allocation2 + $0x61] sm:$0xff]
      %v442 = vld [vmem:[#allocation2 + $0x69] sm:$0xff]
      %v443 = vld [vmem:[#allocation2 + $0x79] sm:$0xff]
      %v444 = vld [vmem:[#allocation2 + $0x81] sm:$0xff]
      %v445 = vld [vmem:[#allocation2 + $0x91] sm:$0xff]
      %v446 = vld [vmem:[#allocation2 + $0x99] sm:$0xff]
      %v447 = vld [vmem:[#allocation2 + $0xa9] sm:$0xff]
      %v448 = vld [vmem:[#allocation2 + $0xb1] sm:$0xff]
      %v449 = vld [vmem:[#allocation2 + $0xc1] sm:$0xff]
      %v450 = vld [vmem:[#allocation2 + $0xc9] sm:$0xff]
      %v451 = vld [vmem:[#allocation2 + $0xd9] sm:$0xff]
      %v452 = vld [vmem:[#allocation2 + $0xe1] sm:$0xff]
      %v453 = vld [vmem:[#allocation2 + $0xf1] sm:$0xff]
      %v454 = vld [vmem:[#allocation2 + $0xf9] sm:$0xff]
      %v455 = vld [vmem:[#allocation2 + $0x109] sm:$0xff]
      %v456 = vld [vmem:[#allocation2 + $0x111] sm:$0xff]
      %v457 = vld [vmem:[#allocation2 + $0x121] sm:$0xff]
      %v458 = vld [vmem:[#allocation2 + $0x129] sm:$0xff]
      %v459 = vld [vmem:[#allocation2 + $0x139] sm:$0xff]
      %v460 = vld [vmem:[#allocation2 + $0x141] sm:$0xff]
      %v461 = vld [vmem:[#allocation2 + $0x151] sm:$0xff]
      %v462 = vld [vmem:[#allocation2 + $0x159] sm:$0xff]
      %v463 = vld [vmem:[#allocation2 + $0x169] sm:$0xff]
      %v464 = vld [vmem:[#allocation2 + $0x171] sm:$0xff]
      %v465 = vld [vmem:[#allocation2 + $0x2] sm:$0xff]
      %v466 = vld [vmem:[#allocation2 + $0xa] sm:$0xff]
      %v467 = vld [vmem:[#allocation2 + $0x1a] sm:$0xff]
      %v468 = vld [vmem:[#allocation2 + $0x22] sm:$0xff]
      %v469 = vld [vmem:[#allocation2 + $0x32] sm:$0xff]
      %v470 = vld [vmem:[#allocation2 + $0x3a] sm:$0xff]
      %v471 = vld [vmem:[#allocation2 + $0x4a] sm:$0xff]
      %v472 = vld [vmem:[#allocation2 + $0x52] sm:$0xff]
      %v473 = vld [vmem:[#allocation2 + $0x62] sm:$0xff]
      %v474 = vld [vmem:[#allocation2 + $0x6a] sm:$0xff]
      %v475 = vld [vmem:[#allocation2 + $0x7a] sm:$0xff]
      %v476 = vld [vmem:[#allocation2 + $0x82] sm:$0xff]
      %v477 = vld [vmem:[#allocation2 + $0x92] sm:$0xff]
      %v478 = vld [vmem:[#allocation2 + $0x9a] sm:$0xff]
      %v479 = vld [vmem:[#allocation2 + $0xaa] sm:$0xff]
      %v480 = vld [vmem:[#allocation2 + $0xb2] sm:$0xff]
      %v481 = vld [vmem:[#allocation2 + $0xc2] sm:$0xff]
      %v482 = vld [vmem:[#allocation2 + $0xca] sm:$0xff]
      %v483 = vld [vmem:[#allocation2 + $0xda] sm:$0xff]
      %v484 = vld [vmem:[#allocation2 + $0xe2] sm:$0xff]
      %v485 = vld [vmem:[#allocation2 + $0xf2] sm:$0xff]
      %v486 = vld [vmem:[#allocation2 + $0xfa] sm:$0xff]
      %v487 = vld [vmem:[#allocation2 + $0x10a] sm:$0xff]
      %v488 = vld [vmem:[#allocation2 + $0x112] sm:$0xff]
      %v489 = vld [vmem:[#allocation2 + $0x122] sm:$0xff]
      %v490 = vld [vmem:[#allocation2 + $0x12a] sm:$0xff]
      %v491 = vld [vmem:[#allocation2 + $0x13a] sm:$0xff]
      %v492 = vld [vmem:[#allocation2 + $0x142] sm:$0xff]
      %v493 = vld [vmem:[#allocation2 + $0x152] sm:$0xff]
      %v494 = vld [vmem:[#allocation2 + $0x15a] sm:$0xff]
      %v495 = vld [vmem:[#allocation2 + $0x16a] sm:$0xff]
      %v496 = vld [vmem:[#allocation2 + $0x172] sm:$0xff]
      %v497 = vld [vmem:[%s368] sm:$0xff]
      %v498 = vld [vmem:[%s368 + $0x8] sm:$0xff]
      %v499 = vld [vmem:[%s368 + $0x18] sm:$0xff]
      %v500 = vld [vmem:[%s368 + $0x20] sm:$0xff]
      %v501 = vld [vmem:[%s368 + $0x30] sm:$0xff]
      %v502 = vld [vmem:[%s368 + $0x38] sm:$0xff]
      %v503 = vld [vmem:[%s368 + $0x48] sm:$0xff]
      %v504 = vld [vmem:[%s368 + $0x50] sm:$0xff]
      %v505 = vld [vmem:[%s368 + $0x60] sm:$0xff]
      %v506 = vld [vmem:[%s368 + $0x68] sm:$0xff]
      %v507 = vld [vmem:[%s368 + $0x78] sm:$0xff]
      %v508 = vld [vmem:[%s368 + $0x80] sm:$0xff]
      %v509 = vld [vmem:[%s368 + $0x90] sm:$0xff]
      %v510 = vld [vmem:[%s368 + $0x98] sm:$0xff]
      %v511 = vld [vmem:[%s368 + $0xa8] sm:$0xff]
      %v512 = vld [vmem:[%s368 + $0xb0] sm:$0xff]
      %v513 = vld [vmem:[%s368 + $0xc0] sm:$0xff]
      %v514 = vld [vmem:[%s368 + $0xc8] sm:$0xff]
      %v515 = vld [vmem:[%s368 + $0xd8] sm:$0xff]
      %v516 = vld [vmem:[%s368 + $0xe0] sm:$0xff]
      %v517 = vld [vmem:[%s368 + $0xf0] sm:$0xff]
      %v518 = vld [vmem:[%s368 + $0xf8] sm:$0xff]
      %v519 = vld [vmem:[%s368 + $0x108] sm:$0xff]
      %v520 = vld [vmem:[%s368 + $0x110] sm:$0xff]
      %v521 = vld [vmem:[%s368 + $0x120] sm:$0xff]
      %v522 = vld [vmem:[%s368 + $0x128] sm:$0xff]
      %v523 = vld [vmem:[%s368 + $0x138] sm:$0xff]
      %v524 = vld [vmem:[%s368 + $0x140] sm:$0xff]
      %v525 = vld [vmem:[%s368 + $0x150] sm:$0xff]
      %v526 = vld [vmem:[%s368 + $0x158] sm:$0xff]
      %v527 = vld [vmem:[%s368 + $0x168] sm:$0xff]
      %v528 = vld [vmem:[%s368 + $0x170] sm:$0xff]
      %v529 = vld [vmem:[%s368 + $0x1] sm:$0xff]
      %v530 = vld [vmem:[%s368 + $0x9] sm:$0xff]
      %v531 = vld [vmem:[%s368 + $0x19] sm:$0xff]
      %v532 = vld [vmem:[%s368 + $0x21] sm:$0xff]
      %v533 = vld [vmem:[%s368 + $0x31] sm:$0xff]
      %v534 = vld [vmem:[%s368 + $0x39] sm:$0xff]
      %v535 = vld [vmem:[%s368 + $0x49] sm:$0xff]
      %v536 = vld [vmem:[%s368 + $0x51] sm:$0xff]
      %v537 = vld [vmem:[%s368 + $0x61] sm:$0xff]
      %v538 = vld [vmem:[%s368 + $0x69] sm:$0xff]
      %v539 = vld [vmem:[%s368 + $0x79] sm:$0xff]
      %v540 = vld [vmem:[%s368 + $0x81] sm:$0xff]
      %v541 = vld [vmem:[%s368 + $0x91] sm:$0xff]
      %v542 = vld [vmem:[%s368 + $0x99] sm:$0xff]
      %v543 = vld [vmem:[%s368 + $0xa9] sm:$0xff]
      %v544 = vld [vmem:[%s368 + $0xb1] sm:$0xff]
      %v545 = vld [vmem:[%s368 + $0xc1] sm:$0xff]
      %v546 = vld [vmem:[%s368 + $0xc9] sm:$0xff]
      %v547 = vld [vmem:[%s368 + $0xd9] sm:$0xff]
      %v548 = vld [vmem:[%s368 + $0xe1] sm:$0xff]
      %v549 = vld [vmem:[%s368 + $0xf1] sm:$0xff]
      %v550 = vld [vmem:[%s368 + $0xf9] sm:$0xff]
      %v551 = vld [vmem:[%s368 + $0x109] sm:$0xff]
      %v552 = vld [vmem:[%s368 + $0x111] sm:$0xff]
      %v553 = vld [vmem:[%s368 + $0x121] sm:$0xff]
      %v554 = vld [vmem:[%s368 + $0x129] sm:$0xff]
      %v555 = vld [vmem:[%s368 + $0x139] sm:$0xff]
      %v556 = vld [vmem:[%s368 + $0x141] sm:$0xff]
      %v557 = vld [vmem:[%s368 + $0x151] sm:$0xff]
      %v558 = vld [vmem:[%s368 + $0x159] sm:$0xff]
      %v559 = vld [vmem:[%s368 + $0x169] sm:$0xff]
      %v560 = vld [vmem:[%s368 + $0x171] sm:$0xff]
      %v561 = vld [vmem:[%s368 + $0x2] sm:$0xff]
      %v562 = vld [vmem:[%s368 + $0xa] sm:$0xff]
      %v563 = vld [vmem:[%s368 + $0x1a] sm:$0xff]
      %v564 = vld [vmem:[%s368 + $0x22] sm:$0xff]
      %v565 = vld [vmem:[%s368 + $0x32] sm:$0xff]
      %v566 = vld [vmem:[%s368 + $0x3a] sm:$0xff]
      %v567 = vld [vmem:[%s368 + $0x4a] sm:$0xff]
      %v568 = vld [vmem:[%s368 + $0x52] sm:$0xff]
      %v569 = vld [vmem:[%s368 + $0x62] sm:$0xff]
      %v570 = vld [vmem:[%s368 + $0x6a] sm:$0xff]
      %v571 = vld [vmem:[%s368 + $0x7a] sm:$0xff]
      %v572 = vld [vmem:[%s368 + $0x82] sm:$0xff]
      %v573 = vld [vmem:[%s368 + $0x92] sm:$0xff]
      %v574 = vld [vmem:[%s368 + $0x9a] sm:$0xff]
      %v575 = vld [vmem:[%s368 + $0xaa] sm:$0xff]
      %v576 = vld [vmem:[%s368 + $0xb2] sm:$0xff]
      %v577 = vld [vmem:[%s368 + $0xc2] sm:$0xff]
      %v578 = vld [vmem:[%s368 + $0xca] sm:$0xff]
      %v579 = vld [vmem:[%s368 + $0xda] sm:$0xff]
      %v580 = vld [vmem:[%s368 + $0xe2] sm:$0xff]
      %v581 = vld [vmem:[%s368 + $0xf2] sm:$0xff]
      %v582 = vld [vmem:[%s368 + $0xfa] sm:$0xff]
      %v583 = vld [vmem:[%s368 + $0x10a] sm:$0xff]
      %v584 = vld [vmem:[%s368 + $0x112] sm:$0xff]
      %v585 = vld [vmem:[%s368 + $0x122] sm:$0xff]
      %v586 = vld [vmem:[%s368 + $0x12a] sm:$0xff]
      %v587 = vld [vmem:[%s368 + $0x13a] sm:$0xff]
      %v588 = vld [vmem:[%s368 + $0x142] sm:$0xff]
      %v589 = vld [vmem:[%s368 + $0x152] sm:$0xff]
      %v590 = vld [vmem:[%s368 + $0x15a] sm:$0xff]
      %v591 = vld [vmem:[%s368 + $0x16a] sm:$0xff]
      %v592 = vld [vmem:[%s368 + $0x172] sm:$0xff]
      %s593 = scalar_lea.vmem [#allocation2], 48
      %v594 = vld [vmem:[%s593] sm:$0xff]
      %v595 = vld [vmem:[%s593 + $0x8] sm:$0xff]
      %v596 = vld [vmem:[%s593 + $0x18] sm:$0xff]
      %v597 = vld [vmem:[%s593 + $0x20] sm:$0xff]
      %v598 = vld [vmem:[%s593 + $0x30] sm:$0xff]
      %v599 = vld [vmem:[%s593 + $0x38] sm:$0xff]
      %v600 = vld [vmem:[%s593 + $0x48] sm:$0xff]
      %v601 = vld [vmem:[%s593 + $0x50] sm:$0xff]
      %v602 = vld [vmem:[%s593 + $0x60] sm:$0xff]
      %v603 = vld [vmem:[%s593 + $0x68] sm:$0xff]
      %v604 = vld [vmem:[%s593 + $0x78] sm:$0xff]
      %v605 = vld [vmem:[%s593 + $0x80] sm:$0xff]
      %v606 = vld [vmem:[%s593 + $0x90] sm:$0xff]
      %v607 = vld [vmem:[%s593 + $0x98] sm:$0xff]
      %v608 = vld [vmem:[%s593 + $0xa8] sm:$0xff]
      %v609 = vld [vmem:[%s593 + $0xb0] sm:$0xff]
      %v610 = vld [vmem:[%s593 + $0xc0] sm:$0xff]
      %v611 = vld [vmem:[%s593 + $0xc8] sm:$0xff]
      %v612 = vld [vmem:[%s593 + $0xd8] sm:$0xff]
      %v613 = vld [vmem:[%s593 + $0xe0] sm:$0xff]
      %v614 = vld [vmem:[%s593 + $0xf0] sm:$0xff]
      %v615 = vld [vmem:[%s593 + $0xf8] sm:$0xff]
      %v616 = vld [vmem:[%s593 + $0x108] sm:$0xff]
      %v617 = vld [vmem:[%s593 + $0x110] sm:$0xff]
      %v618 = vld [vmem:[%s593 + $0x120] sm:$0xff]
      %v619 = vld [vmem:[%s593 + $0x128] sm:$0xff]
      %v620 = vld [vmem:[%s593 + $0x138] sm:$0xff]
      %v621 = vld [vmem:[%s593 + $0x140] sm:$0xff]
      %v622 = vld [vmem:[%s593 + $0x150] sm:$0xff]
      %v623 = vld [vmem:[%s593 + $0x158] sm:$0xff]
      %v624 = vld [vmem:[%s593 + $0x168] sm:$0xff]
      %v625 = vld [vmem:[%s593 + $0x170] sm:$0xff]
      %v626 = vld [vmem:[%s593 + $0x1] sm:$0xff]
      %v627 = vld [vmem:[%s593 + $0x9] sm:$0xff]
      %v628 = vld [vmem:[%s593 + $0x19] sm:$0xff]
      %v629 = vld [vmem:[%s593 + $0x21] sm:$0xff]
      %v630 = vld [vmem:[%s593 + $0x31] sm:$0xff]
      %v631 = vld [vmem:[%s593 + $0x39] sm:$0xff]
      %v632 = vld [vmem:[%s593 + $0x49] sm:$0xff]
      %v633 = vld [vmem:[%s593 + $0x51] sm:$0xff]
      %v634 = vld [vmem:[%s593 + $0x61] sm:$0xff]
      %v635 = vld [vmem:[%s593 + $0x69] sm:$0xff]
      %v636 = vld [vmem:[%s593 + $0x79] sm:$0xff]
      %v637 = vld [vmem:[%s593 + $0x81] sm:$0xff]
      %v638 = vld [vmem:[%s593 + $0x91] sm:$0xff]
      %v639 = vld [vmem:[%s593 + $0x99] sm:$0xff]
      %v640 = vld [vmem:[%s593 + $0xa9] sm:$0xff]
      %v641 = vld [vmem:[%s593 + $0xb1] sm:$0xff]
      %v642 = vld [vmem:[%s593 + $0xc1] sm:$0xff]
      %v643 = vld [vmem:[%s593 + $0xc9] sm:$0xff]
      %v644 = vld [vmem:[%s593 + $0xd9] sm:$0xff]
      %v645 = vld [vmem:[%s593 + $0xe1] sm:$0xff]
      %v646 = vld [vmem:[%s593 + $0xf1] sm:$0xff]
      %v647 = vld [vmem:[%s593 + $0xf9] sm:$0xff]
      %v648 = vld [vmem:[%s593 + $0x109] sm:$0xff]
      %v649 = vld [vmem:[%s593 + $0x111] sm:$0xff]
      %v650 = vld [vmem:[%s593 + $0x121] sm:$0xff]
      %v651 = vld [vmem:[%s593 + $0x129] sm:$0xff]
      %v652 = vld [vmem:[%s593 + $0x139] sm:$0xff]
      %v653 = vld [vmem:[%s593 + $0x141] sm:$0xff]
      %v654 = vld [vmem:[%s593 + $0x151] sm:$0xff]
      %v655 = vld [vmem:[%s593 + $0x159] sm:$0xff]
      %v656 = vld [vmem:[%s593 + $0x169] sm:$0xff]
      %v657 = vld [vmem:[%s593 + $0x171] sm:$0xff]
      %v658 = vld [vmem:[%s593 + $0x2] sm:$0xff]
      %v659 = vld [vmem:[%s593 + $0xa] sm:$0xff]
      %v660 = vld [vmem:[%s593 + $0x1a] sm:$0xff]
      %v661 = vld [vmem:[%s593 + $0x22] sm:$0xff]
      %v662 = vld [vmem:[%s593 + $0x32] sm:$0xff]
      %v663 = vld [vmem:[%s593 + $0x3a] sm:$0xff]
      %v664 = vld [vmem:[%s593 + $0x4a] sm:$0xff]
      %v665 = vld [vmem:[%s593 + $0x52] sm:$0xff]
      %v666 = vld [vmem:[%s593 + $0x62] sm:$0xff]
      %v667 = vld [vmem:[%s593 + $0x6a] sm:$0xff]
      %v668 = vld [vmem:[%s593 + $0x7a] sm:$0xff]
      %v669 = vld [vmem:[%s593 + $0x82] sm:$0xff]
      %v670 = vld [vmem:[%s593 + $0x92] sm:$0xff]
      %v671 = vld [vmem:[%s593 + $0x9a] sm:$0xff]
      %v672 = vld [vmem:[%s593 + $0xaa] sm:$0xff]
      %v673 = vld [vmem:[%s593 + $0xb2] sm:$0xff]
      %v674 = vld [vmem:[%s593 + $0xc2] sm:$0xff]
      %v675 = vld [vmem:[%s593 + $0xca] sm:$0xff]
      %v676 = vld [vmem:[%s593 + $0xda] sm:$0xff]
      %v677 = vld [vmem:[%s593 + $0xe2] sm:$0xff]
      %v678 = vld [vmem:[%s593 + $0xf2] sm:$0xff]
      %v679 = vld [vmem:[%s593 + $0xfa] sm:$0xff]
      %v680 = vld [vmem:[%s593 + $0x10a] sm:$0xff]
      %v681 = vld [vmem:[%s593 + $0x112] sm:$0xff]
      %v682 = vld [vmem:[%s593 + $0x122] sm:$0xff]
      %v683 = vld [vmem:[%s593 + $0x12a] sm:$0xff]
      %v684 = vld [vmem:[%s593 + $0x13a] sm:$0xff]
      %v685 = vld [vmem:[%s593 + $0x142] sm:$0xff]
      %v686 = vld [vmem:[%s593 + $0x152] sm:$0xff]
      %v687 = vld [vmem:[%s593 + $0x15a] sm:$0xff]
      %v688 = vld [vmem:[%s593 + $0x16a] sm:$0xff]
      %v689 = vld [vmem:[%s593 + $0x172] sm:$0xff]
      %722 = vrot.lane.b32.xlu0 %v433, 8
      %v723 = vpop.permute.xlu0 %722
      %724 = vrot.lane.b32.xlu0 %v434, 8
      %v725 = vpop.permute.xlu0 %724
      %726 = vrot.lane.b32.xlu0 %v435, 8
      %v727 = vpop.permute.xlu0 %726
      %728 = vrot.lane.b32.xlu0 %v436, 8
      %v729 = vpop.permute.xlu0 %728
      %730 = vrot.lane.b32.xlu0 %v437, 8
      %v731 = vpop.permute.xlu0 %730
      %732 = vrot.lane.b32.xlu0 %v438, 8
      %v733 = vpop.permute.xlu0 %732
      %734 = vrot.lane.b32.xlu0 %v439, 8
      %v735 = vpop.permute.xlu0 %734
      %736 = vrot.lane.b32.xlu0 %v440, 8
      %v737 = vpop.permute.xlu0 %736
      %738 = vrot.lane.b32.xlu0 %v441, 8
      %v739 = vpop.permute.xlu0 %738
      %740 = vrot.lane.b32.xlu0 %v442, 8
      %v741 = vpop.permute.xlu0 %740
      %742 = vrot.lane.b32.xlu0 %v443, 8
      %v743 = vpop.permute.xlu0 %742
      %744 = vrot.lane.b32.xlu0 %v444, 8
      %v745 = vpop.permute.xlu0 %744
      %746 = vrot.lane.b32.xlu0 %v445, 8
      %v747 = vpop.permute.xlu0 %746
      %748 = vrot.lane.b32.xlu0 %v446, 8
      %v749 = vpop.permute.xlu0 %748
      %750 = vrot.lane.b32.xlu0 %v447, 8
      %v751 = vpop.permute.xlu0 %750
      %752 = vrot.lane.b32.xlu0 %v448, 8
      %v753 = vpop.permute.xlu0 %752
      %754 = vrot.lane.b32.xlu0 %v449, 8
      %v755 = vpop.permute.xlu0 %754
      %756 = vrot.lane.b32.xlu0 %v450, 8
      %v757 = vpop.permute.xlu0 %756
      %758 = vrot.lane.b32.xlu0 %v451, 8
      %v759 = vpop.permute.xlu0 %758
      %760 = vrot.lane.b32.xlu0 %v452, 8
      %v761 = vpop.permute.xlu0 %760
      %762 = vrot.lane.b32.xlu0 %v453, 8
      %v763 = vpop.permute.xlu0 %762
      %764 = vrot.lane.b32.xlu0 %v454, 8
      %v765 = vpop.permute.xlu0 %764
      %766 = vrot.lane.b32.xlu0 %v455, 8
      %v767 = vpop.permute.xlu0 %766
      %768 = vrot.lane.b32.xlu0 %v456, 8
      %v769 = vpop.permute.xlu0 %768
      %770 = vrot.lane.b32.xlu0 %v457, 8
      %v771 = vpop.permute.xlu0 %770
      %772 = vrot.lane.b32.xlu0 %v458, 8
      %v773 = vpop.permute.xlu0 %772
      %774 = vrot.lane.b32.xlu0 %v459, 8
      %v775 = vpop.permute.xlu0 %774
      %776 = vrot.lane.b32.xlu0 %v460, 8
      %v777 = vpop.permute.xlu0 %776
      %778 = vrot.lane.b32.xlu0 %v461, 8
      %v779 = vpop.permute.xlu0 %778
      %780 = vrot.lane.b32.xlu0 %v462, 8
      %v781 = vpop.permute.xlu0 %780
      %782 = vrot.lane.b32.xlu0 %v463, 8
      %v783 = vpop.permute.xlu0 %782
      %784 = vrot.lane.b32.xlu0 %v464, 8
      %v785 = vpop.permute.xlu0 %784
      %850 = vrot.lane.b32.xlu0 %v465, 16
      %v851 = vpop.permute.xlu0 %850
      %852 = vrot.lane.b32.xlu0 %v466, 16
      %v853 = vpop.permute.xlu0 %852
      %854 = vrot.lane.b32.xlu0 %v467, 16
      %v855 = vpop.permute.xlu0 %854
      %856 = vrot.lane.b32.xlu0 %v468, 16
      %v857 = vpop.permute.xlu0 %856
      %858 = vrot.lane.b32.xlu0 %v469, 16
      %v859 = vpop.permute.xlu0 %858
      %860 = vrot.lane.b32.xlu0 %v470, 16
      %v861 = vpop.permute.xlu0 %860
      %862 = vrot.lane.b32.xlu0 %v471, 16
      %v863 = vpop.permute.xlu0 %862
      %864 = vrot.lane.b32.xlu0 %v472, 16
      %v865 = vpop.permute.xlu0 %864
      %866 = vrot.lane.b32.xlu0 %v473, 16
      %v867 = vpop.permute.xlu0 %866
      %868 = vrot.lane.b32.xlu0 %v474, 16
      %v869 = vpop.permute.xlu0 %868
      %870 = vrot.lane.b32.xlu0 %v475, 16
      %v871 = vpop.permute.xlu0 %870
      %872 = vrot.lane.b32.xlu0 %v476, 16
      %v873 = vpop.permute.xlu0 %872
      %874 = vrot.lane.b32.xlu0 %v477, 16
      %v875 = vpop.permute.xlu0 %874
      %876 = vrot.lane.b32.xlu0 %v478, 16
      %v877 = vpop.permute.xlu0 %876
      %878 = vrot.lane.b32.xlu0 %v479, 16
      %v879 = vpop.permute.xlu0 %878
      %880 = vrot.lane.b32.xlu0 %v480, 16
      %v881 = vpop.permute.xlu0 %880
      %882 = vrot.lane.b32.xlu0 %v481, 16
      %v883 = vpop.permute.xlu0 %882
      %884 = vrot.lane.b32.xlu0 %v482, 16
      %v885 = vpop.permute.xlu0 %884
      %886 = vrot.lane.b32.xlu0 %v483, 16
      %v887 = vpop.permute.xlu0 %886
      %888 = vrot.lane.b32.xlu0 %v484, 16
      %v889 = vpop.permute.xlu0 %888
      %890 = vrot.lane.b32.xlu0 %v485, 16
      %v891 = vpop.permute.xlu0 %890
      %892 = vrot.lane.b32.xlu0 %v486, 16
      %v893 = vpop.permute.xlu0 %892
      %894 = vrot.lane.b32.xlu0 %v487, 16
      %v895 = vpop.permute.xlu0 %894
      %896 = vrot.lane.b32.xlu0 %v488, 16
      %v897 = vpop.permute.xlu0 %896
      %898 = vrot.lane.b32.xlu0 %v489, 16
      %v899 = vpop.permute.xlu0 %898
      %900 = vrot.lane.b32.xlu0 %v490, 16
      %v901 = vpop.permute.xlu0 %900
      %902 = vrot.lane.b32.xlu0 %v491, 16
      %v903 = vpop.permute.xlu0 %902
      %904 = vrot.lane.b32.xlu0 %v492, 16
      %v905 = vpop.permute.xlu0 %904
      %906 = vrot.lane.b32.xlu0 %v493, 16
      %v907 = vpop.permute.xlu0 %906
      %908 = vrot.lane.b32.xlu0 %v494, 16
      %v909 = vpop.permute.xlu0 %908
      %910 = vrot.lane.b32.xlu0 %v495, 16
      %v911 = vpop.permute.xlu0 %910
      %912 = vrot.lane.b32.xlu0 %v496, 16
      %v913 = vpop.permute.xlu0 %912
      %978 = vrot.lane.b32.xlu0 %v497, 24
      %v979 = vpop.permute.xlu0 %978
      %980 = vrot.lane.b32.xlu0 %v498, 24
      %v981 = vpop.permute.xlu0 %980
      %982 = vrot.lane.b32.xlu0 %v499, 24
      %v983 = vpop.permute.xlu0 %982
      %984 = vrot.lane.b32.xlu0 %v500, 24
      %v985 = vpop.permute.xlu0 %984
      %986 = vrot.lane.b32.xlu0 %v501, 24
      %v987 = vpop.permute.xlu0 %986
      %988 = vrot.lane.b32.xlu0 %v502, 24
      %v989 = vpop.permute.xlu0 %988
      %990 = vrot.lane.b32.xlu0 %v503, 24
      %v991 = vpop.permute.xlu0 %990
      %992 = vrot.lane.b32.xlu0 %v504, 24
      %v993 = vpop.permute.xlu0 %992
      %994 = vrot.lane.b32.xlu0 %v505, 24
      %v995 = vpop.permute.xlu0 %994
      %996 = vrot.lane.b32.xlu0 %v506, 24
      %v997 = vpop.permute.xlu0 %996
      %998 = vrot.lane.b32.xlu0 %v507, 24
      %v999 = vpop.permute.xlu0 %998
      %1000 = vrot.lane.b32.xlu0 %v508, 24
      %v1001 = vpop.permute.xlu0 %1000
      %1002 = vrot.lane.b32.xlu0 %v509, 24
      %v1003 = vpop.permute.xlu0 %1002
      %1004 = vrot.lane.b32.xlu0 %v510, 24
      %v1005 = vpop.permute.xlu0 %1004
      %1006 = vrot.lane.b32.xlu0 %v511, 24
      %v1007 = vpop.permute.xlu0 %1006
      %1008 = vrot.lane.b32.xlu0 %v512, 24
      %v1009 = vpop.permute.xlu0 %1008
      %1010 = vrot.lane.b32.xlu0 %v513, 24
      %v1011 = vpop.permute.xlu0 %1010
      %1012 = vrot.lane.b32.xlu0 %v514, 24
      %v1013 = vpop.permute.xlu0 %1012
      %1014 = vrot.lane.b32.xlu0 %v515, 24
      %v1015 = vpop.permute.xlu0 %1014
      %1016 = vrot.lane.b32.xlu0 %v516, 24
      %v1017 = vpop.permute.xlu0 %1016
      %1018 = vrot.lane.b32.xlu0 %v517, 24
      %v1019 = vpop.permute.xlu0 %1018
      %1020 = vrot.lane.b32.xlu0 %v518, 24
      %v1021 = vpop.permute.xlu0 %1020
      %1022 = vrot.lane.b32.xlu0 %v519, 24
      %v1023 = vpop.permute.xlu0 %1022
      %1024 = vrot.lane.b32.xlu0 %v520, 24
      %v1025 = vpop.permute.xlu0 %1024
      %1026 = vrot.lane.b32.xlu0 %v521, 24
      %v1027 = vpop.permute.xlu0 %1026
      %1028 = vrot.lane.b32.xlu0 %v522, 24
      %v1029 = vpop.permute.xlu0 %1028
      %1030 = vrot.lane.b32.xlu0 %v523, 24
      %v1031 = vpop.permute.xlu0 %1030
      %1032 = vrot.lane.b32.xlu0 %v524, 24
      %v1033 = vpop.permute.xlu0 %1032
      %1034 = vrot.lane.b32.xlu0 %v525, 24
      %v1035 = vpop.permute.xlu0 %1034
      %1036 = vrot.lane.b32.xlu0 %v526, 24
      %v1037 = vpop.permute.xlu0 %1036
      %1038 = vrot.lane.b32.xlu0 %v527, 24
      %v1039 = vpop.permute.xlu0 %1038
      %1040 = vrot.lane.b32.xlu0 %v528, 24
      %v1041 = vpop.permute.xlu0 %1040
      %1106 = vrot.lane.b32.xlu0 %v529, 32
      %v1107 = vpop.permute.xlu0 %1106
      %1108 = vrot.lane.b32.xlu0 %v530, 32
      %v1109 = vpop.permute.xlu0 %1108
      %1110 = vrot.lane.b32.xlu0 %v531, 32
      %v1111 = vpop.permute.xlu0 %1110
      %1112 = vrot.lane.b32.xlu0 %v532, 32
      %v1113 = vpop.permute.xlu0 %1112
      %1114 = vrot.lane.b32.xlu0 %v533, 32
      %v1115 = vpop.permute.xlu0 %1114
      %1116 = vrot.lane.b32.xlu0 %v534, 32
      %v1117 = vpop.permute.xlu0 %1116
      %1118 = vrot.lane.b32.xlu0 %v535, 32
      %v1119 = vpop.permute.xlu0 %1118
      %1120 = vrot.lane.b32.xlu0 %v536, 32
      %v1121 = vpop.permute.xlu0 %1120
      %1122 = vrot.lane.b32.xlu0 %v537, 32
      %v1123 = vpop.permute.xlu0 %1122
      %1124 = vrot.lane.b32.xlu0 %v538, 32
      %v1125 = vpop.permute.xlu0 %1124
      %1126 = vrot.lane.b32.xlu0 %v539, 32
      %v1127 = vpop.permute.xlu0 %1126
      %1128 = vrot.lane.b32.xlu0 %v540, 32
      %v1129 = vpop.permute.xlu0 %1128
      %1130 = vrot.lane.b32.xlu0 %v541, 32
      %v1131 = vpop.permute.xlu0 %1130
      %1132 = vrot.lane.b32.xlu0 %v542, 32
      %v1133 = vpop.permute.xlu0 %1132
      %1134 = vrot.lane.b32.xlu0 %v543, 32
      %v1135 = vpop.permute.xlu0 %1134
      %1136 = vrot.lane.b32.xlu0 %v544, 32
      %v1137 = vpop.permute.xlu0 %1136
      %1138 = vrot.lane.b32.xlu0 %v545, 32
      %v1139 = vpop.permute.xlu0 %1138
      %1140 = vrot.lane.b32.xlu0 %v546, 32
      %v1141 = vpop.permute.xlu0 %1140
      %1142 = vrot.lane.b32.xlu0 %v547, 32
      %v1143 = vpop.permute.xlu0 %1142
      %1144 = vrot.lane.b32.xlu0 %v548, 32
      %v1145 = vpop.permute.xlu0 %1144
      %1146 = vrot.lane.b32.xlu0 %v549, 32
      %v1147 = vpop.permute.xlu0 %1146
      %1148 = vrot.lane.b32.xlu0 %v550, 32
      %v1149 = vpop.permute.xlu0 %1148
      %1150 = vrot.lane.b32.xlu0 %v551, 32
      %v1151 = vpop.permute.xlu0 %1150
      %1152 = vrot.lane.b32.xlu0 %v552, 32
      %v1153 = vpop.permute.xlu0 %1152
      %1154 = vrot.lane.b32.xlu0 %v553, 32
      %v1155 = vpop.permute.xlu0 %1154
      %1156 = vrot.lane.b32.xlu0 %v554, 32
      %v1157 = vpop.permute.xlu0 %1156
      %1158 = vrot.lane.b32.xlu0 %v555, 32
      %v1159 = vpop.permute.xlu0 %1158
      %1160 = vrot.lane.b32.xlu0 %v556, 32
      %v1161 = vpop.permute.xlu0 %1160
      %1162 = vrot.lane.b32.xlu0 %v557, 32
      %v1163 = vpop.permute.xlu0 %1162
      %1164 = vrot.lane.b32.xlu0 %v558, 32
      %v1165 = vpop.permute.xlu0 %1164
      %1166 = vrot.lane.b32.xlu0 %v559, 32
      %v1167 = vpop.permute.xlu0 %1166
      %1168 = vrot.lane.b32.xlu0 %v560, 32
      %v1169 = vpop.permute.xlu0 %1168
      %1234 = vrot.lane.b32.xlu0 %v561, 40
      %v1235 = vpop.permute.xlu0 %1234
      %1236 = vrot.lane.b32.xlu0 %v562, 40
      %v1237 = vpop.permute.xlu0 %1236
      %1238 = vrot.lane.b32.xlu0 %v563, 40
      %v1239 = vpop.permute.xlu0 %1238
      %1240 = vrot.lane.b32.xlu0 %v564, 40
      %v1241 = vpop.permute.xlu0 %1240
      %1242 = vrot.lane.b32.xlu0 %v565, 40
      %v1243 = vpop.permute.xlu0 %1242
      %1244 = vrot.lane.b32.xlu0 %v566, 40
      %v1245 = vpop.permute.xlu0 %1244
      %1246 = vrot.lane.b32.xlu0 %v567, 40
      %v1247 = vpop.permute.xlu0 %1246
      %1248 = vrot.lane.b32.xlu0 %v568, 40
      %v1249 = vpop.permute.xlu0 %1248
      %1250 = vrot.lane.b32.xlu0 %v569, 40
      %v1251 = vpop.permute.xlu0 %1250
      %1252 = vrot.lane.b32.xlu0 %v570, 40
      %v1253 = vpop.permute.xlu0 %1252
      %1254 = vrot.lane.b32.xlu0 %v571, 40
      %v1255 = vpop.permute.xlu0 %1254
      %1256 = vrot.lane.b32.xlu0 %v572, 40
      %v1257 = vpop.permute.xlu0 %1256
      %1258 = vrot.lane.b32.xlu0 %v573, 40
      %v1259 = vpop.permute.xlu0 %1258
      %1260 = vrot.lane.b32.xlu0 %v574, 40
      %v1261 = vpop.permute.xlu0 %1260
      %1262 = vrot.lane.b32.xlu0 %v575, 40
      %v1263 = vpop.permute.xlu0 %1262
      %1264 = vrot.lane.b32.xlu0 %v576, 40
      %v1265 = vpop.permute.xlu0 %1264
      %1266 = vrot.lane.b32.xlu0 %v577, 40
      %v1267 = vpop.permute.xlu0 %1266
      %1268 = vrot.lane.b32.xlu0 %v578, 40
      %v1269 = vpop.permute.xlu0 %1268
      %1270 = vrot.lane.b32.xlu0 %v579, 40
      %v1271 = vpop.permute.xlu0 %1270
      %1272 = vrot.lane.b32.xlu0 %v580, 40
      %v1273 = vpop.permute.xlu0 %1272
      %1274 = vrot.lane.b32.xlu0 %v581, 40
      %v1275 = vpop.permute.xlu0 %1274
      %1276 = vrot.lane.b32.xlu0 %v582, 40
      %v1277 = vpop.permute.xlu0 %1276
      %1278 = vrot.lane.b32.xlu0 %v583, 40
      %v1279 = vpop.permute.xlu0 %1278
      %1280 = vrot.lane.b32.xlu0 %v584, 40
      %v1281 = vpop.permute.xlu0 %1280
      %1282 = vrot.lane.b32.xlu0 %v585, 40
      %v1283 = vpop.permute.xlu0 %1282
      %1284 = vrot.lane.b32.xlu0 %v586, 40
      %v1285 = vpop.permute.xlu0 %1284
      %1286 = vrot.lane.b32.xlu0 %v587, 40
      %v1287 = vpop.permute.xlu0 %1286
      %1288 = vrot.lane.b32.xlu0 %v588, 40
      %v1289 = vpop.permute.xlu0 %1288
      %1290 = vrot.lane.b32.xlu0 %v589, 40
      %v1291 = vpop.permute.xlu0 %1290
      %1292 = vrot.lane.b32.xlu0 %v590, 40
      %v1293 = vpop.permute.xlu0 %1292
      %1294 = vrot.lane.b32.xlu0 %v591, 40
      %v1295 = vpop.permute.xlu0 %1294
      %1296 = vrot.lane.b32.xlu0 %v592, 40
      %v1297 = vpop.permute.xlu0 %1296
      %1362 = vrot.lane.b32.xlu0 %v594, 48
      %v1363 = vpop.permute.xlu0 %1362
      %1364 = vrot.lane.b32.xlu0 %v595, 48
      %v1365 = vpop.permute.xlu0 %1364
      %1366 = vrot.lane.b32.xlu0 %v596, 48
      %v1367 = vpop.permute.xlu0 %1366
      %1368 = vrot.lane.b32.xlu0 %v597, 48
      %v1369 = vpop.permute.xlu0 %1368
      %1370 = vrot.lane.b32.xlu0 %v598, 48
      %v1371 = vpop.permute.xlu0 %1370
      %1372 = vrot.lane.b32.xlu0 %v599, 48
      %v1373 = vpop.permute.xlu0 %1372
      %1374 = vrot.lane.b32.xlu0 %v600, 48
      %v1375 = vpop.permute.xlu0 %1374
      %1376 = vrot.lane.b32.xlu0 %v601, 48
      %v1377 = vpop.permute.xlu0 %1376
      %1378 = vrot.lane.b32.xlu0 %v602, 48
      %v1379 = vpop.permute.xlu0 %1378
      %1380 = vrot.lane.b32.xlu0 %v603, 48
      %v1381 = vpop.permute.xlu0 %1380
      %1382 = vrot.lane.b32.xlu0 %v604, 48
      %v1383 = vpop.permute.xlu0 %1382
      %1384 = vrot.lane.b32.xlu0 %v605, 48
      %v1385 = vpop.permute.xlu0 %1384
      %1386 = vrot.lane.b32.xlu0 %v606, 48
      %v1387 = vpop.permute.xlu0 %1386
      %1388 = vrot.lane.b32.xlu0 %v607, 48
      %v1389 = vpop.permute.xlu0 %1388
      %1390 = vrot.lane.b32.xlu0 %v608, 48
      %v1391 = vpop.permute.xlu0 %1390
      %1392 = vrot.lane.b32.xlu0 %v609, 48
      %v1393 = vpop.permute.xlu0 %1392
      %1394 = vrot.lane.b32.xlu0 %v610, 48
      %v1395 = vpop.permute.xlu0 %1394
      %1396 = vrot.lane.b32.xlu0 %v611, 48
      %v1397 = vpop.permute.xlu0 %1396
      %1398 = vrot.lane.b32.xlu0 %v612, 48
      %v1399 = vpop.permute.xlu0 %1398
      %1400 = vrot.lane.b32.xlu0 %v613, 48
      %v1401 = vpop.permute.xlu0 %1400
      %1402 = vrot.lane.b32.xlu0 %v614, 48
      %v1403 = vpop.permute.xlu0 %1402
      %1404 = vrot.lane.b32.xlu0 %v615, 48
      %v1405 = vpop.permute.xlu0 %1404
      %1406 = vrot.lane.b32.xlu0 %v616, 48
      %v1407 = vpop.permute.xlu0 %1406
      %1408 = vrot.lane.b32.xlu0 %v617, 48
      %v1409 = vpop.permute.xlu0 %1408
      %1410 = vrot.lane.b32.xlu0 %v618, 48
      %v1411 = vpop.permute.xlu0 %1410
      %1412 = vrot.lane.b32.xlu0 %v619, 48
      %v1413 = vpop.permute.xlu0 %1412
      %1414 = vrot.lane.b32.xlu0 %v620, 48
      %v1415 = vpop.permute.xlu0 %1414
      %1416 = vrot.lane.b32.xlu0 %v621, 48
      %v1417 = vpop.permute.xlu0 %1416
      %1418 = vrot.lane.b32.xlu0 %v622, 48
      %v1419 = vpop.permute.xlu0 %1418
      %1420 = vrot.lane.b32.xlu0 %v623, 48
      %v1421 = vpop.permute.xlu0 %1420
      %1422 = vrot.lane.b32.xlu0 %v624, 48
      %v1423 = vpop.permute.xlu0 %1422
      %1424 = vrot.lane.b32.xlu0 %v625, 48
      %v1425 = vpop.permute.xlu0 %1424
      %1490 = vrot.lane.b32.xlu0 %v626, 56
      %v1491 = vpop.permute.xlu0 %1490
      %1492 = vrot.lane.b32.xlu0 %v627, 56
      %v1493 = vpop.permute.xlu0 %1492
      %1494 = vrot.lane.b32.xlu0 %v628, 56
      %v1495 = vpop.permute.xlu0 %1494
      %1496 = vrot.lane.b32.xlu0 %v629, 56
      %v1497 = vpop.permute.xlu0 %1496
      %1498 = vrot.lane.b32.xlu0 %v630, 56
      %v1499 = vpop.permute.xlu0 %1498
      %1500 = vrot.lane.b32.xlu0 %v631, 56
      %v1501 = vpop.permute.xlu0 %1500
      %1502 = vrot.lane.b32.xlu0 %v632, 56
      %v1503 = vpop.permute.xlu0 %1502
      %1504 = vrot.lane.b32.xlu0 %v633, 56
      %v1505 = vpop.permute.xlu0 %1504
      %1506 = vrot.lane.b32.xlu0 %v634, 56
      %v1507 = vpop.permute.xlu0 %1506
      %1508 = vrot.lane.b32.xlu0 %v635, 56
      %v1509 = vpop.permute.xlu0 %1508
      %1510 = vrot.lane.b32.xlu0 %v636, 56
      %v1511 = vpop.permute.xlu0 %1510
      %1512 = vrot.lane.b32.xlu0 %v637, 56
      %v1513 = vpop.permute.xlu0 %1512
      %1514 = vrot.lane.b32.xlu0 %v638, 56
      %v1515 = vpop.permute.xlu0 %1514
      %1516 = vrot.lane.b32.xlu0 %v639, 56
      %v1517 = vpop.permute.xlu0 %1516
      %1518 = vrot.lane.b32.xlu0 %v640, 56
      %v1519 = vpop.permute.xlu0 %1518
      %1520 = vrot.lane.b32.xlu0 %v641, 56
      %v1521 = vpop.permute.xlu0 %1520
      %1522 = vrot.lane.b32.xlu0 %v642, 56
      %v1523 = vpop.permute.xlu0 %1522
      %1524 = vrot.lane.b32.xlu0 %v643, 56
      %v1525 = vpop.permute.xlu0 %1524
      %1526 = vrot.lane.b32.xlu0 %v644, 56
      %v1527 = vpop.permute.xlu0 %1526
      %1528 = vrot.lane.b32.xlu0 %v645, 56
      %v1529 = vpop.permute.xlu0 %1528
      %1530 = vrot.lane.b32.xlu0 %v646, 56
      %v1531 = vpop.permute.xlu0 %1530
      %1532 = vrot.lane.b32.xlu0 %v647, 56
      %v1533 = vpop.permute.xlu0 %1532
      %1534 = vrot.lane.b32.xlu0 %v648, 56
      %v1535 = vpop.permute.xlu0 %1534
      %1536 = vrot.lane.b32.xlu0 %v649, 56
      %v1537 = vpop.permute.xlu0 %1536
      %1538 = vrot.lane.b32.xlu0 %v650, 56
      %v1539 = vpop.permute.xlu0 %1538
      %1540 = vrot.lane.b32.xlu0 %v651, 56
      %v1541 = vpop.permute.xlu0 %1540
      %1542 = vrot.lane.b32.xlu0 %v652, 56
      %v1543 = vpop.permute.xlu0 %1542
      %1544 = vrot.lane.b32.xlu0 %v653, 56
      %v1545 = vpop.permute.xlu0 %1544
      %1546 = vrot.lane.b32.xlu0 %v654, 56
      %v1547 = vpop.permute.xlu0 %1546
      %1548 = vrot.lane.b32.xlu0 %v655, 56
      %v1549 = vpop.permute.xlu0 %1548
      %1550 = vrot.lane.b32.xlu0 %v656, 56
      %v1551 = vpop.permute.xlu0 %1550
      %1552 = vrot.lane.b32.xlu0 %v657, 56
      %v1553 = vpop.permute.xlu0 %1552
      %1618 = vrot.lane.b32.xlu0 %v658, 64
      %v1619 = vpop.permute.xlu0 %1618
      %1620 = vrot.lane.b32.xlu0 %v659, 64
      %v1621 = vpop.permute.xlu0 %1620
      %1622 = vrot.lane.b32.xlu0 %v660, 64
      %v1623 = vpop.permute.xlu0 %1622
      %1624 = vrot.lane.b32.xlu0 %v661, 64
      %v1625 = vpop.permute.xlu0 %1624
      %1626 = vrot.lane.b32.xlu0 %v662, 64
      %v1627 = vpop.permute.xlu0 %1626
      %1628 = vrot.lane.b32.xlu0 %v663, 64
      %v1629 = vpop.permute.xlu0 %1628
      %1630 = vrot.lane.b32.xlu0 %v664, 64
      %v1631 = vpop.permute.xlu0 %1630
      %1632 = vrot.lane.b32.xlu0 %v665, 64
      %v1633 = vpop.permute.xlu0 %1632
      %1634 = vrot.lane.b32.xlu0 %v666, 64
      %v1635 = vpop.permute.xlu0 %1634
      %1636 = vrot.lane.b32.xlu0 %v667, 64
      %v1637 = vpop.permute.xlu0 %1636
      %1638 = vrot.lane.b32.xlu0 %v668, 64
      %v1639 = vpop.permute.xlu0 %1638
      %1640 = vrot.lane.b32.xlu0 %v669, 64
      %v1641 = vpop.permute.xlu0 %1640
      %1642 = vrot.lane.b32.xlu0 %v670, 64
      %v1643 = vpop.permute.xlu0 %1642
      %1644 = vrot.lane.b32.xlu0 %v671, 64
      %v1645 = vpop.permute.xlu0 %1644
      %1646 = vrot.lane.b32.xlu0 %v672, 64
      %v1647 = vpop.permute.xlu0 %1646
      %1648 = vrot.lane.b32.xlu0 %v673, 64
      %v1649 = vpop.permute.xlu0 %1648
      %1650 = vrot.lane.b32.xlu0 %v674, 64
      %v1651 = vpop.permute.xlu0 %1650
      %1652 = vrot.lane.b32.xlu0 %v675, 64
      %v1653 = vpop.permute.xlu0 %1652
      %1654 = vrot.lane.b32.xlu0 %v676, 64
      %v1655 = vpop.permute.xlu0 %1654
      %1656 = vrot.lane.b32.xlu0 %v677, 64
      %v1657 = vpop.permute.xlu0 %1656
      %1658 = vrot.lane.b32.xlu0 %v678, 64
      %v1659 = vpop.permute.xlu0 %1658
      %1660 = vrot.lane.b32.xlu0 %v679, 64
      %v1661 = vpop.permute.xlu0 %1660
      %1662 = vrot.lane.b32.xlu0 %v680, 64
      %v1663 = vpop.permute.xlu0 %1662
      %1664 = vrot.lane.b32.xlu0 %v681, 64
      %v1665 = vpop.permute.xlu0 %1664
      %1666 = vrot.lane.b32.xlu0 %v682, 64
      %v1667 = vpop.permute.xlu0 %1666
      %1668 = vrot.lane.b32.xlu0 %v683, 64
      %v1669 = vpop.permute.xlu0 %1668
      %1670 = vrot.lane.b32.xlu0 %v684, 64
      %v1671 = vpop.permute.xlu0 %1670
      %1672 = vrot.lane.b32.xlu0 %v685, 64
      %v1673 = vpop.permute.xlu0 %1672
      %1674 = vrot.lane.b32.xlu0 %v686, 64
      %v1675 = vpop.permute.xlu0 %1674
      %1676 = vrot.lane.b32.xlu0 %v687, 64
      %v1677 = vpop.permute.xlu0 %1676
      %1678 = vrot.lane.b32.xlu0 %v688, 64
      %v1679 = vpop.permute.xlu0 %1678
      %1680 = vrot.lane.b32.xlu0 %v689, 64
      %v1681 = vpop.permute.xlu0 %1680
      %v1714 = vsel %vm280, %v401, %v723
      %v1715 = vsel %vm280, %v402, %v725
      %v1716 = vsel %vm280, %v403, %v727
      %v1717 = vsel %vm280, %v404, %v729
      %v1718 = vsel %vm280, %v405, %v731
      %v1719 = vsel %vm280, %v406, %v733
      %v1720 = vsel %vm280, %v407, %v735
      %v1721 = vsel %vm280, %v408, %v737
      %v1722 = vsel %vm280, %v409, %v739
      %v1723 = vsel %vm280, %v410, %v741
      %v1724 = vsel %vm280, %v411, %v743
      %v1725 = vsel %vm280, %v412, %v745
      %v1726 = vsel %vm280, %v413, %v747
      %v1727 = vsel %vm280, %v414, %v749
      %v1728 = vsel %vm280, %v415, %v751
      %v1729 = vsel %vm280, %v416, %v753
      %v1730 = vsel %vm280, %v417, %v755
      %v1731 = vsel %vm280, %v418, %v757
      %v1732 = vsel %vm280, %v419, %v759
      %v1733 = vsel %vm280, %v420, %v761
      %v1734 = vsel %vm280, %v421, %v763
      %v1735 = vsel %vm280, %v422, %v765
      %v1736 = vsel %vm280, %v423, %v767
      %v1737 = vsel %vm280, %v424, %v769
      %v1738 = vsel %vm280, %v425, %v771
      %v1739 = vsel %vm280, %v426, %v773
      %v1740 = vsel %vm280, %v427, %v775
      %v1741 = vsel %vm280, %v428, %v777
      %v1742 = vsel %vm280, %v429, %v779
      %v1743 = vsel %vm280, %v430, %v781
      %v1744 = vsel %vm280, %v431, %v783
      %v1745 = vsel %vm280, %v432, %v785
      %vm1746 = vcmask 130048
      %v1747 = vsel %vm1746, %v1714, %v851
      %v1748 = vsel %vm1746, %v1715, %v853
      %v1749 = vsel %vm1746, %v1716, %v855
      %v1750 = vsel %vm1746, %v1717, %v857
      %v1751 = vsel %vm1746, %v1718, %v859
      %v1752 = vsel %vm1746, %v1719, %v861
      %v1753 = vsel %vm1746, %v1720, %v863
      %v1754 = vsel %vm1746, %v1721, %v865
      %v1755 = vsel %vm1746, %v1722, %v867
      %v1756 = vsel %vm1746, %v1723, %v869
      %v1757 = vsel %vm1746, %v1724, %v871
      %v1758 = vsel %vm1746, %v1725, %v873
      %v1759 = vsel %vm1746, %v1726, %v875
      %v1760 = vsel %vm1746, %v1727, %v877
      %v1761 = vsel %vm1746, %v1728, %v879
      %v1762 = vsel %vm1746, %v1729, %v881
      %v1763 = vsel %vm1746, %v1730, %v883
      %v1764 = vsel %vm1746, %v1731, %v885
      %v1765 = vsel %vm1746, %v1732, %v887
      %v1766 = vsel %vm1746, %v1733, %v889
      %v1767 = vsel %vm1746, %v1734, %v891
      %v1768 = vsel %vm1746, %v1735, %v893
      %v1769 = vsel %vm1746, %v1736, %v895
      %v1770 = vsel %vm1746, %v1737, %v897
      %v1771 = vsel %vm1746, %v1738, %v899
      %v1772 = vsel %vm1746, %v1739, %v901
      %v1773 = vsel %vm1746, %v1740, %v903
      %v1774 = vsel %vm1746, %v1741, %v905
      %v1775 = vsel %vm1746, %v1742, %v907
      %v1776 = vsel %vm1746, %v1743, %v909
      %v1777 = vsel %vm1746, %v1744, %v911
      %v1778 = vsel %vm1746, %v1745, %v913
      %vm1779 = vcmask 195584
      %v1780 = vsel %vm1779, %v1747, %v979
      %v1781 = vsel %vm1779, %v1748, %v981
      %v1782 = vsel %vm1779, %v1749, %v983
      %v1783 = vsel %vm1779, %v1750, %v985
      %v1784 = vsel %vm1779, %v1751, %v987
      %v1785 = vsel %vm1779, %v1752, %v989
      %v1786 = vsel %vm1779, %v1753, %v991
      %v1787 = vsel %vm1779, %v1754, %v993
      %v1788 = vsel %vm1779, %v1755, %v995
      %v1789 = vsel %vm1779, %v1756, %v997
      %v1790 = vsel %vm1779, %v1757, %v999
      %v1791 = vsel %vm1779, %v1758, %v1001
      %v1792 = vsel %vm1779, %v1759, %v1003
      %v1793 = vsel %vm1779, %v1760, %v1005
      %v1794 = vsel %vm1779, %v1761, %v1007
      %v1795 = vsel %vm1779, %v1762, %v1009
      %v1796 = vsel %vm1779, %v1763, %v1011
      %v1797 = vsel %vm1779, %v1764, %v1013
      %v1798 = vsel %vm1779, %v1765, %v1015
      %v1799 = vsel %vm1779, %v1766, %v1017
      %v1800 = vsel %vm1779, %v1767, %v1019
      %v1801 = vsel %vm1779, %v1768, %v1021
      %v1802 = vsel %vm1779, %v1769, %v1023
      %v1803 = vsel %vm1779, %v1770, %v1025
      %v1804 = vsel %vm1779, %v1771, %v1027
      %v1805 = vsel %vm1779, %v1772, %v1029
      %v1806 = vsel %vm1779, %v1773, %v1031
      %v1807 = vsel %vm1779, %v1774, %v1033
      %v1808 = vsel %vm1779, %v1775, %v1035
      %v1809 = vsel %vm1779, %v1776, %v1037
      %v1810 = vsel %vm1779, %v1777, %v1039
      %v1811 = vsel %vm1779, %v1778, %v1041
      %vm1812 = vcmask 261120
      %v1813 = vsel %vm1812, %v1780, %v1107
      %v1814 = vsel %vm1812, %v1781, %v1109
      %v1815 = vsel %vm1812, %v1782, %v1111
      %v1816 = vsel %vm1812, %v1783, %v1113
      %v1817 = vsel %vm1812, %v1784, %v1115
      %v1818 = vsel %vm1812, %v1785, %v1117
      %v1819 = vsel %vm1812, %v1786, %v1119
      %v1820 = vsel %vm1812, %v1787, %v1121
      %v1821 = vsel %vm1812, %v1788, %v1123
      %v1822 = vsel %vm1812, %v1789, %v1125
      %v1823 = vsel %vm1812, %v1790, %v1127
      %v1824 = vsel %vm1812, %v1791, %v1129
      %v1825 = vsel %vm1812, %v1792, %v1131
      %v1826 = vsel %vm1812, %v1793, %v1133
      %v1827 = vsel %vm1812, %v1794, %v1135
      %v1828 = vsel %vm1812, %v1795, %v1137
      %v1829 = vsel %vm1812, %v1796, %v1139
      %v1830 = vsel %vm1812, %v1797, %v1141
      %v1831 = vsel %vm1812, %v1798, %v1143
      %v1832 = vsel %vm1812, %v1799, %v1145
      %v1833 = vsel %vm1812, %v1800, %v1147
      %v1834 = vsel %vm1812, %v1801, %v1149
      %v1835 = vsel %vm1812, %v1802, %v1151
      %v1836 = vsel %vm1812, %v1803, %v1153
      %v1837 = vsel %vm1812, %v1804, %v1155
      %v1838 = vsel %vm1812, %v1805, %v1157
      %v1839 = vsel %vm1812, %v1806, %v1159
      %v1840 = vsel %vm1812, %v1807, %v1161
      %v1841 = vsel %vm1812, %v1808, %v1163
      %v1842 = vsel %vm1812, %v1809, %v1165
      %v1843 = vsel %vm1812, %v1810, %v1167
      %v1844 = vsel %vm1812, %v1811, %v1169
      %vm1845 = vcmask 326656
      %v1846 = vsel %vm1845, %v1813, %v1235
      %v1847 = vsel %vm1845, %v1814, %v1237
      %v1848 = vsel %vm1845, %v1815, %v1239
      %v1849 = vsel %vm1845, %v1816, %v1241
      %v1850 = vsel %vm1845, %v1817, %v1243
      %v1851 = vsel %vm1845, %v1818, %v1245
      %v1852 = vsel %vm1845, %v1819, %v1247
      %v1853 = vsel %vm1845, %v1820, %v1249
      %v1854 = vsel %vm1845, %v1821, %v1251
      %v1855 = vsel %vm1845, %v1822, %v1253
      %v1856 = vsel %vm1845, %v1823, %v1255
      %v1857 = vsel %vm1845, %v1824, %v1257
      %v1858 = vsel %vm1845, %v1825, %v1259
      %v1859 = vsel %vm1845, %v1826, %v1261
      %v1860 = vsel %vm1845, %v1827, %v1263
      %v1861 = vsel %vm1845, %v1828, %v1265
      %v1862 = vsel %vm1845, %v1829, %v1267
      %v1863 = vsel %vm1845, %v1830, %v1269
      %v1864 = vsel %vm1845, %v1831, %v1271
      %v1865 = vsel %vm1845, %v1832, %v1273
      %v1866 = vsel %vm1845, %v1833, %v1275
      %v1867 = vsel %vm1845, %v1834, %v1277
      %v1868 = vsel %vm1845, %v1835, %v1279
      %v1869 = vsel %vm1845, %v1836, %v1281
      %v1870 = vsel %vm1845, %v1837, %v1283
      %v1871 = vsel %vm1845, %v1838, %v1285
      %v1872 = vsel %vm1845, %v1839, %v1287
      %v1873 = vsel %vm1845, %v1840, %v1289
      %v1874 = vsel %vm1845, %v1841, %v1291
      %v1875 = vsel %vm1845, %v1842, %v1293
      %v1876 = vsel %vm1845, %v1843, %v1295
      %v1877 = vsel %vm1845, %v1844, %v1297
      %vm1878 = vcmask 392192
      %v1879 = vsel %vm1878, %v1846, %v1363
      %v1880 = vsel %vm1878, %v1847, %v1365
      %v1881 = vsel %vm1878, %v1848, %v1367
      %v1882 = vsel %vm1878, %v1849, %v1369
      %v1883 = vsel %vm1878, %v1850, %v1371
      %v1884 = vsel %vm1878, %v1851, %v1373
      %v1885 = vsel %vm1878, %v1852, %v1375
      %v1886 = vsel %vm1878, %v1853, %v1377
      %v1887 = vsel %vm1878, %v1854, %v1379
      %v1888 = vsel %vm1878, %v1855, %v1381
      %v1889 = vsel %vm1878, %v1856, %v1383
      %v1890 = vsel %vm1878, %v1857, %v1385
      %v1891 = vsel %vm1878, %v1858, %v1387
      %v1892 = vsel %vm1878, %v1859, %v1389
      %v1893 = vsel %vm1878, %v1860, %v1391
      %v1894 = vsel %vm1878, %v1861, %v1393
      %v1895 = vsel %vm1878, %v1862, %v1395
      %v1896 = vsel %vm1878, %v1863, %v1397
      %v1897 = vsel %vm1878, %v1864, %v1399
      %v1898 = vsel %vm1878, %v1865, %v1401
      %v1899 = vsel %vm1878, %v1866, %v1403
      %v1900 = vsel %vm1878, %v1867, %v1405
      %v1901 = vsel %vm1878, %v1868, %v1407
      %v1902 = vsel %vm1878, %v1869, %v1409
      %v1903 = vsel %vm1878, %v1870, %v1411
      %v1904 = vsel %vm1878, %v1871, %v1413
      %v1905 = vsel %vm1878, %v1872, %v1415
      %v1906 = vsel %vm1878, %v1873, %v1417
      %v1907 = vsel %vm1878, %v1874, %v1419
      %v1908 = vsel %vm1878, %v1875, %v1421
      %v1909 = vsel %vm1878, %v1876, %v1423
      %v1910 = vsel %vm1878, %v1877, %v1425
      %vm1911 = vcmask 457728
      %v1912 = vsel %vm1911, %v1879, %v1491
      %v1913 = vsel %vm1911, %v1880, %v1493
      %v1914 = vsel %vm1911, %v1881, %v1495
      %v1915 = vsel %vm1911, %v1882, %v1497
      %v1916 = vsel %vm1911, %v1883, %v1499
      %v1917 = vsel %vm1911, %v1884, %v1501
      %v1918 = vsel %vm1911, %v1885, %v1503
      %v1919 = vsel %vm1911, %v1886, %v1505
      %v1920 = vsel %vm1911, %v1887, %v1507
      %v1921 = vsel %vm1911, %v1888, %v1509
      %v1922 = vsel %vm1911, %v1889, %v1511
      %v1923 = vsel %vm1911, %v1890, %v1513
      %v1924 = vsel %vm1911, %v1891, %v1515
      %v1925 = vsel %vm1911, %v1892, %v1517
      %v1926 = vsel %vm1911, %v1893, %v1519
      %v1927 = vsel %vm1911, %v1894, %v1521
      %v1928 = vsel %vm1911, %v1895, %v1523
      %v1929 = vsel %vm1911, %v1896, %v1525
      %v1930 = vsel %vm1911, %v1897, %v1527
      %v1931 = vsel %vm1911, %v1898, %v1529
      %v1932 = vsel %vm1911, %v1899, %v1531
      %v1933 = vsel %vm1911, %v1900, %v1533
      %v1934 = vsel %vm1911, %v1901, %v1535
      %v1935 = vsel %vm1911, %v1902, %v1537
      %v1936 = vsel %vm1911, %v1903, %v1539
      %v1937 = vsel %vm1911, %v1904, %v1541
      %v1938 = vsel %vm1911, %v1905, %v1543
      %v1939 = vsel %vm1911, %v1906, %v1545
      %v1940 = vsel %vm1911, %v1907, %v1547
      %v1941 = vsel %vm1911, %v1908, %v1549
      %v1942 = vsel %vm1911, %v1909, %v1551
      %v1943 = vsel %vm1911, %v1910, %v1553
      %vm1944 = vcmask 523264
      %v1945 = vsel %vm1944, %v1912, %v1619
      %v1946 = vsel %vm1944, %v1913, %v1621
      %v1947 = vsel %vm1944, %v1914, %v1623
      %v1948 = vsel %vm1944, %v1915, %v1625
      %v1949 = vsel %vm1944, %v1916, %v1627
      %v1950 = vsel %vm1944, %v1917, %v1629
      %v1951 = vsel %vm1944, %v1918, %v1631
      %v1952 = vsel %vm1944, %v1919, %v1633
      %v1953 = vsel %vm1944, %v1920, %v1635
      %v1954 = vsel %vm1944, %v1921, %v1637
      %v1955 = vsel %vm1944, %v1922, %v1639
      %v1956 = vsel %vm1944, %v1923, %v1641
      %v1957 = vsel %vm1944, %v1924, %v1643
      %v1958 = vsel %vm1944, %v1925, %v1645
      %v1959 = vsel %vm1944, %v1926, %v1647
      %v1960 = vsel %vm1944, %v1927, %v1649
      %v1961 = vsel %vm1944, %v1928, %v1651
      %v1962 = vsel %vm1944, %v1929, %v1653
      %v1963 = vsel %vm1944, %v1930, %v1655
      %v1964 = vsel %vm1944, %v1931, %v1657
      %v1965 = vsel %vm1944, %v1932, %v1659
      %v1966 = vsel %vm1944, %v1933, %v1661
      %v1967 = vsel %vm1944, %v1934, %v1663
      %v1968 = vsel %vm1944, %v1935, %v1665
      %v1969 = vsel %vm1944, %v1936, %v1667
      %v1970 = vsel %vm1944, %v1937, %v1669
      %v1971 = vsel %vm1944, %v1938, %v1671
      %v1972 = vsel %vm1944, %v1939, %v1673
      %v1973 = vsel %vm1944, %v1940, %v1675
      %v1974 = vsel %vm1944, %v1941, %v1677
      %v1975 = vsel %vm1944, %v1942, %v1679
      %v1976 = vsel %vm1944, %v1943, %v1681
      %v1977 = vpack.c.bf16 %v1946, %v1945
      %v1978 = vpack.c.bf16 %v1948, %v1947
      %v1979 = vpack.c.bf16 %v1950, %v1949
      %v1980 = vpack.c.bf16 %v1952, %v1951
      %v1981 = vpack.c.bf16 %v1954, %v1953
      %v1982 = vpack.c.bf16 %v1956, %v1955
      %v1983 = vpack.c.bf16 %v1958, %v1957
      %v1984 = vpack.c.bf16 %v1960, %v1959
      %v1985 = vpack.c.bf16 %v1962, %v1961
      %v1986 = vpack.c.bf16 %v1964, %v1963
      %v1987 = vpack.c.bf16 %v1966, %v1965
      %v1988 = vpack.c.bf16 %v1968, %v1967
      %v1989 = vpack.c.bf16 %v1970, %v1969
      %v1990 = vpack.c.bf16 %v1972, %v1971
      %v1991 = vpack.c.bf16 %v1974, %v1973
      %v1992 = vpack.c.bf16 %v1976, %v1975
      %v1993 = vld [vmem:[%s1] sm:$0xf]
      %v1994 = vld [vmem:[%s1 + $0x4] sm:$0xf]
      %v1995 = vld [vmem:[%s1 + $0x8] sm:$0xf]
      %v1996 = vld [vmem:[%s1 + $0xc] sm:$0xf]
      %v1997 = vld [vmem:[%s1 + $0x10] sm:$0xf]
      %v1998 = vld [vmem:[%s1 + $0x14] sm:$0xf]
      %v1999 = vld [vmem:[%s1 + $0x18] sm:$0xf]
      %v2000 = vld [vmem:[%s1 + $0x1c] sm:$0xf]
      %v2001 = vld [vmem:[%s1 + $0x20] sm:$0xf]
      %v2002 = vld [vmem:[%s2] sm:$0x1]
      %v2004 = vperm.slane %v2002, 0
      %v2015 = vunpack.c.l.b16 %v1993
      %v2016 = vunpack.c.l.b16 %v1994
      %v2017 = vunpack.c.l.b16 %v1995
      %v2018 = vunpack.c.l.b16 %v1996
      %v2019 = vunpack.c.l.b16 %v1997
      %v2020 = vunpack.c.l.b16 %v1998
      %v2021 = vunpack.c.l.b16 %v1999
      %v2022 = vunpack.c.l.b16 %v2000
      %v2023 = vunpack.c.l.b16 %v2001
      %v2024 = vpack.c.b16 %v2016, %v2015
      %v2025 = vpack.c.b16 %v2018, %v2017
      %v2026 = vpack.c.b16 %v2020, %v2019
      %v2027 = vpack.c.b16 %v2022, %v2021
      %v2028 = vpack.c.b16 %v2023, %v2023
      %vm2033 = vcmask 588800
      %v2035 = vsel %vm2033, %v1977, 0
      %v2038 = vsel %vm2033, %v1978, 0
      %v2041 = vsel %vm2033, %v1979, 0
      %v2044 = vsel %vm2033, %v1980, 0
      %v2047 = vsel %vm2033, %v1981, 0
      %v2050 = vsel %vm2033, %v1982, 0
      %v2053 = vsel %vm2033, %v1983, 0
      %v2056 = vsel %vm2033, %v1984, 0
      %v2059 = vsel %vm2033, %v1985, 0
      %v2062 = vsel %vm2033, %v1986, 0
      %v2065 = vsel %vm2033, %v1987, 0
      %v2068 = vsel %vm2033, %v1988, 0
      %v2071 = vsel %vm2033, %v1989, 0
      %v2074 = vsel %vm2033, %v1990, 0
      %v2077 = vsel %vm2033, %v1991, 0
      %v2080 = vsel %vm2033, %v1992, 0
      %vm2082 = vcmask 1043456
      %v2084 = vsel %vm2082, %v2028, 0
      %2086 = vmatpush.bf16.msra.mxu0 0
      %2087 = vmatpush.bf16.msra.mxu0 0
      %2088 = vmatpush.bf16.msra.mxu0 0
      %2089 = vmatpush.bf16.msra.mxu0 %v2084
      %2090 = vmatpush.bf16.msra.mxu0 %v2027
      %2091 = vmatpush.bf16.msra.mxu0 %v2026
      %2092 = vmatpush.bf16.msra.mxu0 %v2025
      %2093 = vmatpush.bf16.msra.mxu0 %v2024
      %2094 = vmatmul.bf16.gmra.mxu0 %v2035
      %v2095 = vpop.f32.mrf.mxu0
      %v2096 = vadd.f32 %v2004, %v2095
      %v2097 = vpop.f32.mrf.mxu0
      %v2098 = vadd.f32 %v2004, %v2097
      %2099 = vmatmul.bf16.gmra.mxu0 %v2038
      %v2100 = vpop.f32.mrf.mxu0
      %v2101 = vadd.f32 %v2004, %v2100
      %v2102 = vpop.f32.mrf.mxu0
      %v2103 = vadd.f32 %v2004, %v2102
      %2104 = vmatmul.bf16.gmra.mxu0 %v2041
      %v2105 = vpop.f32.mrf.mxu0
      %v2106 = vadd.f32 %v2004, %v2105
      %v2107 = vpop.f32.mrf.mxu0
      %v2108 = vadd.f32 %v2004, %v2107
      %2109 = vmatmul.bf16.gmra.mxu0 %v2044
      %v2110 = vpop.f32.mrf.mxu0
      %v2111 = vadd.f32 %v2004, %v2110
      %v2112 = vpop.f32.mrf.mxu0
      %v2113 = vadd.f32 %v2004, %v2112
      %2114 = vmatmul.bf16.gmra.mxu0 %v2047
      %v2115 = vpop.f32.mrf.mxu0
      %v2116 = vadd.f32 %v2004, %v2115
      %v2117 = vpop.f32.mrf.mxu0
      %v2118 = vadd.f32 %v2004, %v2117
      %2119 = vmatmul.bf16.gmra.mxu0 %v2050
      %v2120 = vpop.f32.mrf.mxu0
      %v2121 = vadd.f32 %v2004, %v2120
      %v2122 = vpop.f32.mrf.mxu0
      %v2123 = vadd.f32 %v2004, %v2122
      %2124 = vmatmul.bf16.gmra.mxu0 %v2053
      %v2125 = vpop.f32.mrf.mxu0
      %v2126 = vadd.f32 %v2004, %v2125
      %v2127 = vpop.f32.mrf.mxu0
      %v2128 = vadd.f32 %v2004, %v2127
      %2129 = vmatmul.bf16.gmra.mxu0 %v2056
      %v2130 = vpop.f32.mrf.mxu0
      %v2131 = vadd.f32 %v2004, %v2130
      %v2132 = vpop.f32.mrf.mxu0
      %v2133 = vadd.f32 %v2004, %v2132
      %2134 = vmatmul.bf16.gmra.mxu0 %v2059
      %v2135 = vpop.f32.mrf.mxu0
      %v2136 = vadd.f32 %v2004, %v2135
      %v2137 = vpop.f32.mrf.mxu0
      %v2138 = vadd.f32 %v2004, %v2137
      %2139 = vmatmul.bf16.gmra.mxu0 %v2062
      %v2140 = vpop.f32.mrf.mxu0
      %v2141 = vadd.f32 %v2004, %v2140
      %v2142 = vpop.f32.mrf.mxu0
      %v2143 = vadd.f32 %v2004, %v2142
      %2144 = vmatmul.bf16.gmra.mxu0 %v2065
      %v2145 = vpop.f32.mrf.mxu0
      %v2146 = vadd.f32 %v2004, %v2145
      %v2147 = vpop.f32.mrf.mxu0
      %v2148 = vadd.f32 %v2004, %v2147
      %2149 = vmatmul.bf16.gmra.mxu0 %v2068
      %v2150 = vpop.f32.mrf.mxu0
      %v2151 = vadd.f32 %v2004, %v2150
      %v2152 = vpop.f32.mrf.mxu0
      %v2153 = vadd.f32 %v2004, %v2152
      %2154 = vmatmul.bf16.gmra.mxu0 %v2071
      %v2155 = vpop.f32.mrf.mxu0
      %v2156 = vadd.f32 %v2004, %v2155
      %v2157 = vpop.f32.mrf.mxu0
      %v2158 = vadd.f32 %v2004, %v2157
      %2159 = vmatmul.bf16.gmra.mxu0 %v2074
      %v2160 = vpop.f32.mrf.mxu0
      %v2161 = vadd.f32 %v2004, %v2160
      %v2162 = vpop.f32.mrf.mxu0
      %v2163 = vadd.f32 %v2004, %v2162
      %2164 = vmatmul.bf16.gmra.mxu0 %v2077
      %v2165 = vpop.f32.mrf.mxu0
      %v2166 = vadd.f32 %v2004, %v2165
      %v2167 = vpop.f32.mrf.mxu0
      %v2168 = vadd.f32 %v2004, %v2167
      %2169 = vmatmul.bf16.gmra.mxu0 %v2080
      %v2170 = vpop.f32.mrf.mxu0
      %v2171 = vadd.f32 %v2004, %v2170
      %v2172 = vpop.f32.mrf.mxu0
      %v2173 = vadd.f32 %v2004, %v2172
      %2174 = vdwg.mxu0
      %v2175 = vmax.f32 %v2096, 0.0
      %v2176 = vmax.f32 %v2098, 0.0
      %v2177 = vmax.f32 %v2101, 0.0
      %v2178 = vmax.f32 %v2103, 0.0
      %v2179 = vmax.f32 %v2106, 0.0
      %v2180 = vmax.f32 %v2108, 0.0
      %v2181 = vmax.f32 %v2111, 0.0
      %v2182 = vmax.f32 %v2113, 0.0
      %v2183 = vmax.f32 %v2116, 0.0
      %v2184 = vmax.f32 %v2118, 0.0
      %v2185 = vmax.f32 %v2121, 0.0
      %v2186 = vmax.f32 %v2123, 0.0
      %v2187 = vmax.f32 %v2126, 0.0
      %v2188 = vmax.f32 %v2128, 0.0
      %v2189 = vmax.f32 %v2131, 0.0
      %v2190 = vmax.f32 %v2133, 0.0
      %v2191 = vmax.f32 %v2136, 0.0
      %v2192 = vmax.f32 %v2138, 0.0
      %v2193 = vmax.f32 %v2141, 0.0
      %v2194 = vmax.f32 %v2143, 0.0
      %v2195 = vmax.f32 %v2146, 0.0
      %v2196 = vmax.f32 %v2148, 0.0
      %v2197 = vmax.f32 %v2151, 0.0
      %v2198 = vmax.f32 %v2153, 0.0
      %v2199 = vmax.f32 %v2156, 0.0
      %v2200 = vmax.f32 %v2158, 0.0
      %v2201 = vmax.f32 %v2161, 0.0
      %v2202 = vmax.f32 %v2163, 0.0
      %v2203 = vmax.f32 %v2166, 0.0
      %v2204 = vmax.f32 %v2168, 0.0
      %v2205 = vmax.f32 %v2171, 0.0
      %v2206 = vmax.f32 %v2173, 0.0
      %vm2207 = vcmask 31744
      %2208 = vst.msk [vmem:[#allocation3] sm:$0xff] %vm2207, 0.0
      %2209 = vst.msk [vmem:[#allocation3 + $0x8] sm:$0xff] %vm2207, 0.0
      %vm2210 = vcmask 25600
      %2211 = vst.msk [vmem:[#allocation3 + $0x10] sm:$0x3] %vm2210, 0.0
      %2212 = vst.msk [vmem:[#allocation3 + $0x18] sm:$0xff] %vm2207, 0.0
      %2213 = vst.msk [vmem:[#allocation3 + $0x20] sm:$0xff] %vm2207, 0.0
      %2214 = vst.msk [vmem:[#allocation3 + $0x28] sm:$0x3] %vm2210, 0.0
      %2215 = vst.msk [vmem:[#allocation3 + $0x30] sm:$0xff] %vm2207, 0.0
      %2216 = vst.msk [vmem:[#allocation3 + $0x38] sm:$0xff] %vm2207, 0.0
      %2217 = vst.msk [vmem:[#allocation3 + $0x40] sm:$0x3] %vm2210, 0.0
      %2218 = vst.msk [vmem:[#allocation3 + $0x48] sm:$0xff] %vm2207, 0.0
      %2219 = vst.msk [vmem:[#allocation3 + $0x50] sm:$0xff] %vm2207, 0.0
      %2220 = vst.msk [vmem:[#allocation3 + $0x58] sm:$0x3] %vm2210, 0.0
      %2221 = vst.msk [vmem:[#allocation3 + $0x60] sm:$0xff] %vm2207, 0.0
      %2222 = vst.msk [vmem:[#allocation3 + $0x68] sm:$0xff] %vm2207, 0.0
      %2223 = vst.msk [vmem:[#allocation3 + $0x70] sm:$0x3] %vm2210, 0.0
      %2224 = vst.msk [vmem:[#allocation3 + $0x78] sm:$0xff] %vm2207, 0.0
      %2225 = vst.msk [vmem:[#allocation3 + $0x80] sm:$0xff] %vm2207, 0.0
      %2226 = vst.msk [vmem:[#allocation3 + $0x88] sm:$0x3] %vm2210, 0.0
      %2227 = vst.msk [vmem:[#allocation3 + $0x90] sm:$0xff] %vm2207, 0.0
      %2228 = vst.msk [vmem:[#allocation3 + $0x98] sm:$0xff] %vm2207, 0.0
      %2229 = vst.msk [vmem:[#allocation3 + $0xa0] sm:$0x3] %vm2210, 0.0
      %2230 = vst.msk [vmem:[#allocation3 + $0xa8] sm:$0xff] %vm2207, 0.0
      %2231 = vst.msk [vmem:[#allocation3 + $0xb0] sm:$0xff] %vm2207, 0.0
      %2232 = vst.msk [vmem:[#allocation3 + $0xb8] sm:$0x3] %vm2210, 0.0
      %2233 = vst.msk [vmem:[#allocation3 + $0xc0] sm:$0xff] %vm2207, 0.0
      %2234 = vst.msk [vmem:[#allocation3 + $0xc8] sm:$0xff] %vm2207, 0.0
      %2235 = vst.msk [vmem:[#allocation3 + $0xd0] sm:$0x3] %vm2210, 0.0
      %2236 = vst.msk [vmem:[#allocation3 + $0xd8] sm:$0xff] %vm2207, 0.0
      %2237 = vst.msk [vmem:[#allocation3 + $0xe0] sm:$0xff] %vm2207, 0.0
      %2238 = vst.msk [vmem:[#allocation3 + $0xe8] sm:$0x3] %vm2210, 0.0
      %2239 = vst.msk [vmem:[#allocation3 + $0xf0] sm:$0xff] %vm2207, 0.0
      %2240 = vst.msk [vmem:[#allocation3 + $0xf8] sm:$0xff] %vm2207, 0.0
      %2241 = vst.msk [vmem:[#allocation3 + $0x100] sm:$0x3] %vm2210, 0.0
      %2242 = vst.msk [vmem:[#allocation3 + $0x108] sm:$0xff] %vm2207, 0.0
      %2243 = vst.msk [vmem:[#allocation3 + $0x110] sm:$0xff] %vm2207, 0.0
      %2244 = vst.msk [vmem:[#allocation3 + $0x118] sm:$0x3] %vm2210, 0.0
      %2245 = vst.msk [vmem:[#allocation3 + $0x120] sm:$0xff] %vm2207, 0.0
      %2246 = vst.msk [vmem:[#allocation3 + $0x128] sm:$0xff] %vm2207, 0.0
      %2247 = vst.msk [vmem:[#allocation3 + $0x130] sm:$0x3] %vm2210, 0.0
      %2248 = vst.msk [vmem:[#allocation3 + $0x138] sm:$0xff] %vm2207, 0.0
      %2249 = vst.msk [vmem:[#allocation3 + $0x140] sm:$0xff] %vm2207, 0.0
      %2250 = vst.msk [vmem:[#allocation3 + $0x148] sm:$0x3] %vm2210, 0.0
      %2251 = vst.msk [vmem:[#allocation3 + $0x150] sm:$0xff] %vm2207, 0.0
      %2252 = vst.msk [vmem:[#allocation3 + $0x158] sm:$0xff] %vm2207, 0.0
      %2253 = vst.msk [vmem:[#allocation3 + $0x160] sm:$0x3] %vm2210, 0.0
      %2254 = vst.msk [vmem:[#allocation3 + $0x168] sm:$0xff] %vm2207, 0.0
      %2255 = vst.msk [vmem:[#allocation3 + $0x170] sm:$0xff] %vm2207, 0.0
      %2256 = vst.msk [vmem:[#allocation3 + $0x178] sm:$0x3] %vm2210, 0.0
      %2257 = vst.msk [vmem:[#allocation3 + $0x180] sm:$0xff] %vm2207, 0.0
      %2258 = vst.msk [vmem:[#allocation3 + $0x188] sm:$0xff] %vm2207, 0.0
      %2259 = vst.msk [vmem:[#allocation3 + $0x190] sm:$0x3] %vm2210, 0.0
      %2260 = vst.msk [vmem:[#allocation3 + $0x198] sm:$0xff] %vm2207, 0.0
      %2261 = vst.msk [vmem:[#allocation3 + $0x1a0] sm:$0xff] %vm2207, 0.0
      %2262 = vst.msk [vmem:[#allocation3 + $0x1a8] sm:$0x3] %vm2210, 0.0
      %s2263 = scalar_lea.vmem [#allocation3], 24
      %2264 = vst.msk [vmem:[%s2263 + $0x1] sm:$0xff] %vm2207, %v2175
      %2265 = vst.msk [vmem:[%s2263 + $0x9] sm:$0xff] %vm2207, %v2176
      %2266 = vst.msk [vmem:[%s2263 + $0x19] sm:$0xff] %vm2207, %v2177
      %2267 = vst.msk [vmem:[%s2263 + $0x21] sm:$0xff] %vm2207, %v2178
      %2268 = vst.msk [vmem:[%s2263 + $0x31] sm:$0xff] %vm2207, %v2179
      %2269 = vst.msk [vmem:[%s2263 + $0x39] sm:$0xff] %vm2207, %v2180
      %2270 = vst.msk [vmem:[%s2263 + $0x49] sm:$0xff] %vm2207, %v2181
      %2271 = vst.msk [vmem:[%s2263 + $0x51] sm:$0xff] %vm2207, %v2182
      %2272 = vst.msk [vmem:[%s2263 + $0x61] sm:$0xff] %vm2207, %v2183
      %2273 = vst.msk [vmem:[%s2263 + $0x69] sm:$0xff] %vm2207, %v2184
      %2274 = vst.msk [vmem:[%s2263 + $0x79] sm:$0xff] %vm2207, %v2185
      %2275 = vst.msk [vmem:[%s2263 + $0x81] sm:$0xff] %vm2207, %v2186
      %2276 = vst.msk [vmem:[%s2263 + $0x91] sm:$0xff] %vm2207, %v2187
      %2277 = vst.msk [vmem:[%s2263 + $0x99] sm:$0xff] %vm2207, %v2188
      %2278 = vst.msk [vmem:[%s2263 + $0xa9] sm:$0xff] %vm2207, %v2189
      %2279 = vst.msk [vmem:[%s2263 + $0xb1] sm:$0xff] %vm2207, %v2190
      %2280 = vst.msk [vmem:[%s2263 + $0xc1] sm:$0xff] %vm2207, %v2191
      %2281 = vst.msk [vmem:[%s2263 + $0xc9] sm:$0xff] %vm2207, %v2192
      %2282 = vst.msk [vmem:[%s2263 + $0xd9] sm:$0xff] %vm2207, %v2193
      %2283 = vst.msk [vmem:[%s2263 + $0xe1] sm:$0xff] %vm2207, %v2194
      %2284 = vst.msk [vmem:[%s2263 + $0xf1] sm:$0xff] %vm2207, %v2195
      %2285 = vst.msk [vmem:[%s2263 + $0xf9] sm:$0xff] %vm2207, %v2196
      %2286 = vst.msk [vmem:[%s2263 + $0x109] sm:$0xff] %vm2207, %v2197
      %2287 = vst.msk [vmem:[%s2263 + $0x111] sm:$0xff] %vm2207, %v2198
      %2288 = vst.msk [vmem:[%s2263 + $0x121] sm:$0xff] %vm2207, %v2199
      %2289 = vst.msk [vmem:[%s2263 + $0x129] sm:$0xff] %vm2207, %v2200
      %2290 = vst.msk [vmem:[%s2263 + $0x139] sm:$0xff] %vm2207, %v2201
      %2291 = vst.msk [vmem:[%s2263 + $0x141] sm:$0xff] %vm2207, %v2202
      %2292 = vst.msk [vmem:[%s2263 + $0x151] sm:$0xff] %vm2207, %v2203
      %2293 = vst.msk [vmem:[%s2263 + $0x159] sm:$0xff] %vm2207, %v2204
      %2294 = vst.msk [vmem:[%s2263 + $0x169] sm:$0xff] %vm2207, %v2205
      %2295 = vst.msk [vmem:[%s2263 + $0x171] sm:$0xff] %vm2207, %v2206
      %v2296 = vld [vmem:[#allocation3] sm:$0xff]
      %v2297 = vld [vmem:[#allocation3 + $0x8] sm:$0xff]
      %v2298 = vld [vmem:[#allocation3 + $0x18] sm:$0xff]
      %v2299 = vld [vmem:[#allocation3 + $0x20] sm:$0xff]
      %v2300 = vld [vmem:[#allocation3 + $0x30] sm:$0xff]
      %v2301 = vld [vmem:[#allocation3 + $0x38] sm:$0xff]
      %v2302 = vld [vmem:[#allocation3 + $0x48] sm:$0xff]
      %v2303 = vld [vmem:[#allocation3 + $0x50] sm:$0xff]
      %v2304 = vld [vmem:[#allocation3 + $0x60] sm:$0xff]
      %v2305 = vld [vmem:[#allocation3 + $0x68] sm:$0xff]
      %v2306 = vld [vmem:[#allocation3 + $0x78] sm:$0xff]
      %v2307 = vld [vmem:[#allocation3 + $0x80] sm:$0xff]
      %v2308 = vld [vmem:[#allocation3 + $0x90] sm:$0xff]
      %v2309 = vld [vmem:[#allocation3 + $0x98] sm:$0xff]
      %v2310 = vld [vmem:[#allocation3 + $0xa8] sm:$0xff]
      %v2311 = vld [vmem:[#allocation3 + $0xb0] sm:$0xff]
      %v2312 = vld [vmem:[#allocation3 + $0xc0] sm:$0xff]
      %v2313 = vld [vmem:[#allocation3 + $0xc8] sm:$0xff]
      %v2314 = vld [vmem:[#allocation3 + $0xd8] sm:$0xff]
      %v2315 = vld [vmem:[#allocation3 + $0xe0] sm:$0xff]
      %v2316 = vld [vmem:[#allocation3 + $0xf0] sm:$0xff]
      %v2317 = vld [vmem:[#allocation3 + $0xf8] sm:$0xff]
      %v2318 = vld [vmem:[#allocation3 + $0x108] sm:$0xff]
      %v2319 = vld [vmem:[#allocation3 + $0x110] sm:$0xff]
      %v2320 = vld [vmem:[#allocation3 + $0x120] sm:$0xff]
      %v2321 = vld [vmem:[#allocation3 + $0x128] sm:$0xff]
      %v2322 = vld [vmem:[#allocation3 + $0x138] sm:$0xff]
      %v2323 = vld [vmem:[#allocation3 + $0x140] sm:$0xff]
      %v2324 = vld [vmem:[#allocation3 + $0x150] sm:$0xff]
      %v2325 = vld [vmem:[#allocation3 + $0x158] sm:$0xff]
      %v2326 = vld [vmem:[#allocation3 + $0x168] sm:$0xff]
      %v2327 = vld [vmem:[#allocation3 + $0x170] sm:$0xff]
      %v2328 = vld [vmem:[#allocation3 + $0x1] sm:$0xff]
      %v2329 = vld [vmem:[#allocation3 + $0x9] sm:$0xff]
      %v2330 = vld [vmem:[#allocation3 + $0x19] sm:$0xff]
      %v2331 = vld [vmem:[#allocation3 + $0x21] sm:$0xff]
      %v2332 = vld [vmem:[#allocation3 + $0x31] sm:$0xff]
      %v2333 = vld [vmem:[#allocation3 + $0x39] sm:$0xff]
      %v2334 = vld [vmem:[#allocation3 + $0x49] sm:$0xff]
      %v2335 = vld [vmem:[#allocation3 + $0x51] sm:$0xff]
      %v2336 = vld [vmem:[#allocation3 + $0x61] sm:$0xff]
      %v2337 = vld [vmem:[#allocation3 + $0x69] sm:$0xff]
      %v2338 = vld [vmem:[#allocation3 + $0x79] sm:$0xff]
      %v2339 = vld [vmem:[#allocation3 + $0x81] sm:$0xff]
      %v2340 = vld [vmem:[#allocation3 + $0x91] sm:$0xff]
      %v2341 = vld [vmem:[#allocation3 + $0x99] sm:$0xff]
      %v2342 = vld [vmem:[#allocation3 + $0xa9] sm:$0xff]
      %v2343 = vld [vmem:[#allocation3 + $0xb1] sm:$0xff]
      %v2344 = vld [vmem:[#allocation3 + $0xc1] sm:$0xff]
      %v2345 = vld [vmem:[#allocation3 + $0xc9] sm:$0xff]
      %v2346 = vld [vmem:[#allocation3 + $0xd9] sm:$0xff]
      %v2347 = vld [vmem:[#allocation3 + $0xe1] sm:$0xff]
      %v2348 = vld [vmem:[#allocation3 + $0xf1] sm:$0xff]
      %v2349 = vld [vmem:[#allocation3 + $0xf9] sm:$0xff]
      %v2350 = vld [vmem:[#allocation3 + $0x109] sm:$0xff]
      %v2351 = vld [vmem:[#allocation3 + $0x111] sm:$0xff]
      %v2352 = vld [vmem:[#allocation3 + $0x121] sm:$0xff]
      %v2353 = vld [vmem:[#allocation3 + $0x129] sm:$0xff]
      %v2354 = vld [vmem:[#allocation3 + $0x139] sm:$0xff]
      %v2355 = vld [vmem:[#allocation3 + $0x141] sm:$0xff]
      %v2356 = vld [vmem:[#allocation3 + $0x151] sm:$0xff]
      %v2357 = vld [vmem:[#allocation3 + $0x159] sm:$0xff]
      %v2358 = vld [vmem:[#allocation3 + $0x169] sm:$0xff]
      %v2359 = vld [vmem:[#allocation3 + $0x171] sm:$0xff]
      %v2360 = vld [vmem:[#allocation3 + $0x2] sm:$0xff]
      %v2361 = vld [vmem:[#allocation3 + $0xa] sm:$0xff]
      %v2362 = vld [vmem:[#allocation3 + $0x1a] sm:$0xff]
      %v2363 = vld [vmem:[#allocation3 + $0x22] sm:$0xff]
      %v2364 = vld [vmem:[#allocation3 + $0x32] sm:$0xff]
      %v2365 = vld [vmem:[#allocation3 + $0x3a] sm:$0xff]
      %v2366 = vld [vmem:[#allocation3 + $0x4a] sm:$0xff]
      %v2367 = vld [vmem:[#allocation3 + $0x52] sm:$0xff]
      %v2368 = vld [vmem:[#allocation3 + $0x62] sm:$0xff]
      %v2369 = vld [vmem:[#allocation3 + $0x6a] sm:$0xff]
      %v2370 = vld [vmem:[#allocation3 + $0x7a] sm:$0xff]
      %v2371 = vld [vmem:[#allocation3 + $0x82] sm:$0xff]
      %v2372 = vld [vmem:[#allocation3 + $0x92] sm:$0xff]
      %v2373 = vld [vmem:[#allocation3 + $0x9a] sm:$0xff]
      %v2374 = vld [vmem:[#allocation3 + $0xaa] sm:$0xff]
      %v2375 = vld [vmem:[#allocation3 + $0xb2] sm:$0xff]
      %v2376 = vld [vmem:[#allocation3 + $0xc2] sm:$0xff]
      %v2377 = vld [vmem:[#allocation3 + $0xca] sm:$0xff]
      %v2378 = vld [vmem:[#allocation3 + $0xda] sm:$0xff]
      %v2379 = vld [vmem:[#allocation3 + $0xe2] sm:$0xff]
      %v2380 = vld [vmem:[#allocation3 + $0xf2] sm:$0xff]
      %v2381 = vld [vmem:[#allocation3 + $0xfa] sm:$0xff]
      %v2382 = vld [vmem:[#allocation3 + $0x10a] sm:$0xff]
      %v2383 = vld [vmem:[#allocation3 + $0x112] sm:$0xff]
      %v2384 = vld [vmem:[#allocation3 + $0x122] sm:$0xff]
      %v2385 = vld [vmem:[#allocation3 + $0x12a] sm:$0xff]
      %v2386 = vld [vmem:[#allocation3 + $0x13a] sm:$0xff]
      %v2387 = vld [vmem:[#allocation3 + $0x142] sm:$0xff]
      %v2388 = vld [vmem:[#allocation3 + $0x152] sm:$0xff]
      %v2389 = vld [vmem:[#allocation3 + $0x15a] sm:$0xff]
      %v2390 = vld [vmem:[#allocation3 + $0x16a] sm:$0xff]
      %v2391 = vld [vmem:[#allocation3 + $0x172] sm:$0xff]
      %v2392 = vld [vmem:[%s2263] sm:$0xff]
      %v2393 = vld [vmem:[%s2263 + $0x8] sm:$0xff]
      %v2394 = vld [vmem:[%s2263 + $0x18] sm:$0xff]
      %v2395 = vld [vmem:[%s2263 + $0x20] sm:$0xff]
      %v2396 = vld [vmem:[%s2263 + $0x30] sm:$0xff]
      %v2397 = vld [vmem:[%s2263 + $0x38] sm:$0xff]
      %v2398 = vld [vmem:[%s2263 + $0x48] sm:$0xff]
      %v2399 = vld [vmem:[%s2263 + $0x50] sm:$0xff]
      %v2400 = vld [vmem:[%s2263 + $0x60] sm:$0xff]
      %v2401 = vld [vmem:[%s2263 + $0x68] sm:$0xff]
      %v2402 = vld [vmem:[%s2263 + $0x78] sm:$0xff]
      %v2403 = vld [vmem:[%s2263 + $0x80] sm:$0xff]
      %v2404 = vld [vmem:[%s2263 + $0x90] sm:$0xff]
      %v2405 = vld [vmem:[%s2263 + $0x98] sm:$0xff]
      %v2406 = vld [vmem:[%s2263 + $0xa8] sm:$0xff]
      %v2407 = vld [vmem:[%s2263 + $0xb0] sm:$0xff]
      %v2408 = vld [vmem:[%s2263 + $0xc0] sm:$0xff]
      %v2409 = vld [vmem:[%s2263 + $0xc8] sm:$0xff]
      %v2410 = vld [vmem:[%s2263 + $0xd8] sm:$0xff]
      %v2411 = vld [vmem:[%s2263 + $0xe0] sm:$0xff]
      %v2412 = vld [vmem:[%s2263 + $0xf0] sm:$0xff]
      %v2413 = vld [vmem:[%s2263 + $0xf8] sm:$0xff]
      %v2414 = vld [vmem:[%s2263 + $0x108] sm:$0xff]
      %v2415 = vld [vmem:[%s2263 + $0x110] sm:$0xff]
      %v2416 = vld [vmem:[%s2263 + $0x120] sm:$0xff]
      %v2417 = vld [vmem:[%s2263 + $0x128] sm:$0xff]
      %v2418 = vld [vmem:[%s2263 + $0x138] sm:$0xff]
      %v2419 = vld [vmem:[%s2263 + $0x140] sm:$0xff]
      %v2420 = vld [vmem:[%s2263 + $0x150] sm:$0xff]
      %v2421 = vld [vmem:[%s2263 + $0x158] sm:$0xff]
      %v2422 = vld [vmem:[%s2263 + $0x168] sm:$0xff]
      %v2423 = vld [vmem:[%s2263 + $0x170] sm:$0xff]
      %v2424 = vld [vmem:[%s2263 + $0x1] sm:$0xff]
      %v2425 = vld [vmem:[%s2263 + $0x9] sm:$0xff]
      %v2426 = vld [vmem:[%s2263 + $0x19] sm:$0xff]
      %v2427 = vld [vmem:[%s2263 + $0x21] sm:$0xff]
      %v2428 = vld [vmem:[%s2263 + $0x31] sm:$0xff]
      %v2429 = vld [vmem:[%s2263 + $0x39] sm:$0xff]
      %v2430 = vld [vmem:[%s2263 + $0x49] sm:$0xff]
      %v2431 = vld [vmem:[%s2263 + $0x51] sm:$0xff]
      %v2432 = vld [vmem:[%s2263 + $0x61] sm:$0xff]
      %v2433 = vld [vmem:[%s2263 + $0x69] sm:$0xff]
      %v2434 = vld [vmem:[%s2263 + $0x79] sm:$0xff]
      %v2435 = vld [vmem:[%s2263 + $0x81] sm:$0xff]
      %v2436 = vld [vmem:[%s2263 + $0x91] sm:$0xff]
      %v2437 = vld [vmem:[%s2263 + $0x99] sm:$0xff]
      %v2438 = vld [vmem:[%s2263 + $0xa9] sm:$0xff]
      %v2439 = vld [vmem:[%s2263 + $0xb1] sm:$0xff]
      %v2440 = vld [vmem:[%s2263 + $0xc1] sm:$0xff]
      %v2441 = vld [vmem:[%s2263 + $0xc9] sm:$0xff]
      %v2442 = vld [vmem:[%s2263 + $0xd9] sm:$0xff]
      %v2443 = vld [vmem:[%s2263 + $0xe1] sm:$0xff]
      %v2444 = vld [vmem:[%s2263 + $0xf1] sm:$0xff]
      %v2445 = vld [vmem:[%s2263 + $0xf9] sm:$0xff]
      %v2446 = vld [vmem:[%s2263 + $0x109] sm:$0xff]
      %v2447 = vld [vmem:[%s2263 + $0x111] sm:$0xff]
      %v2448 = vld [vmem:[%s2263 + $0x121] sm:$0xff]
      %v2449 = vld [vmem:[%s2263 + $0x129] sm:$0xff]
      %v2450 = vld [vmem:[%s2263 + $0x139] sm:$0xff]
      %v2451 = vld [vmem:[%s2263 + $0x141] sm:$0xff]
      %v2452 = vld [vmem:[%s2263 + $0x151] sm:$0xff]
      %v2453 = vld [vmem:[%s2263 + $0x159] sm:$0xff]
      %v2454 = vld [vmem:[%s2263 + $0x169] sm:$0xff]
      %v2455 = vld [vmem:[%s2263 + $0x171] sm:$0xff]
      %v2456 = vld [vmem:[%s2263 + $0x2] sm:$0xff]
      %v2457 = vld [vmem:[%s2263 + $0xa] sm:$0xff]
      %v2458 = vld [vmem:[%s2263 + $0x1a] sm:$0xff]
      %v2459 = vld [vmem:[%s2263 + $0x22] sm:$0xff]
      %v2460 = vld [vmem:[%s2263 + $0x32] sm:$0xff]
      %v2461 = vld [vmem:[%s2263 + $0x3a] sm:$0xff]
      %v2462 = vld [vmem:[%s2263 + $0x4a] sm:$0xff]
      %v2463 = vld [vmem:[%s2263 + $0x52] sm:$0xff]
      %v2464 = vld [vmem:[%s2263 + $0x62] sm:$0xff]
      %v2465 = vld [vmem:[%s2263 + $0x6a] sm:$0xff]
      %v2466 = vld [vmem:[%s2263 + $0x7a] sm:$0xff]
      %v2467 = vld [vmem:[%s2263 + $0x82] sm:$0xff]
      %v2468 = vld [vmem:[%s2263 + $0x92] sm:$0xff]
      %v2469 = vld [vmem:[%s2263 + $0x9a] sm:$0xff]
      %v2470 = vld [vmem:[%s2263 + $0xaa] sm:$0xff]
      %v2471 = vld [vmem:[%s2263 + $0xb2] sm:$0xff]
      %v2472 = vld [vmem:[%s2263 + $0xc2] sm:$0xff]
      %v2473 = vld [vmem:[%s2263 + $0xca] sm:$0xff]
      %v2474 = vld [vmem:[%s2263 + $0xda] sm:$0xff]
      %v2475 = vld [vmem:[%s2263 + $0xe2] sm:$0xff]
      %v2476 = vld [vmem:[%s2263 + $0xf2] sm:$0xff]
      %v2477 = vld [vmem:[%s2263 + $0xfa] sm:$0xff]
      %v2478 = vld [vmem:[%s2263 + $0x10a] sm:$0xff]
      %v2479 = vld [vmem:[%s2263 + $0x112] sm:$0xff]
      %v2480 = vld [vmem:[%s2263 + $0x122] sm:$0xff]
      %v2481 = vld [vmem:[%s2263 + $0x12a] sm:$0xff]
      %v2482 = vld [vmem:[%s2263 + $0x13a] sm:$0xff]
      %v2483 = vld [vmem:[%s2263 + $0x142] sm:$0xff]
      %v2484 = vld [vmem:[%s2263 + $0x152] sm:$0xff]
      %v2485 = vld [vmem:[%s2263 + $0x15a] sm:$0xff]
      %v2486 = vld [vmem:[%s2263 + $0x16a] sm:$0xff]
      %v2487 = vld [vmem:[%s2263 + $0x172] sm:$0xff]
      %s2488 = scalar_lea.vmem [#allocation3], 48
      %v2489 = vld [vmem:[%s2488] sm:$0xff]
      %v2490 = vld [vmem:[%s2488 + $0x8] sm:$0xff]
      %v2491 = vld [vmem:[%s2488 + $0x18] sm:$0xff]
      %v2492 = vld [vmem:[%s2488 + $0x20] sm:$0xff]
      %v2493 = vld [vmem:[%s2488 + $0x30] sm:$0xff]
      %v2494 = vld [vmem:[%s2488 + $0x38] sm:$0xff]
      %v2495 = vld [vmem:[%s2488 + $0x48] sm:$0xff]
      %v2496 = vld [vmem:[%s2488 + $0x50] sm:$0xff]
      %v2497 = vld [vmem:[%s2488 + $0x60] sm:$0xff]
      %v2498 = vld [vmem:[%s2488 + $0x68] sm:$0xff]
      %v2499 = vld [vmem:[%s2488 + $0x78] sm:$0xff]
      %v2500 = vld [vmem:[%s2488 + $0x80] sm:$0xff]
      %v2501 = vld [vmem:[%s2488 + $0x90] sm:$0xff]
      %v2502 = vld [vmem:[%s2488 + $0x98] sm:$0xff]
      %v2503 = vld [vmem:[%s2488 + $0xa8] sm:$0xff]
      %v2504 = vld [vmem:[%s2488 + $0xb0] sm:$0xff]
      %v2505 = vld [vmem:[%s2488 + $0xc0] sm:$0xff]
      %v2506 = vld [vmem:[%s2488 + $0xc8] sm:$0xff]
      %v2507 = vld [vmem:[%s2488 + $0xd8] sm:$0xff]
      %v2508 = vld [vmem:[%s2488 + $0xe0] sm:$0xff]
      %v2509 = vld [vmem:[%s2488 + $0xf0] sm:$0xff]
      %v2510 = vld [vmem:[%s2488 + $0xf8] sm:$0xff]
      %v2511 = vld [vmem:[%s2488 + $0x108] sm:$0xff]
      %v2512 = vld [vmem:[%s2488 + $0x110] sm:$0xff]
      %v2513 = vld [vmem:[%s2488 + $0x120] sm:$0xff]
      %v2514 = vld [vmem:[%s2488 + $0x128] sm:$0xff]
      %v2515 = vld [vmem:[%s2488 + $0x138] sm:$0xff]
      %v2516 = vld [vmem:[%s2488 + $0x140] sm:$0xff]
      %v2517 = vld [vmem:[%s2488 + $0x150] sm:$0xff]
      %v2518 = vld [vmem:[%s2488 + $0x158] sm:$0xff]
      %v2519 = vld [vmem:[%s2488 + $0x168] sm:$0xff]
      %v2520 = vld [vmem:[%s2488 + $0x170] sm:$0xff]
      %v2521 = vld [vmem:[%s2488 + $0x1] sm:$0xff]
      %v2522 = vld [vmem:[%s2488 + $0x9] sm:$0xff]
      %v2523 = vld [vmem:[%s2488 + $0x19] sm:$0xff]
      %v2524 = vld [vmem:[%s2488 + $0x21] sm:$0xff]
      %v2525 = vld [vmem:[%s2488 + $0x31] sm:$0xff]
      %v2526 = vld [vmem:[%s2488 + $0x39] sm:$0xff]
      %v2527 = vld [vmem:[%s2488 + $0x49] sm:$0xff]
      %v2528 = vld [vmem:[%s2488 + $0x51] sm:$0xff]
      %v2529 = vld [vmem:[%s2488 + $0x61] sm:$0xff]
      %v2530 = vld [vmem:[%s2488 + $0x69] sm:$0xff]
      %v2531 = vld [vmem:[%s2488 + $0x79] sm:$0xff]
      %v2532 = vld [vmem:[%s2488 + $0x81] sm:$0xff]
      %v2533 = vld [vmem:[%s2488 + $0x91] sm:$0xff]
      %v2534 = vld [vmem:[%s2488 + $0x99] sm:$0xff]
      %v2535 = vld [vmem:[%s2488 + $0xa9] sm:$0xff]
      %v2536 = vld [vmem:[%s2488 + $0xb1] sm:$0xff]
      %v2537 = vld [vmem:[%s2488 + $0xc1] sm:$0xff]
      %v2538 = vld [vmem:[%s2488 + $0xc9] sm:$0xff]
      %v2539 = vld [vmem:[%s2488 + $0xd9] sm:$0xff]
      %v2540 = vld [vmem:[%s2488 + $0xe1] sm:$0xff]
      %v2541 = vld [vmem:[%s2488 + $0xf1] sm:$0xff]
      %v2542 = vld [vmem:[%s2488 + $0xf9] sm:$0xff]
      %v2543 = vld [vmem:[%s2488 + $0x109] sm:$0xff]
      %v2544 = vld [vmem:[%s2488 + $0x111] sm:$0xff]
      %v2545 = vld [vmem:[%s2488 + $0x121] sm:$0xff]
      %v2546 = vld [vmem:[%s2488 + $0x129] sm:$0xff]
      %v2547 = vld [vmem:[%s2488 + $0x139] sm:$0xff]
      %v2548 = vld [vmem:[%s2488 + $0x141] sm:$0xff]
      %v2549 = vld [vmem:[%s2488 + $0x151] sm:$0xff]
      %v2550 = vld [vmem:[%s2488 + $0x159] sm:$0xff]
      %v2551 = vld [vmem:[%s2488 + $0x169] sm:$0xff]
      %v2552 = vld [vmem:[%s2488 + $0x171] sm:$0xff]
      %v2553 = vld [vmem:[%s2488 + $0x2] sm:$0xff]
      %v2554 = vld [vmem:[%s2488 + $0xa] sm:$0xff]
      %v2555 = vld [vmem:[%s2488 + $0x1a] sm:$0xff]
      %v2556 = vld [vmem:[%s2488 + $0x22] sm:$0xff]
      %v2557 = vld [vmem:[%s2488 + $0x32] sm:$0xff]
      %v2558 = vld [vmem:[%s2488 + $0x3a] sm:$0xff]
      %v2559 = vld [vmem:[%s2488 + $0x4a] sm:$0xff]
      %v2560 = vld [vmem:[%s2488 + $0x52] sm:$0xff]
      %v2561 = vld [vmem:[%s2488 + $0x62] sm:$0xff]
      %v2562 = vld [vmem:[%s2488 + $0x6a] sm:$0xff]
      %v2563 = vld [vmem:[%s2488 + $0x7a] sm:$0xff]
      %v2564 = vld [vmem:[%s2488 + $0x82] sm:$0xff]
      %v2565 = vld [vmem:[%s2488 + $0x92] sm:$0xff]
      %v2566 = vld [vmem:[%s2488 + $0x9a] sm:$0xff]
      %v2567 = vld [vmem:[%s2488 + $0xaa] sm:$0xff]
      %v2568 = vld [vmem:[%s2488 + $0xb2] sm:$0xff]
      %v2569 = vld [vmem:[%s2488 + $0xc2] sm:$0xff]
      %v2570 = vld [vmem:[%s2488 + $0xca] sm:$0xff]
      %v2571 = vld [vmem:[%s2488 + $0xda] sm:$0xff]
      %v2572 = vld [vmem:[%s2488 + $0xe2] sm:$0xff]
      %v2573 = vld [vmem:[%s2488 + $0xf2] sm:$0xff]
      %v2574 = vld [vmem:[%s2488 + $0xfa] sm:$0xff]
      %v2575 = vld [vmem:[%s2488 + $0x10a] sm:$0xff]
      %v2576 = vld [vmem:[%s2488 + $0x112] sm:$0xff]
      %v2577 = vld [vmem:[%s2488 + $0x122] sm:$0xff]
      %v2578 = vld [vmem:[%s2488 + $0x12a] sm:$0xff]
      %v2579 = vld [vmem:[%s2488 + $0x13a] sm:$0xff]
      %v2580 = vld [vmem:[%s2488 + $0x142] sm:$0xff]
      %v2581 = vld [vmem:[%s2488 + $0x152] sm:$0xff]
      %v2582 = vld [vmem:[%s2488 + $0x15a] sm:$0xff]
      %v2583 = vld [vmem:[%s2488 + $0x16a] sm:$0xff]
      %v2584 = vld [vmem:[%s2488 + $0x172] sm:$0xff]
      %2617 = vrot.lane.b32.xlu0 %v2328, 4
      %v2618 = vpop.permute.xlu0 %2617
      %2619 = vrot.lane.b32.xlu0 %v2329, 4
      %v2620 = vpop.permute.xlu0 %2619
      %2621 = vrot.lane.b32.xlu0 %v2330, 4
      %v2622 = vpop.permute.xlu0 %2621
      %2623 = vrot.lane.b32.xlu0 %v2331, 4
      %v2624 = vpop.permute.xlu0 %2623
      %2625 = vrot.lane.b32.xlu0 %v2332, 4
      %v2626 = vpop.permute.xlu0 %2625
      %2627 = vrot.lane.b32.xlu0 %v2333, 4
      %v2628 = vpop.permute.xlu0 %2627
      %2629 = vrot.lane.b32.xlu0 %v2334, 4
      %v2630 = vpop.permute.xlu0 %2629
      %2631 = vrot.lane.b32.xlu0 %v2335, 4
      %v2632 = vpop.permute.xlu0 %2631
      %2633 = vrot.lane.b32.xlu0 %v2336, 4
      %v2634 = vpop.permute.xlu0 %2633
      %2635 = vrot.lane.b32.xlu0 %v2337, 4
      %v2636 = vpop.permute.xlu0 %2635
      %2637 = vrot.lane.b32.xlu0 %v2338, 4
      %v2638 = vpop.permute.xlu0 %2637
      %2639 = vrot.lane.b32.xlu0 %v2339, 4
      %v2640 = vpop.permute.xlu0 %2639
      %2641 = vrot.lane.b32.xlu0 %v2340, 4
      %v2642 = vpop.permute.xlu0 %2641
      %2643 = vrot.lane.b32.xlu0 %v2341, 4
      %v2644 = vpop.permute.xlu0 %2643
      %2645 = vrot.lane.b32.xlu0 %v2342, 4
      %v2646 = vpop.permute.xlu0 %2645
      %2647 = vrot.lane.b32.xlu0 %v2343, 4
      %v2648 = vpop.permute.xlu0 %2647
      %2649 = vrot.lane.b32.xlu0 %v2344, 4
      %v2650 = vpop.permute.xlu0 %2649
      %2651 = vrot.lane.b32.xlu0 %v2345, 4
      %v2652 = vpop.permute.xlu0 %2651
      %2653 = vrot.lane.b32.xlu0 %v2346, 4
      %v2654 = vpop.permute.xlu0 %2653
      %2655 = vrot.lane.b32.xlu0 %v2347, 4
      %v2656 = vpop.permute.xlu0 %2655
      %2657 = vrot.lane.b32.xlu0 %v2348, 4
      %v2658 = vpop.permute.xlu0 %2657
      %2659 = vrot.lane.b32.xlu0 %v2349, 4
      %v2660 = vpop.permute.xlu0 %2659
      %2661 = vrot.lane.b32.xlu0 %v2350, 4
      %v2662 = vpop.permute.xlu0 %2661
      %2663 = vrot.lane.b32.xlu0 %v2351, 4
      %v2664 = vpop.permute.xlu0 %2663
      %2665 = vrot.lane.b32.xlu0 %v2352, 4
      %v2666 = vpop.permute.xlu0 %2665
      %2667 = vrot.lane.b32.xlu0 %v2353, 4
      %v2668 = vpop.permute.xlu0 %2667
      %2669 = vrot.lane.b32.xlu0 %v2354, 4
      %v2670 = vpop.permute.xlu0 %2669
      %2671 = vrot.lane.b32.xlu0 %v2355, 4
      %v2672 = vpop.permute.xlu0 %2671
      %2673 = vrot.lane.b32.xlu0 %v2356, 4
      %v2674 = vpop.permute.xlu0 %2673
      %2675 = vrot.lane.b32.xlu0 %v2357, 4
      %v2676 = vpop.permute.xlu0 %2675
      %2677 = vrot.lane.b32.xlu0 %v2358, 4
      %v2678 = vpop.permute.xlu0 %2677
      %2679 = vrot.lane.b32.xlu0 %v2359, 4
      %v2680 = vpop.permute.xlu0 %2679
      %2745 = vrot.lane.b32.xlu0 %v2360, 8
      %v2746 = vpop.permute.xlu0 %2745
      %2747 = vrot.lane.b32.xlu0 %v2361, 8
      %v2748 = vpop.permute.xlu0 %2747
      %2749 = vrot.lane.b32.xlu0 %v2362, 8
      %v2750 = vpop.permute.xlu0 %2749
      %2751 = vrot.lane.b32.xlu0 %v2363, 8
      %v2752 = vpop.permute.xlu0 %2751
      %2753 = vrot.lane.b32.xlu0 %v2364, 8
      %v2754 = vpop.permute.xlu0 %2753
      %2755 = vrot.lane.b32.xlu0 %v2365, 8
      %v2756 = vpop.permute.xlu0 %2755
      %2757 = vrot.lane.b32.xlu0 %v2366, 8
      %v2758 = vpop.permute.xlu0 %2757
      %2759 = vrot.lane.b32.xlu0 %v2367, 8
      %v2760 = vpop.permute.xlu0 %2759
      %2761 = vrot.lane.b32.xlu0 %v2368, 8
      %v2762 = vpop.permute.xlu0 %2761
      %2763 = vrot.lane.b32.xlu0 %v2369, 8
      %v2764 = vpop.permute.xlu0 %2763
      %2765 = vrot.lane.b32.xlu0 %v2370, 8
      %v2766 = vpop.permute.xlu0 %2765
      %2767 = vrot.lane.b32.xlu0 %v2371, 8
      %v2768 = vpop.permute.xlu0 %2767
      %2769 = vrot.lane.b32.xlu0 %v2372, 8
      %v2770 = vpop.permute.xlu0 %2769
      %2771 = vrot.lane.b32.xlu0 %v2373, 8
      %v2772 = vpop.permute.xlu0 %2771
      %2773 = vrot.lane.b32.xlu0 %v2374, 8
      %v2774 = vpop.permute.xlu0 %2773
      %2775 = vrot.lane.b32.xlu0 %v2375, 8
      %v2776 = vpop.permute.xlu0 %2775
      %2777 = vrot.lane.b32.xlu0 %v2376, 8
      %v2778 = vpop.permute.xlu0 %2777
      %2779 = vrot.lane.b32.xlu0 %v2377, 8
      %v2780 = vpop.permute.xlu0 %2779
      %2781 = vrot.lane.b32.xlu0 %v2378, 8
      %v2782 = vpop.permute.xlu0 %2781
      %2783 = vrot.lane.b32.xlu0 %v2379, 8
      %v2784 = vpop.permute.xlu0 %2783
      %2785 = vrot.lane.b32.xlu0 %v2380, 8
      %v2786 = vpop.permute.xlu0 %2785
      %2787 = vrot.lane.b32.xlu0 %v2381, 8
      %v2788 = vpop.permute.xlu0 %2787
      %2789 = vrot.lane.b32.xlu0 %v2382, 8
      %v2790 = vpop.permute.xlu0 %2789
      %2791 = vrot.lane.b32.xlu0 %v2383, 8
      %v2792 = vpop.permute.xlu0 %2791
      %2793 = vrot.lane.b32.xlu0 %v2384, 8
      %v2794 = vpop.permute.xlu0 %2793
      %2795 = vrot.lane.b32.xlu0 %v2385, 8
      %v2796 = vpop.permute.xlu0 %2795
      %2797 = vrot.lane.b32.xlu0 %v2386, 8
      %v2798 = vpop.permute.xlu0 %2797
      %2799 = vrot.lane.b32.xlu0 %v2387, 8
      %v2800 = vpop.permute.xlu0 %2799
      %2801 = vrot.lane.b32.xlu0 %v2388, 8
      %v2802 = vpop.permute.xlu0 %2801
      %2803 = vrot.lane.b32.xlu0 %v2389, 8
      %v2804 = vpop.permute.xlu0 %2803
      %2805 = vrot.lane.b32.xlu0 %v2390, 8
      %v2806 = vpop.permute.xlu0 %2805
      %2807 = vrot.lane.b32.xlu0 %v2391, 8
      %v2808 = vpop.permute.xlu0 %2807
      %2873 = vrot.lane.b32.xlu0 %v2392, 12
      %v2874 = vpop.permute.xlu0 %2873
      %2875 = vrot.lane.b32.xlu0 %v2393, 12
      %v2876 = vpop.permute.xlu0 %2875
      %2877 = vrot.lane.b32.xlu0 %v2394, 12
      %v2878 = vpop.permute.xlu0 %2877
      %2879 = vrot.lane.b32.xlu0 %v2395, 12
      %v2880 = vpop.permute.xlu0 %2879
      %2881 = vrot.lane.b32.xlu0 %v2396, 12
      %v2882 = vpop.permute.xlu0 %2881
      %2883 = vrot.lane.b32.xlu0 %v2397, 12
      %v2884 = vpop.permute.xlu0 %2883
      %2885 = vrot.lane.b32.xlu0 %v2398, 12
      %v2886 = vpop.permute.xlu0 %2885
      %2887 = vrot.lane.b32.xlu0 %v2399, 12
      %v2888 = vpop.permute.xlu0 %2887
      %2889 = vrot.lane.b32.xlu0 %v2400, 12
      %v2890 = vpop.permute.xlu0 %2889
      %2891 = vrot.lane.b32.xlu0 %v2401, 12
      %v2892 = vpop.permute.xlu0 %2891
      %2893 = vrot.lane.b32.xlu0 %v2402, 12
      %v2894 = vpop.permute.xlu0 %2893
      %2895 = vrot.lane.b32.xlu0 %v2403, 12
      %v2896 = vpop.permute.xlu0 %2895
      %2897 = vrot.lane.b32.xlu0 %v2404, 12
      %v2898 = vpop.permute.xlu0 %2897
      %2899 = vrot.lane.b32.xlu0 %v2405, 12
      %v2900 = vpop.permute.xlu0 %2899
      %2901 = vrot.lane.b32.xlu0 %v2406, 12
      %v2902 = vpop.permute.xlu0 %2901
      %2903 = vrot.lane.b32.xlu0 %v2407, 12
      %v2904 = vpop.permute.xlu0 %2903
      %2905 = vrot.lane.b32.xlu0 %v2408, 12
      %v2906 = vpop.permute.xlu0 %2905
      %2907 = vrot.lane.b32.xlu0 %v2409, 12
      %v2908 = vpop.permute.xlu0 %2907
      %2909 = vrot.lane.b32.xlu0 %v2410, 12
      %v2910 = vpop.permute.xlu0 %2909
      %2911 = vrot.lane.b32.xlu0 %v2411, 12
      %v2912 = vpop.permute.xlu0 %2911
      %2913 = vrot.lane.b32.xlu0 %v2412, 12
      %v2914 = vpop.permute.xlu0 %2913
      %2915 = vrot.lane.b32.xlu0 %v2413, 12
      %v2916 = vpop.permute.xlu0 %2915
      %2917 = vrot.lane.b32.xlu0 %v2414, 12
      %v2918 = vpop.permute.xlu0 %2917
      %2919 = vrot.lane.b32.xlu0 %v2415, 12
      %v2920 = vpop.permute.xlu0 %2919
      %2921 = vrot.lane.b32.xlu0 %v2416, 12
      %v2922 = vpop.permute.xlu0 %2921
      %2923 = vrot.lane.b32.xlu0 %v2417, 12
      %v2924 = vpop.permute.xlu0 %2923
      %2925 = vrot.lane.b32.xlu0 %v2418, 12
      %v2926 = vpop.permute.xlu0 %2925
      %2927 = vrot.lane.b32.xlu0 %v2419, 12
      %v2928 = vpop.permute.xlu0 %2927
      %2929 = vrot.lane.b32.xlu0 %v2420, 12
      %v2930 = vpop.permute.xlu0 %2929
      %2931 = vrot.lane.b32.xlu0 %v2421, 12
      %v2932 = vpop.permute.xlu0 %2931
      %2933 = vrot.lane.b32.xlu0 %v2422, 12
      %v2934 = vpop.permute.xlu0 %2933
      %2935 = vrot.lane.b32.xlu0 %v2423, 12
      %v2936 = vpop.permute.xlu0 %2935
      %3001 = vrot.lane.b32.xlu0 %v2424, 16
      %v3002 = vpop.permute.xlu0 %3001
      %3003 = vrot.lane.b32.xlu0 %v2425, 16
      %v3004 = vpop.permute.xlu0 %3003
      %3005 = vrot.lane.b32.xlu0 %v2426, 16
      %v3006 = vpop.permute.xlu0 %3005
      %3007 = vrot.lane.b32.xlu0 %v2427, 16
      %v3008 = vpop.permute.xlu0 %3007
      %3009 = vrot.lane.b32.xlu0 %v2428, 16
      %v3010 = vpop.permute.xlu0 %3009
      %3011 = vrot.lane.b32.xlu0 %v2429, 16
      %v3012 = vpop.permute.xlu0 %3011
      %3013 = vrot.lane.b32.xlu0 %v2430, 16
      %v3014 = vpop.permute.xlu0 %3013
      %3015 = vrot.lane.b32.xlu0 %v2431, 16
      %v3016 = vpop.permute.xlu0 %3015
      %3017 = vrot.lane.b32.xlu0 %v2432, 16
      %v3018 = vpop.permute.xlu0 %3017
      %3019 = vrot.lane.b32.xlu0 %v2433, 16
      %v3020 = vpop.permute.xlu0 %3019
      %3021 = vrot.lane.b32.xlu0 %v2434, 16
      %v3022 = vpop.permute.xlu0 %3021
      %3023 = vrot.lane.b32.xlu0 %v2435, 16
      %v3024 = vpop.permute.xlu0 %3023
      %3025 = vrot.lane.b32.xlu0 %v2436, 16
      %v3026 = vpop.permute.xlu0 %3025
      %3027 = vrot.lane.b32.xlu0 %v2437, 16
      %v3028 = vpop.permute.xlu0 %3027
      %3029 = vrot.lane.b32.xlu0 %v2438, 16
      %v3030 = vpop.permute.xlu0 %3029
      %3031 = vrot.lane.b32.xlu0 %v2439, 16
      %v3032 = vpop.permute.xlu0 %3031
      %3033 = vrot.lane.b32.xlu0 %v2440, 16
      %v3034 = vpop.permute.xlu0 %3033
      %3035 = vrot.lane.b32.xlu0 %v2441, 16
      %v3036 = vpop.permute.xlu0 %3035
      %3037 = vrot.lane.b32.xlu0 %v2442, 16
      %v3038 = vpop.permute.xlu0 %3037
      %3039 = vrot.lane.b32.xlu0 %v2443, 16
      %v3040 = vpop.permute.xlu0 %3039
      %3041 = vrot.lane.b32.xlu0 %v2444, 16
      %v3042 = vpop.permute.xlu0 %3041
      %3043 = vrot.lane.b32.xlu0 %v2445, 16
      %v3044 = vpop.permute.xlu0 %3043
      %3045 = vrot.lane.b32.xlu0 %v2446, 16
      %v3046 = vpop.permute.xlu0 %3045
      %3047 = vrot.lane.b32.xlu0 %v2447, 16
      %v3048 = vpop.permute.xlu0 %3047
      %3049 = vrot.lane.b32.xlu0 %v2448, 16
      %v3050 = vpop.permute.xlu0 %3049
      %3051 = vrot.lane.b32.xlu0 %v2449, 16
      %v3052 = vpop.permute.xlu0 %3051
      %3053 = vrot.lane.b32.xlu0 %v2450, 16
      %v3054 = vpop.permute.xlu0 %3053
      %3055 = vrot.lane.b32.xlu0 %v2451, 16
      %v3056 = vpop.permute.xlu0 %3055
      %3057 = vrot.lane.b32.xlu0 %v2452, 16
      %v3058 = vpop.permute.xlu0 %3057
      %3059 = vrot.lane.b32.xlu0 %v2453, 16
      %v3060 = vpop.permute.xlu0 %3059
      %3061 = vrot.lane.b32.xlu0 %v2454, 16
      %v3062 = vpop.permute.xlu0 %3061
      %3063 = vrot.lane.b32.xlu0 %v2455, 16
      %v3064 = vpop.permute.xlu0 %3063
      %3129 = vrot.lane.b32.xlu0 %v2456, 20
      %v3130 = vpop.permute.xlu0 %3129
      %3131 = vrot.lane.b32.xlu0 %v2457, 20
      %v3132 = vpop.permute.xlu0 %3131
      %3133 = vrot.lane.b32.xlu0 %v2458, 20
      %v3134 = vpop.permute.xlu0 %3133
      %3135 = vrot.lane.b32.xlu0 %v2459, 20
      %v3136 = vpop.permute.xlu0 %3135
      %3137 = vrot.lane.b32.xlu0 %v2460, 20
      %v3138 = vpop.permute.xlu0 %3137
      %3139 = vrot.lane.b32.xlu0 %v2461, 20
      %v3140 = vpop.permute.xlu0 %3139
      %3141 = vrot.lane.b32.xlu0 %v2462, 20
      %v3142 = vpop.permute.xlu0 %3141
      %3143 = vrot.lane.b32.xlu0 %v2463, 20
      %v3144 = vpop.permute.xlu0 %3143
      %3145 = vrot.lane.b32.xlu0 %v2464, 20
      %v3146 = vpop.permute.xlu0 %3145
      %3147 = vrot.lane.b32.xlu0 %v2465, 20
      %v3148 = vpop.permute.xlu0 %3147
      %3149 = vrot.lane.b32.xlu0 %v2466, 20
      %v3150 = vpop.permute.xlu0 %3149
      %3151 = vrot.lane.b32.xlu0 %v2467, 20
      %v3152 = vpop.permute.xlu0 %3151
      %3153 = vrot.lane.b32.xlu0 %v2468, 20
      %v3154 = vpop.permute.xlu0 %3153
      %3155 = vrot.lane.b32.xlu0 %v2469, 20
      %v3156 = vpop.permute.xlu0 %3155
      %3157 = vrot.lane.b32.xlu0 %v2470, 20
      %v3158 = vpop.permute.xlu0 %3157
      %3159 = vrot.lane.b32.xlu0 %v2471, 20
      %v3160 = vpop.permute.xlu0 %3159
      %3161 = vrot.lane.b32.xlu0 %v2472, 20
      %v3162 = vpop.permute.xlu0 %3161
      %3163 = vrot.lane.b32.xlu0 %v2473, 20
      %v3164 = vpop.permute.xlu0 %3163
      %3165 = vrot.lane.b32.xlu0 %v2474, 20
      %v3166 = vpop.permute.xlu0 %3165
      %3167 = vrot.lane.b32.xlu0 %v2475, 20
      %v3168 = vpop.permute.xlu0 %3167
      %3169 = vrot.lane.b32.xlu0 %v2476, 20
      %v3170 = vpop.permute.xlu0 %3169
      %3171 = vrot.lane.b32.xlu0 %v2477, 20
      %v3172 = vpop.permute.xlu0 %3171
      %3173 = vrot.lane.b32.xlu0 %v2478, 20
      %v3174 = vpop.permute.xlu0 %3173
      %3175 = vrot.lane.b32.xlu0 %v2479, 20
      %v3176 = vpop.permute.xlu0 %3175
      %3177 = vrot.lane.b32.xlu0 %v2480, 20
      %v3178 = vpop.permute.xlu0 %3177
      %3179 = vrot.lane.b32.xlu0 %v2481, 20
      %v3180 = vpop.permute.xlu0 %3179
      %3181 = vrot.lane.b32.xlu0 %v2482, 20
      %v3182 = vpop.permute.xlu0 %3181
      %3183 = vrot.lane.b32.xlu0 %v2483, 20
      %v3184 = vpop.permute.xlu0 %3183
      %3185 = vrot.lane.b32.xlu0 %v2484, 20
      %v3186 = vpop.permute.xlu0 %3185
      %3187 = vrot.lane.b32.xlu0 %v2485, 20
      %v3188 = vpop.permute.xlu0 %3187
      %3189 = vrot.lane.b32.xlu0 %v2486, 20
      %v3190 = vpop.permute.xlu0 %3189
      %3191 = vrot.lane.b32.xlu0 %v2487, 20
      %v3192 = vpop.permute.xlu0 %3191
      %3257 = vrot.lane.b32.xlu0 %v2489, 24
      %v3258 = vpop.permute.xlu0 %3257
      %3259 = vrot.lane.b32.xlu0 %v2490, 24
      %v3260 = vpop.permute.xlu0 %3259
      %3261 = vrot.lane.b32.xlu0 %v2491, 24
      %v3262 = vpop.permute.xlu0 %3261
      %3263 = vrot.lane.b32.xlu0 %v2492, 24
      %v3264 = vpop.permute.xlu0 %3263
      %3265 = vrot.lane.b32.xlu0 %v2493, 24
      %v3266 = vpop.permute.xlu0 %3265
      %3267 = vrot.lane.b32.xlu0 %v2494, 24
      %v3268 = vpop.permute.xlu0 %3267
      %3269 = vrot.lane.b32.xlu0 %v2495, 24
      %v3270 = vpop.permute.xlu0 %3269
      %3271 = vrot.lane.b32.xlu0 %v2496, 24
      %v3272 = vpop.permute.xlu0 %3271
      %3273 = vrot.lane.b32.xlu0 %v2497, 24
      %v3274 = vpop.permute.xlu0 %3273
      %3275 = vrot.lane.b32.xlu0 %v2498, 24
      %v3276 = vpop.permute.xlu0 %3275
      %3277 = vrot.lane.b32.xlu0 %v2499, 24
      %v3278 = vpop.permute.xlu0 %3277
      %3279 = vrot.lane.b32.xlu0 %v2500, 24
      %v3280 = vpop.permute.xlu0 %3279
      %3281 = vrot.lane.b32.xlu0 %v2501, 24
      %v3282 = vpop.permute.xlu0 %3281
      %3283 = vrot.lane.b32.xlu0 %v2502, 24
      %v3284 = vpop.permute.xlu0 %3283
      %3285 = vrot.lane.b32.xlu0 %v2503, 24
      %v3286 = vpop.permute.xlu0 %3285
      %3287 = vrot.lane.b32.xlu0 %v2504, 24
      %v3288 = vpop.permute.xlu0 %3287
      %3289 = vrot.lane.b32.xlu0 %v2505, 24
      %v3290 = vpop.permute.xlu0 %3289
      %3291 = vrot.lane.b32.xlu0 %v2506, 24
      %v3292 = vpop.permute.xlu0 %3291
      %3293 = vrot.lane.b32.xlu0 %v2507, 24
      %v3294 = vpop.permute.xlu0 %3293
      %3295 = vrot.lane.b32.xlu0 %v2508, 24
      %v3296 = vpop.permute.xlu0 %3295
      %3297 = vrot.lane.b32.xlu0 %v2509, 24
      %v3298 = vpop.permute.xlu0 %3297
      %3299 = vrot.lane.b32.xlu0 %v2510, 24
      %v3300 = vpop.permute.xlu0 %3299
      %3301 = vrot.lane.b32.xlu0 %v2511, 24
      %v3302 = vpop.permute.xlu0 %3301
      %3303 = vrot.lane.b32.xlu0 %v2512, 24
      %v3304 = vpop.permute.xlu0 %3303
      %3305 = vrot.lane.b32.xlu0 %v2513, 24
      %v3306 = vpop.permute.xlu0 %3305
      %3307 = vrot.lane.b32.xlu0 %v2514, 24
      %v3308 = vpop.permute.xlu0 %3307
      %3309 = vrot.lane.b32.xlu0 %v2515, 24
      %v3310 = vpop.permute.xlu0 %3309
      %3311 = vrot.lane.b32.xlu0 %v2516, 24
      %v3312 = vpop.permute.xlu0 %3311
      %3313 = vrot.lane.b32.xlu0 %v2517, 24
      %v3314 = vpop.permute.xlu0 %3313
      %3315 = vrot.lane.b32.xlu0 %v2518, 24
      %v3316 = vpop.permute.xlu0 %3315
      %3317 = vrot.lane.b32.xlu0 %v2519, 24
      %v3318 = vpop.permute.xlu0 %3317
      %3319 = vrot.lane.b32.xlu0 %v2520, 24
      %v3320 = vpop.permute.xlu0 %3319
      %3385 = vrot.lane.b32.xlu0 %v2521, 28
      %v3386 = vpop.permute.xlu0 %3385
      %3387 = vrot.lane.b32.xlu0 %v2522, 28
      %v3388 = vpop.permute.xlu0 %3387
      %3389 = vrot.lane.b32.xlu0 %v2523, 28
      %v3390 = vpop.permute.xlu0 %3389
      %3391 = vrot.lane.b32.xlu0 %v2524, 28
      %v3392 = vpop.permute.xlu0 %3391
      %3393 = vrot.lane.b32.xlu0 %v2525, 28
      %v3394 = vpop.permute.xlu0 %3393
      %3395 = vrot.lane.b32.xlu0 %v2526, 28
      %v3396 = vpop.permute.xlu0 %3395
      %3397 = vrot.lane.b32.xlu0 %v2527, 28
      %v3398 = vpop.permute.xlu0 %3397
      %3399 = vrot.lane.b32.xlu0 %v2528, 28
      %v3400 = vpop.permute.xlu0 %3399
      %3401 = vrot.lane.b32.xlu0 %v2529, 28
      %v3402 = vpop.permute.xlu0 %3401
      %3403 = vrot.lane.b32.xlu0 %v2530, 28
      %v3404 = vpop.permute.xlu0 %3403
      %3405 = vrot.lane.b32.xlu0 %v2531, 28
      %v3406 = vpop.permute.xlu0 %3405
      %3407 = vrot.lane.b32.xlu0 %v2532, 28
      %v3408 = vpop.permute.xlu0 %3407
      %3409 = vrot.lane.b32.xlu0 %v2533, 28
      %v3410 = vpop.permute.xlu0 %3409
      %3411 = vrot.lane.b32.xlu0 %v2534, 28
      %v3412 = vpop.permute.xlu0 %3411
      %3413 = vrot.lane.b32.xlu0 %v2535, 28
      %v3414 = vpop.permute.xlu0 %3413
      %3415 = vrot.lane.b32.xlu0 %v2536, 28
      %v3416 = vpop.permute.xlu0 %3415
      %3417 = vrot.lane.b32.xlu0 %v2537, 28
      %v3418 = vpop.permute.xlu0 %3417
      %3419 = vrot.lane.b32.xlu0 %v2538, 28
      %v3420 = vpop.permute.xlu0 %3419
      %3421 = vrot.lane.b32.xlu0 %v2539, 28
      %v3422 = vpop.permute.xlu0 %3421
      %3423 = vrot.lane.b32.xlu0 %v2540, 28
      %v3424 = vpop.permute.xlu0 %3423
      %3425 = vrot.lane.b32.xlu0 %v2541, 28
      %v3426 = vpop.permute.xlu0 %3425
      %3427 = vrot.lane.b32.xlu0 %v2542, 28
      %v3428 = vpop.permute.xlu0 %3427
      %3429 = vrot.lane.b32.xlu0 %v2543, 28
      %v3430 = vpop.permute.xlu0 %3429
      %3431 = vrot.lane.b32.xlu0 %v2544, 28
      %v3432 = vpop.permute.xlu0 %3431
      %3433 = vrot.lane.b32.xlu0 %v2545, 28
      %v3434 = vpop.permute.xlu0 %3433
      %3435 = vrot.lane.b32.xlu0 %v2546, 28
      %v3436 = vpop.permute.xlu0 %3435
      %3437 = vrot.lane.b32.xlu0 %v2547, 28
      %v3438 = vpop.permute.xlu0 %3437
      %3439 = vrot.lane.b32.xlu0 %v2548, 28
      %v3440 = vpop.permute.xlu0 %3439
      %3441 = vrot.lane.b32.xlu0 %v2549, 28
      %v3442 = vpop.permute.xlu0 %3441
      %3443 = vrot.lane.b32.xlu0 %v2550, 28
      %v3444 = vpop.permute.xlu0 %3443
      %3445 = vrot.lane.b32.xlu0 %v2551, 28
      %v3446 = vpop.permute.xlu0 %3445
      %3447 = vrot.lane.b32.xlu0 %v2552, 28
      %v3448 = vpop.permute.xlu0 %3447
      %3513 = vrot.lane.b32.xlu0 %v2553, 32
      %v3514 = vpop.permute.xlu0 %3513
      %3515 = vrot.lane.b32.xlu0 %v2554, 32
      %v3516 = vpop.permute.xlu0 %3515
      %3517 = vrot.lane.b32.xlu0 %v2555, 32
      %v3518 = vpop.permute.xlu0 %3517
      %3519 = vrot.lane.b32.xlu0 %v2556, 32
      %v3520 = vpop.permute.xlu0 %3519
      %3521 = vrot.lane.b32.xlu0 %v2557, 32
      %v3522 = vpop.permute.xlu0 %3521
      %3523 = vrot.lane.b32.xlu0 %v2558, 32
      %v3524 = vpop.permute.xlu0 %3523
      %3525 = vrot.lane.b32.xlu0 %v2559, 32
      %v3526 = vpop.permute.xlu0 %3525
      %3527 = vrot.lane.b32.xlu0 %v2560, 32
      %v3528 = vpop.permute.xlu0 %3527
      %3529 = vrot.lane.b32.xlu0 %v2561, 32
      %v3530 = vpop.permute.xlu0 %3529
      %3531 = vrot.lane.b32.xlu0 %v2562, 32
      %v3532 = vpop.permute.xlu0 %3531
      %3533 = vrot.lane.b32.xlu0 %v2563, 32
      %v3534 = vpop.permute.xlu0 %3533
      %3535 = vrot.lane.b32.xlu0 %v2564, 32
      %v3536 = vpop.permute.xlu0 %3535
      %3537 = vrot.lane.b32.xlu0 %v2565, 32
      %v3538 = vpop.permute.xlu0 %3537
      %3539 = vrot.lane.b32.xlu0 %v2566, 32
      %v3540 = vpop.permute.xlu0 %3539
      %3541 = vrot.lane.b32.xlu0 %v2567, 32
      %v3542 = vpop.permute.xlu0 %3541
      %3543 = vrot.lane.b32.xlu0 %v2568, 32
      %v3544 = vpop.permute.xlu0 %3543
      %3545 = vrot.lane.b32.xlu0 %v2569, 32
      %v3546 = vpop.permute.xlu0 %3545
      %3547 = vrot.lane.b32.xlu0 %v2570, 32
      %v3548 = vpop.permute.xlu0 %3547
      %3549 = vrot.lane.b32.xlu0 %v2571, 32
      %v3550 = vpop.permute.xlu0 %3549
      %3551 = vrot.lane.b32.xlu0 %v2572, 32
      %v3552 = vpop.permute.xlu0 %3551
      %3553 = vrot.lane.b32.xlu0 %v2573, 32
      %v3554 = vpop.permute.xlu0 %3553
      %3555 = vrot.lane.b32.xlu0 %v2574, 32
      %v3556 = vpop.permute.xlu0 %3555
      %3557 = vrot.lane.b32.xlu0 %v2575, 32
      %v3558 = vpop.permute.xlu0 %3557
      %3559 = vrot.lane.b32.xlu0 %v2576, 32
      %v3560 = vpop.permute.xlu0 %3559
      %3561 = vrot.lane.b32.xlu0 %v2577, 32
      %v3562 = vpop.permute.xlu0 %3561
      %3563 = vrot.lane.b32.xlu0 %v2578, 32
      %v3564 = vpop.permute.xlu0 %3563
      %3565 = vrot.lane.b32.xlu0 %v2579, 32
      %v3566 = vpop.permute.xlu0 %3565
      %3567 = vrot.lane.b32.xlu0 %v2580, 32
      %v3568 = vpop.permute.xlu0 %3567
      %3569 = vrot.lane.b32.xlu0 %v2581, 32
      %v3570 = vpop.permute.xlu0 %3569
      %3571 = vrot.lane.b32.xlu0 %v2582, 32
      %v3572 = vpop.permute.xlu0 %3571
      %3573 = vrot.lane.b32.xlu0 %v2583, 32
      %v3574 = vpop.permute.xlu0 %3573
      %3575 = vrot.lane.b32.xlu0 %v2584, 32
      %v3576 = vpop.permute.xlu0 %3575
      %v3609 = vsel %vm2207, %v2296, %v2618
      %v3610 = vsel %vm2207, %v2297, %v2620
      %v3611 = vsel %vm2207, %v2298, %v2622
      %v3612 = vsel %vm2207, %v2299, %v2624
      %v3613 = vsel %vm2207, %v2300, %v2626
      %v3614 = vsel %vm2207, %v2301, %v2628
      %v3615 = vsel %vm2207, %v2302, %v2630
      %v3616 = vsel %vm2207, %v2303, %v2632
      %v3617 = vsel %vm2207, %v2304, %v2634
      %v3618 = vsel %vm2207, %v2305, %v2636
      %v3619 = vsel %vm2207, %v2306, %v2638
      %v3620 = vsel %vm2207, %v2307, %v2640
      %v3621 = vsel %vm2207, %v2308, %v2642
      %v3622 = vsel %vm2207, %v2309, %v2644
      %v3623 = vsel %vm2207, %v2310, %v2646
      %v3624 = vsel %vm2207, %v2311, %v2648
      %v3625 = vsel %vm2207, %v2312, %v2650
      %v3626 = vsel %vm2207, %v2313, %v2652
      %v3627 = vsel %vm2207, %v2314, %v2654
      %v3628 = vsel %vm2207, %v2315, %v2656
      %v3629 = vsel %vm2207, %v2316, %v2658
      %v3630 = vsel %vm2207, %v2317, %v2660
      %v3631 = vsel %vm2207, %v2318, %v2662
      %v3632 = vsel %vm2207, %v2319, %v2664
      %v3633 = vsel %vm2207, %v2320, %v2666
      %v3634 = vsel %vm2207, %v2321, %v2668
      %v3635 = vsel %vm2207, %v2322, %v2670
      %v3636 = vsel %vm2207, %v2323, %v2672
      %v3637 = vsel %vm2207, %v2324, %v2674
      %v3638 = vsel %vm2207, %v2325, %v2676
      %v3639 = vsel %vm2207, %v2326, %v2678
      %v3640 = vsel %vm2207, %v2327, %v2680
      %v3641 = vsel %vm280, %v3609, %v2746
      %v3642 = vsel %vm280, %v3610, %v2748
      %v3643 = vsel %vm280, %v3611, %v2750
      %v3644 = vsel %vm280, %v3612, %v2752
      %v3645 = vsel %vm280, %v3613, %v2754
      %v3646 = vsel %vm280, %v3614, %v2756
      %v3647 = vsel %vm280, %v3615, %v2758
      %v3648 = vsel %vm280, %v3616, %v2760
      %v3649 = vsel %vm280, %v3617, %v2762
      %v3650 = vsel %vm280, %v3618, %v2764
      %v3651 = vsel %vm280, %v3619, %v2766
      %v3652 = vsel %vm280, %v3620, %v2768
      %v3653 = vsel %vm280, %v3621, %v2770
      %v3654 = vsel %vm280, %v3622, %v2772
      %v3655 = vsel %vm280, %v3623, %v2774
      %v3656 = vsel %vm280, %v3624, %v2776
      %v3657 = vsel %vm280, %v3625, %v2778
      %v3658 = vsel %vm280, %v3626, %v2780
      %v3659 = vsel %vm280, %v3627, %v2782
      %v3660 = vsel %vm280, %v3628, %v2784
      %v3661 = vsel %vm280, %v3629, %v2786
      %v3662 = vsel %vm280, %v3630, %v2788
      %v3663 = vsel %vm280, %v3631, %v2790
      %v3664 = vsel %vm280, %v3632, %v2792
      %v3665 = vsel %vm280, %v3633, %v2794
      %v3666 = vsel %vm280, %v3634, %v2796
      %v3667 = vsel %vm280, %v3635, %v2798
      %v3668 = vsel %vm280, %v3636, %v2800
      %v3669 = vsel %vm280, %v3637, %v2802
      %v3670 = vsel %vm280, %v3638, %v2804
      %v3671 = vsel %vm280, %v3639, %v2806
      %v3672 = vsel %vm280, %v3640, %v2808
      %vm3673 = vcmask 97280
      %v3674 = vsel %vm3673, %v3641, %v2874
      %v3675 = vsel %vm3673, %v3642, %v2876
      %v3676 = vsel %vm3673, %v3643, %v2878
      %v3677 = vsel %vm3673, %v3644, %v2880
      %v3678 = vsel %vm3673, %v3645, %v2882
      %v3679 = vsel %vm3673, %v3646, %v2884
      %v3680 = vsel %vm3673, %v3647, %v2886
      %v3681 = vsel %vm3673, %v3648, %v2888
      %v3682 = vsel %vm3673, %v3649, %v2890
      %v3683 = vsel %vm3673, %v3650, %v2892
      %v3684 = vsel %vm3673, %v3651, %v2894
      %v3685 = vsel %vm3673, %v3652, %v2896
      %v3686 = vsel %vm3673, %v3653, %v2898
      %v3687 = vsel %vm3673, %v3654, %v2900
      %v3688 = vsel %vm3673, %v3655, %v2902
      %v3689 = vsel %vm3673, %v3656, %v2904
      %v3690 = vsel %vm3673, %v3657, %v2906
      %v3691 = vsel %vm3673, %v3658, %v2908
      %v3692 = vsel %vm3673, %v3659, %v2910
      %v3693 = vsel %vm3673, %v3660, %v2912
      %v3694 = vsel %vm3673, %v3661, %v2914
      %v3695 = vsel %vm3673, %v3662, %v2916
      %v3696 = vsel %vm3673, %v3663, %v2918
      %v3697 = vsel %vm3673, %v3664, %v2920
      %v3698 = vsel %vm3673, %v3665, %v2922
      %v3699 = vsel %vm3673, %v3666, %v2924
      %v3700 = vsel %vm3673, %v3667, %v2926
      %v3701 = vsel %vm3673, %v3668, %v2928
      %v3702 = vsel %vm3673, %v3669, %v2930
      %v3703 = vsel %vm3673, %v3670, %v2932
      %v3704 = vsel %vm3673, %v3671, %v2934
      %v3705 = vsel %vm3673, %v3672, %v2936
      %v3706 = vsel %vm1746, %v3674, %v3002
      %v3707 = vsel %vm1746, %v3675, %v3004
      %v3708 = vsel %vm1746, %v3676, %v3006
      %v3709 = vsel %vm1746, %v3677, %v3008
      %v3710 = vsel %vm1746, %v3678, %v3010
      %v3711 = vsel %vm1746, %v3679, %v3012
      %v3712 = vsel %vm1746, %v3680, %v3014
      %v3713 = vsel %vm1746, %v3681, %v3016
      %v3714 = vsel %vm1746, %v3682, %v3018
      %v3715 = vsel %vm1746, %v3683, %v3020
      %v3716 = vsel %vm1746, %v3684, %v3022
      %v3717 = vsel %vm1746, %v3685, %v3024
      %v3718 = vsel %vm1746, %v3686, %v3026
      %v3719 = vsel %vm1746, %v3687, %v3028
      %v3720 = vsel %vm1746, %v3688, %v3030
      %v3721 = vsel %vm1746, %v3689, %v3032
      %v3722 = vsel %vm1746, %v3690, %v3034
      %v3723 = vsel %vm1746, %v3691, %v3036
      %v3724 = vsel %vm1746, %v3692, %v3038
      %v3725 = vsel %vm1746, %v3693, %v3040
      %v3726 = vsel %vm1746, %v3694, %v3042
      %v3727 = vsel %vm1746, %v3695, %v3044
      %v3728 = vsel %vm1746, %v3696, %v3046
      %v3729 = vsel %vm1746, %v3697, %v3048
      %v3730 = vsel %vm1746, %v3698, %v3050
      %v3731 = vsel %vm1746, %v3699, %v3052
      %v3732 = vsel %vm1746, %v3700, %v3054
      %v3733 = vsel %vm1746, %v3701, %v3056
      %v3734 = vsel %vm1746, %v3702, %v3058
      %v3735 = vsel %vm1746, %v3703, %v3060
      %v3736 = vsel %vm1746, %v3704, %v3062
      %v3737 = vsel %vm1746, %v3705, %v3064
      %vm3738 = vcmask 162816
      %v3739 = vsel %vm3738, %v3706, %v3130
      %v3740 = vsel %vm3738, %v3707, %v3132
      %v3741 = vsel %vm3738, %v3708, %v3134
      %v3742 = vsel %vm3738, %v3709, %v3136
      %v3743 = vsel %vm3738, %v3710, %v3138
      %v3744 = vsel %vm3738, %v3711, %v3140
      %v3745 = vsel %vm3738, %v3712, %v3142
      %v3746 = vsel %vm3738, %v3713, %v3144
      %v3747 = vsel %vm3738, %v3714, %v3146
      %v3748 = vsel %vm3738, %v3715, %v3148
      %v3749 = vsel %vm3738, %v3716, %v3150
      %v3750 = vsel %vm3738, %v3717, %v3152
      %v3751 = vsel %vm3738, %v3718, %v3154
      %v3752 = vsel %vm3738, %v3719, %v3156
      %v3753 = vsel %vm3738, %v3720, %v3158
      %v3754 = vsel %vm3738, %v3721, %v3160
      %v3755 = vsel %vm3738, %v3722, %v3162
      %v3756 = vsel %vm3738, %v3723, %v3164
      %v3757 = vsel %vm3738, %v3724, %v3166
      %v3758 = vsel %vm3738, %v3725, %v3168
      %v3759 = vsel %vm3738, %v3726, %v3170
      %v3760 = vsel %vm3738, %v3727, %v3172
      %v3761 = vsel %vm3738, %v3728, %v3174
      %v3762 = vsel %vm3738, %v3729, %v3176
      %v3763 = vsel %vm3738, %v3730, %v3178
      %v3764 = vsel %vm3738, %v3731, %v3180
      %v3765 = vsel %vm3738, %v3732, %v3182
      %v3766 = vsel %vm3738, %v3733, %v3184
      %v3767 = vsel %vm3738, %v3734, %v3186
      %v3768 = vsel %vm3738, %v3735, %v3188
      %v3769 = vsel %vm3738, %v3736, %v3190
      %v3770 = vsel %vm3738, %v3737, %v3192
      %v3771 = vsel %vm1779, %v3739, %v3258
      %v3772 = vsel %vm1779, %v3740, %v3260
      %v3773 = vsel %vm1779, %v3741, %v3262
      %v3774 = vsel %vm1779, %v3742, %v3264
      %v3775 = vsel %vm1779, %v3743, %v3266
      %v3776 = vsel %vm1779, %v3744, %v3268
      %v3777 = vsel %vm1779, %v3745, %v3270
      %v3778 = vsel %vm1779, %v3746, %v3272
      %v3779 = vsel %vm1779, %v3747, %v3274
      %v3780 = vsel %vm1779, %v3748, %v3276
      %v3781 = vsel %vm1779, %v3749, %v3278
      %v3782 = vsel %vm1779, %v3750, %v3280
      %v3783 = vsel %vm1779, %v3751, %v3282
      %v3784 = vsel %vm1779, %v3752, %v3284
      %v3785 = vsel %vm1779, %v3753, %v3286
      %v3786 = vsel %vm1779, %v3754, %v3288
      %v3787 = vsel %vm1779, %v3755, %v3290
      %v3788 = vsel %vm1779, %v3756, %v3292
      %v3789 = vsel %vm1779, %v3757, %v3294
      %v3790 = vsel %vm1779, %v3758, %v3296
      %v3791 = vsel %vm1779, %v3759, %v3298
      %v3792 = vsel %vm1779, %v3760, %v3300
      %v3793 = vsel %vm1779, %v3761, %v3302
      %v3794 = vsel %vm1779, %v3762, %v3304
      %v3795 = vsel %vm1779, %v3763, %v3306
      %v3796 = vsel %vm1779, %v3764, %v3308
      %v3797 = vsel %vm1779, %v3765, %v3310
      %v3798 = vsel %vm1779, %v3766, %v3312
      %v3799 = vsel %vm1779, %v3767, %v3314
      %v3800 = vsel %vm1779, %v3768, %v3316
      %v3801 = vsel %vm1779, %v3769, %v3318
      %v3802 = vsel %vm1779, %v3770, %v3320
      %vm3803 = vcmask 228352
      %v3804 = vsel %vm3803, %v3771, %v3386
      %v3805 = vsel %vm3803, %v3772, %v3388
      %v3806 = vsel %vm3803, %v3773, %v3390
      %v3807 = vsel %vm3803, %v3774, %v3392
      %v3808 = vsel %vm3803, %v3775, %v3394
      %v3809 = vsel %vm3803, %v3776, %v3396
      %v3810 = vsel %vm3803, %v3777, %v3398
      %v3811 = vsel %vm3803, %v3778, %v3400
      %v3812 = vsel %vm3803, %v3779, %v3402
      %v3813 = vsel %vm3803, %v3780, %v3404
      %v3814 = vsel %vm3803, %v3781, %v3406
      %v3815 = vsel %vm3803, %v3782, %v3408
      %v3816 = vsel %vm3803, %v3783, %v3410
      %v3817 = vsel %vm3803, %v3784, %v3412
      %v3818 = vsel %vm3803, %v3785, %v3414
      %v3819 = vsel %vm3803, %v3786, %v3416
      %v3820 = vsel %vm3803, %v3787, %v3418
      %v3821 = vsel %vm3803, %v3788, %v3420
      %v3822 = vsel %vm3803, %v3789, %v3422
      %v3823 = vsel %vm3803, %v3790, %v3424
      %v3824 = vsel %vm3803, %v3791, %v3426
      %v3825 = vsel %vm3803, %v3792, %v3428
      %v3826 = vsel %vm3803, %v3793, %v3430
      %v3827 = vsel %vm3803, %v3794, %v3432
      %v3828 = vsel %vm3803, %v3795, %v3434
      %v3829 = vsel %vm3803, %v3796, %v3436
      %v3830 = vsel %vm3803, %v3797, %v3438
      %v3831 = vsel %vm3803, %v3798, %v3440
      %v3832 = vsel %vm3803, %v3799, %v3442
      %v3833 = vsel %vm3803, %v3800, %v3444
      %v3834 = vsel %vm3803, %v3801, %v3446
      %v3835 = vsel %vm3803, %v3802, %v3448
      %v3836 = vsel %vm1812, %v3804, %v3514
      %v3837 = vsel %vm1812, %v3805, %v3516
      %v3838 = vsel %vm1812, %v3806, %v3518
      %v3839 = vsel %vm1812, %v3807, %v3520
      %v3840 = vsel %vm1812, %v3808, %v3522
      %v3841 = vsel %vm1812, %v3809, %v3524
      %v3842 = vsel %vm1812, %v3810, %v3526
      %v3843 = vsel %vm1812, %v3811, %v3528
      %v3844 = vsel %vm1812, %v3812, %v3530
      %v3845 = vsel %vm1812, %v3813, %v3532
      %v3846 = vsel %vm1812, %v3814, %v3534
      %v3847 = vsel %vm1812, %v3815, %v3536
      %v3848 = vsel %vm1812, %v3816, %v3538
      %v3849 = vsel %vm1812, %v3817, %v3540
      %v3850 = vsel %vm1812, %v3818, %v3542
      %v3851 = vsel %vm1812, %v3819, %v3544
      %v3852 = vsel %vm1812, %v3820, %v3546
      %v3853 = vsel %vm1812, %v3821, %v3548
      %v3854 = vsel %vm1812, %v3822, %v3550
      %v3855 = vsel %vm1812, %v3823, %v3552
      %v3856 = vsel %vm1812, %v3824, %v3554
      %v3857 = vsel %vm1812, %v3825, %v3556
      %v3858 = vsel %vm1812, %v3826, %v3558
      %v3859 = vsel %vm1812, %v3827, %v3560
      %v3860 = vsel %vm1812, %v3828, %v3562
      %v3861 = vsel %vm1812, %v3829, %v3564
      %v3862 = vsel %vm1812, %v3830, %v3566
      %v3863 = vsel %vm1812, %v3831, %v3568
      %v3864 = vsel %vm1812, %v3832, %v3570
      %v3865 = vsel %vm1812, %v3833, %v3572
      %v3866 = vsel %vm1812, %v3834, %v3574
      %v3867 = vsel %vm1812, %v3835, %v3576
      %v3868 = vpack.c.bf16 %v3837, %v3836
      %v3869 = vpack.c.bf16 %v3839, %v3838
      %v3870 = vpack.c.bf16 %v3841, %v3840
      %v3871 = vpack.c.bf16 %v3843, %v3842
      %v3872 = vpack.c.bf16 %v3845, %v3844
      %v3873 = vpack.c.bf16 %v3847, %v3846
      %v3874 = vpack.c.bf16 %v3849, %v3848
      %v3875 = vpack.c.bf16 %v3851, %v3850
      %v3876 = vpack.c.bf16 %v3853, %v3852
      %v3877 = vpack.c.bf16 %v3855, %v3854
      %v3878 = vpack.c.bf16 %v3857, %v3856
      %v3879 = vpack.c.bf16 %v3859, %v3858
      %v3880 = vpack.c.bf16 %v3861, %v3860
      %v3881 = vpack.c.bf16 %v3863, %v3862
      %v3882 = vpack.c.bf16 %v3865, %v3864
      %v3883 = vpack.c.bf16 %v3867, %v3866
      %v3884 = vld [vmem:[%s3] sm:$0xf]
      %v3885 = vld [vmem:[%s3 + $0x4] sm:$0xf]
      %v3886 = vld [vmem:[%s3 + $0x8] sm:$0xf]
      %v3887 = vld [vmem:[%s3 + $0xc] sm:$0xf]
      %v3888 = vld [vmem:[%s3 + $0x10] sm:$0x3]
      %v3889 = vld [vmem:[%s4] sm:$0x1]
      %v3891 = vperm.slane %v3889, 0
      %v3898 = vunpack.c.l.b16 %v3884
      %v3899 = vunpack.c.l.b16 %v3885
      %v3900 = vunpack.c.l.b16 %v3886
      %v3901 = vunpack.c.l.b16 %v3887
      %v3902 = vunpack.c.l.b16 %v3888
      %v3903 = vpack.c.b16 %v3899, %v3898
      %v3904 = vpack.c.b16 %v3901, %v3900
      %v3905 = vpack.c.b16 %v3902, %v3902
      %vm3908 = vcmask 293888
      %v3910 = vsel %vm3908, %v3868, 0
      %v3913 = vsel %vm3908, %v3869, 0
      %v3916 = vsel %vm3908, %v3870, 0
      %v3919 = vsel %vm3908, %v3871, 0
      %v3922 = vsel %vm3908, %v3872, 0
      %v3925 = vsel %vm3908, %v3873, 0
      %v3928 = vsel %vm3908, %v3874, 0
      %v3931 = vsel %vm3908, %v3875, 0
      %v3934 = vsel %vm3908, %v3876, 0
      %v3937 = vsel %vm3908, %v3877, 0
      %v3940 = vsel %vm3908, %v3878, 0
      %v3943 = vsel %vm3908, %v3879, 0
      %v3946 = vsel %vm3908, %v3880, 0
      %v3949 = vsel %vm3908, %v3881, 0
      %v3952 = vsel %vm3908, %v3882, 0
      %v3955 = vsel %vm3908, %v3883, 0
      %vm3957 = vcmask 1041408
      %v3959 = vsel %vm3957, %v3905, 0
      %3961 = vmatpush.bf16.msra.mxu0 0
      %3962 = vmatpush.bf16.msra.mxu0 0
      %3963 = vmatpush.bf16.msra.mxu0 0
      %3964 = vmatpush.bf16.msra.mxu0 0
      %3965 = vmatpush.bf16.msra.mxu0 0
      %3966 = vmatpush.bf16.msra.mxu0 %v3959
      %3967 = vmatpush.bf16.msra.mxu0 %v3904
      %3968 = vmatpush.bf16.msra.mxu0 %v3903
      %3969 = vmatmul.bf16.gmra.mxu0 %v3910
      %v3970 = vpop.f32.mrf.mxu0
      %v3971 = vadd.f32 %v3891, %v3970
      %v3972 = vpop.f32.mrf.mxu0
      %v3973 = vadd.f32 %v3891, %v3972
      %3974 = vmatmul.bf16.gmra.mxu0 %v3913
      %v3975 = vpop.f32.mrf.mxu0
      %v3976 = vadd.f32 %v3891, %v3975
      %v3977 = vpop.f32.mrf.mxu0
      %v3978 = vadd.f32 %v3891, %v3977
      %3979 = vmatmul.bf16.gmra.mxu0 %v3916
      %v3980 = vpop.f32.mrf.mxu0
      %v3981 = vadd.f32 %v3891, %v3980
      %v3982 = vpop.f32.mrf.mxu0
      %v3983 = vadd.f32 %v3891, %v3982
      %3984 = vmatmul.bf16.gmra.mxu0 %v3919
      %v3985 = vpop.f32.mrf.mxu0
      %v3986 = vadd.f32 %v3891, %v3985
      %v3987 = vpop.f32.mrf.mxu0
      %v3988 = vadd.f32 %v3891, %v3987
      %3989 = vmatmul.bf16.gmra.mxu0 %v3922
      %v3990 = vpop.f32.mrf.mxu0
      %v3991 = vadd.f32 %v3891, %v3990
      %v3992 = vpop.f32.mrf.mxu0
      %v3993 = vadd.f32 %v3891, %v3992
      %3994 = vmatmul.bf16.gmra.mxu0 %v3925
      %v3995 = vpop.f32.mrf.mxu0
      %v3996 = vadd.f32 %v3891, %v3995
      %v3997 = vpop.f32.mrf.mxu0
      %v3998 = vadd.f32 %v3891, %v3997
      %3999 = vmatmul.bf16.gmra.mxu0 %v3928
      %v4000 = vpop.f32.mrf.mxu0
      %v4001 = vadd.f32 %v3891, %v4000
      %v4002 = vpop.f32.mrf.mxu0
      %v4003 = vadd.f32 %v3891, %v4002
      %4004 = vmatmul.bf16.gmra.mxu0 %v3931
      %v4005 = vpop.f32.mrf.mxu0
      %v4006 = vadd.f32 %v3891, %v4005
      %v4007 = vpop.f32.mrf.mxu0
      %v4008 = vadd.f32 %v3891, %v4007
      %4009 = vmatmul.bf16.gmra.mxu0 %v3934
      %v4010 = vpop.f32.mrf.mxu0
      %v4011 = vadd.f32 %v3891, %v4010
      %v4012 = vpop.f32.mrf.mxu0
      %v4013 = vadd.f32 %v3891, %v4012
      %4014 = vmatmul.bf16.gmra.mxu0 %v3937
      %v4015 = vpop.f32.mrf.mxu0
      %v4016 = vadd.f32 %v3891, %v4015
      %v4017 = vpop.f32.mrf.mxu0
      %v4018 = vadd.f32 %v3891, %v4017
      %4019 = vmatmul.bf16.gmra.mxu0 %v3940
      %v4020 = vpop.f32.mrf.mxu0
      %v4021 = vadd.f32 %v3891, %v4020
      %v4022 = vpop.f32.mrf.mxu0
      %v4023 = vadd.f32 %v3891, %v4022
      %4024 = vmatmul.bf16.gmra.mxu0 %v3943
      %v4025 = vpop.f32.mrf.mxu0
      %v4026 = vadd.f32 %v3891, %v4025
      %v4027 = vpop.f32.mrf.mxu0
      %v4028 = vadd.f32 %v3891, %v4027
      %4029 = vmatmul.bf16.gmra.mxu0 %v3946
      %v4030 = vpop.f32.mrf.mxu0
      %v4031 = vadd.f32 %v3891, %v4030
      %v4032 = vpop.f32.mrf.mxu0
      %v4033 = vadd.f32 %v3891, %v4032
      %4034 = vmatmul.bf16.gmra.mxu0 %v3949
      %v4035 = vpop.f32.mrf.mxu0
      %v4036 = vadd.f32 %v3891, %v4035
      %v4037 = vpop.f32.mrf.mxu0
      %v4038 = vadd.f32 %v3891, %v4037
      %4039 = vmatmul.bf16.gmra.mxu0 %v3952
      %v4040 = vpop.f32.mrf.mxu0
      %v4041 = vadd.f32 %v3891, %v4040
      %v4042 = vpop.f32.mrf.mxu0
      %v4043 = vadd.f32 %v3891, %v4042
      %4044 = vmatmul.bf16.gmra.mxu0 %v3955
      %v4045 = vpop.f32.mrf.mxu0
      %v4046 = vadd.f32 %v3891, %v4045
      %v4047 = vpop.f32.mrf.mxu0
      %v4048 = vadd.f32 %v3891, %v4047
      %4049 = vdwg.mxu0
      %v4050 = vmax.f32 %v3971, 0.0
      %v4051 = vmax.f32 %v3973, 0.0
      %v4052 = vmax.f32 %v3976, 0.0
      %v4053 = vmax.f32 %v3978, 0.0
      %v4054 = vmax.f32 %v3981, 0.0
      %v4055 = vmax.f32 %v3983, 0.0
      %v4056 = vmax.f32 %v3986, 0.0
      %v4057 = vmax.f32 %v3988, 0.0
      %v4058 = vmax.f32 %v3991, 0.0
      %v4059 = vmax.f32 %v3993, 0.0
      %v4060 = vmax.f32 %v3996, 0.0
      %v4061 = vmax.f32 %v3998, 0.0
      %v4062 = vmax.f32 %v4001, 0.0
      %v4063 = vmax.f32 %v4003, 0.0
      %v4064 = vmax.f32 %v4006, 0.0
      %v4065 = vmax.f32 %v4008, 0.0
      %v4066 = vmax.f32 %v4011, 0.0
      %v4067 = vmax.f32 %v4013, 0.0
      %v4068 = vmax.f32 %v4016, 0.0
      %v4069 = vmax.f32 %v4018, 0.0
      %v4070 = vmax.f32 %v4021, 0.0
      %v4071 = vmax.f32 %v4023, 0.0
      %v4072 = vmax.f32 %v4026, 0.0
      %v4073 = vmax.f32 %v4028, 0.0
      %v4074 = vmax.f32 %v4031, 0.0
      %v4075 = vmax.f32 %v4033, 0.0
      %v4076 = vmax.f32 %v4036, 0.0
      %v4077 = vmax.f32 %v4038, 0.0
      %v4078 = vmax.f32 %v4041, 0.0
      %v4079 = vmax.f32 %v4043, 0.0
      %v4080 = vmax.f32 %v4046, 0.0
      %v4081 = vmax.f32 %v4048, 0.0
      %v4082 = vld [vmem:[%s5] sm:$0x3]
      %v4083 = vpack.c.bf16 %v4051, %v4050
      %v4084 = vpack.c.bf16 %v4053, %v4052
      %v4085 = vpack.c.bf16 %v4055, %v4054
      %v4086 = vpack.c.bf16 %v4057, %v4056
      %v4087 = vpack.c.bf16 %v4059, %v4058
      %v4088 = vpack.c.bf16 %v4061, %v4060
      %v4089 = vpack.c.bf16 %v4063, %v4062
      %v4090 = vpack.c.bf16 %v4065, %v4064
      %v4091 = vpack.c.bf16 %v4067, %v4066
      %v4092 = vpack.c.bf16 %v4069, %v4068
      %v4093 = vpack.c.bf16 %v4071, %v4070
      %v4094 = vpack.c.bf16 %v4073, %v4072
      %v4095 = vpack.c.bf16 %v4075, %v4074
      %v4096 = vpack.c.bf16 %v4077, %v4076
      %v4097 = vpack.c.bf16 %v4079, %v4078
      %v4098 = vpack.c.bf16 %v4081, %v4080
      %v4099 = vld [vmem:[%s6] sm:$0xf]
      %4101 = vset.pattern.permute.xlu0 0
      %4102 = vperm.xlu0 %4101, %v4099
      %v4103 = vpop.permute.xlu0 %4102
      %v4106 = vsel %vm2207, %v4082, 0
      %v4109 = vsel %vm2207, %v4083, 0
      %v4112 = vsel %vm2207, %v4084, 0
      %v4115 = vsel %vm2207, %v4085, 0
      %v4118 = vsel %vm2207, %v4086, 0
      %v4121 = vsel %vm2207, %v4087, 0
      %v4124 = vsel %vm2207, %v4088, 0
      %v4127 = vsel %vm2207, %v4089, 0
      %v4130 = vsel %vm2207, %v4090, 0
      %v4133 = vsel %vm2207, %v4091, 0
      %v4136 = vsel %vm2207, %v4092, 0
      %v4139 = vsel %vm2207, %v4093, 0
      %v4142 = vsel %vm2207, %v4094, 0
      %v4145 = vsel %vm2207, %v4095, 0
      %v4148 = vsel %vm2207, %v4096, 0
      %v4151 = vsel %vm2207, %v4097, 0
      %v4154 = vsel %vm2207, %v4098, 0
      %4156 = vmatpush.bf16.xpose.msra.mxu0 %v4130
      %4157 = vmatpush.bf16.xpose.msra.mxu0 %v4127
      %4158 = vmatpush.bf16.xpose.msra.mxu0 %v4124
      %4159 = vmatpush.bf16.xpose.msra.mxu0 %v4121
      %4160 = vmatpush.bf16.xpose.msra.mxu0 %v4118
      %4161 = vmatpush.bf16.xpose.msra.mxu0 %v4115
      %4162 = vmatpush.bf16.xpose.msra.mxu0 %v4112
      %4163 = vmatpush.bf16.xpose.msra.mxu0 %v4109
      %4164 = vmatmul.bf16.gmra.mxu0 %v4106
      %v4165 = vpop.f32.mrf.mxu0
      %v4166 = vadd.f32 %v4103, %v4165
      %v4167 = vpop.f32.mrf.mxu0
      %4168 = vdwg.mxu0
      %4169 = vmatpush.bf16.xpose.msra.mxu0 %v4154
      %4170 = vmatpush.bf16.xpose.msra.mxu0 %v4151
      %4171 = vmatpush.bf16.xpose.msra.mxu0 %v4148
      %4172 = vmatpush.bf16.xpose.msra.mxu0 %v4145
      %4173 = vmatpush.bf16.xpose.msra.mxu0 %v4142
      %4174 = vmatpush.bf16.xpose.msra.mxu0 %v4139
      %4175 = vmatpush.bf16.xpose.msra.mxu0 %v4136
      %4176 = vmatpush.bf16.xpose.msra.mxu0 %v4133
      %4177 = vmatmul.bf16.gmra.mxu0 %v4106
      %v4178 = vpop.f32.mrf.mxu0
      %v4179 = vadd.f32 %v4103, %v4178
      %v4180 = vpop.f32.mrf.mxu0
      %4181 = vdwg.mxu0
      %v4182 = vsub.f32 0.0, %v4166
      %v4183 = vsub.f32 0.0, %v4179
      %v4184 = vmul.f32 %v4182, 1.442695
      %v4185 = vpow.pop %v4184
      %v4186 = vmul.f32 %v4183, 1.442695
      %v4187 = vpow.pop %v4186
      %v4188 = vadd.f32 %v4185, 1.0
      %v4189 = vadd.f32 %v4187, 1.0
      %v4190 = vrcp.pop %v4188
      %v4191 = vrcp.pop %v4189
      %v4194 = vrot.slane %v4191, 4
      %v4195 = vsel %vm2082, %v4190, %v4194
      %4197 = vst [vmem:[%s278] sm:$0xff] %v4195
      %p4198 = scmp.lt.s32.totalorder %s18, 1
      %s4199 = scalar_select %p4198, %s18, 1
      %s4200 = smul.addr %s4199, 2
      %s4201 = smul.addr %s4200, 4
      %s4202 = scalar_lea.vmem %s7, %s4201
      // Predicated region
      $region49: #{attention_forward.1} parent=47 // pred_check
        %p4203 = pneg %p188
      $region50: #{attention_forward.1} parent=47 // pred_check_branch
        %4205 = sbr.rel (%p4203) target = $region52
      $region51: #{attention_forward.1} parent=47 // pred_region
        _
      $region52: #{attention_forward.1} parent=47 // pred_fallthru
        _
    $region48: #{attention_forward.1} parent=5 // pred_fallthru
      _
    %p4206 = scmp.le.s32.totalorder 2, %s13
    // Predicated region
    $region53: #{attention_forward.1} parent=5 // pred_check
      %p4207 = pneg %p4206
    $region54: #{attention_forward.1} parent=5 // pred_check_branch
      %4209 = sbr.rel (%p4207) target = $region56
    $region55: #{attention_forward.1} parent=5 // pred_region
      %s4210 = ssub.s32 %s13, 2
      // Predicated region
      $region57: #{attention_forward.1} parent=55 // pred_check
        %p4211 = pneg %p194
      $region58: #{attention_forward.1} parent=55 // pred_check_branch
        %4213 = sbr.rel (%p4211) target = $region60
      $region59: #{attention_forward.1} parent=55 // pred_region
        %p4214 = scmp.lt.s32.totalorder %s19, 1
        %s4215 = scalar_select %p4214, %s19, 1
        %s4216 = smul.addr %s4215, 2
        %s4217 = smul.addr %s4216, 4
        %s4218 = scalar_lea.vmem %s7, %s4217
      $region60: #{attention_forward.1} parent=55 // pred_fallthru
        _
    $region56: #{attention_forward.1} parent=5 // pred_fallthru
      _
  $region6: #{attention_forward.1} parent=0 // loop_footer
    %s17 = sadd.s32 1, %s13
  $region7: #{attention_forward.1} parent=0 // loop_footer_branch
    %12 = sbr.rel target = $region3
  $region8: #{attention_forward.1} parent=0 // loop_exit
    _

</llo_original>
